<compile_context>
chip_gen: v6e
topology: v6e:2x2x1
jax: 0.10.0
libtpu: 0.0.40
codegen_flags: <defaults>
</compile_context>

<pallas_src>
import numpy as np
import jax
import jax.numpy as jnp
from jax import lax
from jax.experimental import pallas as pl
from jax.experimental.pallas import tpu as pltpu


def make_graph_conv_kernel(k: int):
    """Per-batch kernel: kNN -> neighbour max-pool -> 1x1 conv -> partial BN stats."""

    def graph_conv_kernel(x_ref, w_ref, b_ref, y_ref, st_ref):
        # x_ref: (1, Cin, N)  native layout (channels on sublanes, points on lanes)
        # w_ref: (Cout, Cin)  b_ref: (Cout, 1)
        # y_ref: (1, Cout, N) st_ref: (1, Cout, 2)  [col 0 = sum, col 1 = sum of squares]
        x = x_ref[0]                                   # (Cin, N) f32
        cin, n = x.shape
        neg = jnp.finfo(jnp.float32).min

        # Ranking score for row i (fixed): 2*<xi,xj> - ||xj||^2.  The row-constant
        # -||xi||^2 of the true squared distance is dropped (doesn't affect top-k).
        inner = lax.dot_general(                        # (N, N) on MXU, no transpose of x
            x, x, dimension_numbers=(((0,), (0,)), ((), ())),
            preferred_element_type=jnp.float32)
        colsq = jnp.sum(x * x, axis=0, keepdims=True)   # (1, N) sublane reduce
        d = 2.0 * inner - colsq                         # (N, N)

        col = lax.broadcasted_iota(jnp.int32, (n, n), 1)

        # --- top-k selection, fully unrolled (k static). ---------------------
        # Serial chain per step: row max -> lowest-index argmax -> mask -> d update.
        # Feature gathers are deferred (see below) so they stay off this chain.
        onehots = []
        for _ in range(k):
            m = jnp.max(d, axis=1, keepdims=True)                             # (N, 1)
            sel = jnp.min(jnp.where(d >= m, col, n), axis=1, keepdims=True)   # argmax (lowest idx on ties)
            oh = col == sel                                                   # (N, N) bool
            onehots.append(oh)
            d = jnp.where(oh, neg, d)

        # --- deferred neighbour-feature gathers (MXU) + running channel max. --
        acc = jnp.full((cin, n), neg, dtype=jnp.float32)
        for oh in onehots:
            feat = lax.dot_general(                     # (Cin, N): feat[c, i] = x[c, sel_i]
                x, oh.astype(jnp.float32),
                dimension_numbers=(((1,), (1,)), ((), ())),
                preferred_element_type=jnp.float32)
            acc = jnp.maximum(acc, feat)

        # 1x1 Conv1d == (Cout, Cin) @ (Cin, N) + bias, emitted in native layout.
        y = jnp.dot(w_ref[...], acc, preferred_element_type=jnp.float32) + b_ref[...]
        y_ref[0] = y

        # Per-batch BatchNorm partial statistics (reduced over N, per channel).
        s = jnp.sum(y, axis=1, keepdims=True)           # (Cout, 1)
        ss = jnp.sum(y * y, axis=1, keepdims=True)      # (Cout, 1)
        st_ref[0] = jnp.concatenate([s, ss], axis=1)    # (Cout, 2)

    return graph_conv_kernel


def bn_relu_kernel(y_ref, st_ref, g_ref, b_ref, o_ref):
    # y_ref: (1, Cout, N);  st_ref: (B, Cout, 2) partial stats;  g/b: (Cout, 1)
    y = y_ref[0]                                        # (Cout, N)
    n = y.shape[1]
    b_total = st_ref.shape[0]
    inv_count = 1.0 / float(b_total * n)

    st = jnp.sum(st_ref[...], axis=0)                   # (Cout, 2) combine batches (tiny)
    mean = st[:, 0:1] * inv_count                       # (Cout, 1)
    var = st[:, 1:2] * inv_count - mean * mean          # biased var = E[y^2] - mean^2

    scale = g_ref[...] * lax.rsqrt(var + 1e-5)          # (Cout, 1)
    shift = b_ref[...] - mean * scale
    o_ref[0] = jnp.maximum(y * scale + shift, 0.0)


def graph_layer(x, w, bias, gamma, beta, *, k=16):
    """x: (B, Cin, N) f32;  w: (Cout, Cin) (Conv1d weight squeezed);  returns (B, Cout, N)."""
    B, Cin, N = x.shape
    Cout = w.shape[0]
    assert k <= N, "k must not exceed the number of points"

    xf = x.astype(jnp.float32)
    wf = w.astype(jnp.float32)
    bf = bias.reshape(Cout, 1).astype(jnp.float32)
    gf = gamma.reshape(Cout, 1).astype(jnp.float32)
    btf = beta.reshape(Cout, 1).astype(jnp.float32)

    # Kernel 1: per-batch kNN + max-pool + conv, plus per-batch BN partial stats.
    y, stats = pl.pallas_call(
        make_graph_conv_kernel(k),
        out_shape=(
            jax.ShapeDtypeStruct((B, Cout, N), jnp.float32),
            jax.ShapeDtypeStruct((B, Cout, 2), jnp.float32),
        ),
        grid_spec=pltpu.PrefetchScalarGridSpec(
            num_scalar_prefetch=0,
            grid=(B,),
            in_specs=[
                pl.BlockSpec((1, Cin, N), lambda b: (b, 0, 0)),
                pl.BlockSpec((Cout, Cin), lambda b: (0, 0)),
                pl.BlockSpec((Cout, 1), lambda b: (0, 0)),
            ],
            out_specs=[
                pl.BlockSpec((1, Cout, N), lambda b: (b, 0, 0)),
                pl.BlockSpec((1, Cout, 2), lambda b: (b, 0, 0)),
            ],
        ),
        compiler_params=pltpu.CompilerParams(dimension_semantics=("parallel",)),
    )(xf, wf, bf)

    # Kernel 2: combine tiny stats, apply BN scale/shift + ReLU per batch block.
    out = pl.pallas_call(
        bn_relu_kernel,
        out_shape=jax.ShapeDtypeStruct((B, Cout, N), jnp.float32),
        grid_spec=pltpu.PrefetchScalarGridSpec(
            num_scalar_prefetch=0,
            grid=(B,),
            in_specs=[
                pl.BlockSpec((1, Cout, N), lambda b: (b, 0, 0)),
                pl.BlockSpec((B, Cout, 2), lambda b: (0, 0, 0)),
                pl.BlockSpec((Cout, 1), lambda b: (0, 0)),
                pl.BlockSpec((Cout, 1), lambda b: (0, 0)),
            ],
            out_specs=pl.BlockSpec((1, Cout, N), lambda b: (b, 0, 0)),
        ),
        compiler_params=pltpu.CompilerParams(dimension_semantics=("parallel",)),
    )(y, stats, gf, btf)

    return out                                          # (B, Cout, N)


def ref_graph_layer(x, w, bias, gamma, beta, k):
    """Pure-JAX reference mirroring the PyTorch forward (w is (Cout, Cin))."""
    xt = jnp.transpose(x, (0, 2, 1))                    # (B, N, C)
    sq = jnp.sum(xt * xt, axis=-1)
    inner = jnp.einsum("bnc,bmc->bnm", xt, xt)
    dist = -sq[:, :, None] + 2.0 * inner - sq[:, None, :]
    idx = lax.top_k(dist, k)[1]                         # (B, N, k)
    knn_x = jnp.take_along_axis(xt[:, None, :, :], idx[..., None], axis=2)  # (B,N,k,C)
    agg = jnp.max(knn_x, axis=2)                        # (B, N, C)
    y = jnp.einsum("bnc,oc->bno", agg, w) + bias[None, None, :]
    mean = jnp.mean(y, axis=(0, 1), keepdims=True)
    var = jnp.mean((y - mean) ** 2, axis=(0, 1), keepdims=True)
    yn = (y - mean) / jnp.sqrt(var + 1e-5)
    out = jnp.maximum(yn * gamma[None, None, :] + beta[None, None, :], 0.0)
    return jnp.transpose(out, (0, 2, 1))


if __name__ == "__main__":
    B, Cin, N, Cout, K = 2, 32, 64, 64, 16

    key = jax.random.PRNGKey(0)
    k1, k2, k3, k4, k5 = jax.random.split(key, 5)
    x = jax.random.normal(k1, (B, Cin, N), dtype=jnp.float32)
    # Conv1d weight (Cout, Cin, 1) squeezed to (Cout, Cin).
    w = jax.random.normal(k2, (Cout, Cin), dtype=jnp.float32) / np.sqrt(Cin)
    bias = jax.random.normal(k3, (Cout,), dtype=jnp.float32) * 0.1
    gamma = jax.random.uniform(k4, (Cout,), minval=0.5, maxval=1.5, dtype=jnp.float32)
    beta = jax.random.normal(k5, (Cout,), dtype=jnp.float32) * 0.1

    out = graph_layer(x, w, bias, gamma, beta, k=K)
    jax.block_until_ready(out)

    ref = ref_graph_layer(x, w, bias, gamma, beta, K)
    assert out.shape == (B, Cout, N)
    np.testing.assert_allclose(np.asarray(out), np.asarray(ref), rtol=5e-4, atol=5e-4)
    print("KERNEL_OK")
</pallas_src>

<mosaic_0001>
module attributes {stable_mosaic.version = 11 : i64} {
  func.func @graph_conv_kernel(%arg0: i32, %arg1: memref<1x32x64xf32, #tpu.memory_space<vmem>>, %arg2: memref<64x32xf32, #tpu.memory_space<vmem>>, %arg3: memref<64x1xf32, #tpu.memory_space<vmem>>, %arg4: memref<1x64x64xf32, #tpu.memory_space<vmem>>, %arg5: memref<1x64x2xf32, #tpu.memory_space<vmem>>) attributes {dimension_semantics = [#tpu.dimension_semantics<parallel>], iteration_bounds = array<i64: 2>, scalar_prefetch = 0 : i64, scratch_operands = 0 : i64, tpu.core_type = #tpu.core_type<tc>, window_params = [{transform_indices = @transform_0, window_bounds = array<i64: 1, 32, 64>}, {pipeline_mode = #tpu.pipeline_mode<synchronous>, transform_indices = @transform_1, window_bounds = array<i64: 64, 32>}, {pipeline_mode = #tpu.pipeline_mode<synchronous>, transform_indices = @transform_2, window_bounds = array<i64: 64, 1>}, {transform_indices = @transform_3, window_bounds = array<i64: 1, 64, 64>}, {transform_indices = @transform_4, window_bounds = array<i64: 1, 64, 2>}]} {
    %c0 = arith.constant 0 : index
    %c0_0 = arith.constant 0 : index
    %c0_1 = arith.constant 0 : index
    %0 = vector.load %arg1[%c0, %c0_0, %c0_1] : memref<1x32x64xf32, #tpu.memory_space<vmem>>, vector<1x32x64xf32>
    %1 = vector.shape_cast %0 : vector<1x32x64xf32> to vector<32x64xf32>
    %cst = arith.constant dense<0.000000e+00> : vector<64x64xf32>
    %2 = tpu.matmul %1, %1, %cst {dimension_numbers = #tpu.dot_dimension_numbers<[0], [0], [1], [1], [0, 1, 1, 1], [], []>} : vector<32x64xf32>, vector<32x64xf32>, vector<64x64xf32> -> vector<64x64xf32>
    %3 = arith.mulf %1, %1 : vector<32x64xf32>
    %cst_2 = arith.constant dense<0.000000e+00> : vector<64xf32>
    %4 = vector.multi_reduction <add>, %3, %cst_2 [0] : vector<32x64xf32> to vector<64xf32>
    %5 = vector.shape_cast %4 : vector<64xf32> to vector<1x64xf32>
    %cst_3 = arith.constant 2.000000e+00 : f32
    %6 = vector.broadcast %cst_3 : f32 to vector<64x64xf32>
    %7 = arith.mulf %6, %2 : vector<64x64xf32>
    %8 = vector.broadcast %5 : vector<1x64xf32> to vector<64x64xf32>
    %9 = arith.subf %7, %8 : vector<64x64xf32>
    %10 = tpu.iota {dimensions = array<i32: 1>} : vector<64x64xi32>
    %cst_4 = arith.constant dense<0xFF800000> : vector<64xf32>
    %11 = vector.multi_reduction <maximumf>, %9, %cst_4 [1] : vector<64x64xf32> to vector<64xf32>
    %12 = vector.shape_cast %11 : vector<64xf32> to vector<64x1xf32>
    %13 = vector.broadcast %12 : vector<64x1xf32> to vector<64x64xf32>
    %14 = arith.cmpf oge, %9, %13 : vector<64x64xf32>
    %c64_i32 = arith.constant 64 : i32
    %15 = vector.broadcast %c64_i32 : i32 to vector<64x64xi32>
    %16 = arith.select %14, %10, %15 : vector<64x64xi1>, vector<64x64xi32>
    %cst_5 = arith.constant dense<2147483647> : vector<64xi32>
    %17 = vector.multi_reduction <minsi>, %16, %cst_5 [1] : vector<64x64xi32> to vector<64xi32>
    %18 = vector.shape_cast %17 : vector<64xi32> to vector<64x1xi32>
    %19 = vector.broadcast %18 : vector<64x1xi32> to vector<64x64xi32>
    %20 = arith.cmpi eq, %10, %19 : vector<64x64xi32>
    %cst_6 = arith.constant -3.40282347E+38 : f32
    %21 = vector.broadcast %cst_6 : f32 to vector<64x64xf32>
    %22 = arith.select %20, %21, %9 : vector<64x64xi1>, vector<64x64xf32>
    %cst_7 = arith.constant dense<0xFF800000> : vector<64xf32>
    %23 = vector.multi_reduction <maximumf>, %22, %cst_7 [1] : vector<64x64xf32> to vector<64xf32>
    %24 = vector.shape_cast %23 : vector<64xf32> to vector<64x1xf32>
    %25 = vector.broadcast %24 : vector<64x1xf32> to vector<64x64xf32>
    %26 = arith.cmpf oge, %22, %25 : vector<64x64xf32>
    %c64_i32_8 = arith.constant 64 : i32
    %27 = vector.broadcast %c64_i32_8 : i32 to vector<64x64xi32>
    %28 = arith.select %26, %10, %27 : vector<64x64xi1>, vector<64x64xi32>
    %cst_9 = arith.constant dense<2147483647> : vector<64xi32>
    %29 = vector.multi_reduction <minsi>, %28, %cst_9 [1] : vector<64x64xi32> to vector<64xi32>
    %30 = vector.shape_cast %29 : vector<64xi32> to vector<64x1xi32>
    %31 = vector.broadcast %30 : vector<64x1xi32> to vector<64x64xi32>
    %32 = arith.cmpi eq, %10, %31 : vector<64x64xi32>
    %cst_10 = arith.constant -3.40282347E+38 : f32
    %33 = vector.broadcast %cst_10 : f32 to vector<64x64xf32>
    %34 = arith.select %32, %33, %22 : vector<64x64xi1>, vector<64x64xf32>
    %cst_11 = arith.constant dense<0xFF800000> : vector<64xf32>
    %35 = vector.multi_reduction <maximumf>, %34, %cst_11 [1] : vector<64x64xf32> to vector<64xf32>
    %36 = vector.shape_cast %35 : vector<64xf32> to vector<64x1xf32>
    %37 = vector.broadcast %36 : vector<64x1xf32> to vector<64x64xf32>
    %38 = arith.cmpf oge, %34, %37 : vector<64x64xf32>
    %c64_i32_12 = arith.constant 64 : i32
    %39 = vector.broadcast %c64_i32_12 : i32 to vector<64x64xi32>
    %40 = arith.select %38, %10, %39 : vector<64x64xi1>, vector<64x64xi32>
    %cst_13 = arith.constant dense<2147483647> : vector<64xi32>
    %41 = vector.multi_reduction <minsi>, %40, %cst_13 [1] : vector<64x64xi32> to vector<64xi32>
    %42 = vector.shape_cast %41 : vector<64xi32> to vector<64x1xi32>
    %43 = vector.broadcast %42 : vector<64x1xi32> to vector<64x64xi32>
    %44 = arith.cmpi eq, %10, %43 : vector<64x64xi32>
    %cst_14 = arith.constant -3.40282347E+38 : f32
    %45 = vector.broadcast %cst_14 : f32 to vector<64x64xf32>
    %46 = arith.select %44, %45, %34 : vector<64x64xi1>, vector<64x64xf32>
    %cst_15 = arith.constant dense<0xFF800000> : vector<64xf32>
    %47 = vector.multi_reduction <maximumf>, %46, %cst_15 [1] : vector<64x64xf32> to vector<64xf32>
    %48 = vector.shape_cast %47 : vector<64xf32> to vector<64x1xf32>
    %49 = vector.broadcast %48 : vector<64x1xf32> to vector<64x64xf32>
    %50 = arith.cmpf oge, %46, %49 : vector<64x64xf32>
    %c64_i32_16 = arith.constant 64 : i32
    %51 = vector.broadcast %c64_i32_16 : i32 to vector<64x64xi32>
    %52 = arith.select %50, %10, %51 : vector<64x64xi1>, vector<64x64xi32>
    %cst_17 = arith.constant dense<2147483647> : vector<64xi32>
    %53 = vector.multi_reduction <minsi>, %52, %cst_17 [1] : vector<64x64xi32> to vector<64xi32>
    %54 = vector.shape_cast %53 : vector<64xi32> to vector<64x1xi32>
    %55 = vector.broadcast %54 : vector<64x1xi32> to vector<64x64xi32>
    %56 = arith.cmpi eq, %10, %55 : vector<64x64xi32>
    %cst_18 = arith.constant -3.40282347E+38 : f32
    %57 = vector.broadcast %cst_18 : f32 to vector<64x64xf32>
    %58 = arith.select %56, %57, %46 : vector<64x64xi1>, vector<64x64xf32>
    %cst_19 = arith.constant dense<0xFF800000> : vector<64xf32>
    %59 = vector.multi_reduction <maximumf>, %58, %cst_19 [1] : vector<64x64xf32> to vector<64xf32>
    %60 = vector.shape_cast %59 : vector<64xf32> to vector<64x1xf32>
    %61 = vector.broadcast %60 : vector<64x1xf32> to vector<64x64xf32>
    %62 = arith.cmpf oge, %58, %61 : vector<64x64xf32>
    %c64_i32_20 = arith.constant 64 : i32
    %63 = vector.broadcast %c64_i32_20 : i32 to vector<64x64xi32>
    %64 = arith.select %62, %10, %63 : vector<64x64xi1>, vector<64x64xi32>
    %cst_21 = arith.constant dense<2147483647> : vector<64xi32>
    %65 = vector.multi_reduction <minsi>, %64, %cst_21 [1] : vector<64x64xi32> to vector<64xi32>
    %66 = vector.shape_cast %65 : vector<64xi32> to vector<64x1xi32>
    %67 = vector.broadcast %66 : vector<64x1xi32> to vector<64x64xi32>
    %68 = arith.cmpi eq, %10, %67 : vector<64x64xi32>
    %cst_22 = arith.constant -3.40282347E+38 : f32
    %69 = vector.broadcast %cst_22 : f32 to vector<64x64xf32>
    %70 = arith.select %68, %69, %58 : vector<64x64xi1>, vector<64x64xf32>
    %cst_23 = arith.constant dense<0xFF800000> : vector<64xf32>
    %71 = vector.multi_reduction <maximumf>, %70, %cst_23 [1] : vector<64x64xf32> to vector<64xf32>
    %72 = vector.shape_cast %71 : vector<64xf32> to vector<64x1xf32>
    %73 = vector.broadcast %72 : vector<64x1xf32> to vector<64x64xf32>
    %74 = arith.cmpf oge, %70, %73 : vector<64x64xf32>
    %c64_i32_24 = arith.constant 64 : i32
    %75 = vector.broadcast %c64_i32_24 : i32 to vector<64x64xi32>
    %76 = arith.select %74, %10, %75 : vector<64x64xi1>, vector<64x64xi32>
    %cst_25 = arith.constant dense<2147483647> : vector<64xi32>
    %77 = vector.multi_reduction <minsi>, %76, %cst_25 [1] : vector<64x64xi32> to vector<64xi32>
    %78 = vector.shape_cast %77 : vector<64xi32> to vector<64x1xi32>
    %79 = vector.broadcast %78 : vector<64x1xi32> to vector<64x64xi32>
    %80 = arith.cmpi eq, %10, %79 : vector<64x64xi32>
    %cst_26 = arith.constant -3.40282347E+38 : f32
    %81 = vector.broadcast %cst_26 : f32 to vector<64x64xf32>
    %82 = arith.select %80, %81, %70 : vector<64x64xi1>, vector<64x64xf32>
    %cst_27 = arith.constant dense<0xFF800000> : vector<64xf32>
    %83 = vector.multi_reduction <maximumf>, %82, %cst_27 [1] : vector<64x64xf32> to vector<64xf32>
    %84 = vector.shape_cast %83 : vector<64xf32> to vector<64x1xf32>
    %85 = vector.broadcast %84 : vector<64x1xf32> to vector<64x64xf32>
    %86 = arith.cmpf oge, %82, %85 : vector<64x64xf32>
    %c64_i32_28 = arith.constant 64 : i32
    %87 = vector.broadcast %c64_i32_28 : i32 to vector<64x64xi32>
    %88 = arith.select %86, %10, %87 : vector<64x64xi1>, vector<64x64xi32>
    %cst_29 = arith.constant dense<2147483647> : vector<64xi32>
    %89 = vector.multi_reduction <minsi>, %88, %cst_29 [1] : vector<64x64xi32> to vector<64xi32>
    %90 = vector.shape_cast %89 : vector<64xi32> to vector<64x1xi32>
    %91 = vector.broadcast %90 : vector<64x1xi32> to vector<64x64xi32>
    %92 = arith.cmpi eq, %10, %91 : vector<64x64xi32>
    %cst_30 = arith.constant -3.40282347E+38 : f32
    %93 = vector.broadcast %cst_30 : f32 to vector<64x64xf32>
    %94 = arith.select %92, %93, %82 : vector<64x64xi1>, vector<64x64xf32>
    %cst_31 = arith.constant dense<0xFF800000> : vector<64xf32>
    %95 = vector.multi_reduction <maximumf>, %94, %cst_31 [1] : vector<64x64xf32> to vector<64xf32>
    %96 = vector.shape_cast %95 : vector<64xf32> to vector<64x1xf32>
    %97 = vector.broadcast %96 : vector<64x1xf32> to vector<64x64xf32>
    %98 = arith.cmpf oge, %94, %97 : vector<64x64xf32>
    %c64_i32_32 = arith.constant 64 : i32
    %99 = vector.broadcast %c64_i32_32 : i32 to vector<64x64xi32>
    %100 = arith.select %98, %10, %99 : vector<64x64xi1>, vector<64x64xi32>
    %cst_33 = arith.constant dense<2147483647> : vector<64xi32>
    %101 = vector.multi_reduction <minsi>, %100, %cst_33 [1] : vector<64x64xi32> to vector<64xi32>
    %102 = vector.shape_cast %101 : vector<64xi32> to vector<64x1xi32>
    %103 = vector.broadcast %102 : vector<64x1xi32> to vector<64x64xi32>
    %104 = arith.cmpi eq, %10, %103 : vector<64x64xi32>
    %cst_34 = arith.constant -3.40282347E+38 : f32
    %105 = vector.broadcast %cst_34 : f32 to vector<64x64xf32>
    %106 = arith.select %104, %105, %94 : vector<64x64xi1>, vector<64x64xf32>
    %cst_35 = arith.constant dense<0xFF800000> : vector<64xf32>
    %107 = vector.multi_reduction <maximumf>, %106, %cst_35 [1] : vector<64x64xf32> to vector<64xf32>
    %108 = vector.shape_cast %107 : vector<64xf32> to vector<64x1xf32>
    %109 = vector.broadcast %108 : vector<64x1xf32> to vector<64x64xf32>
    %110 = arith.cmpf oge, %106, %109 : vector<64x64xf32>
    %c64_i32_36 = arith.constant 64 : i32
    %111 = vector.broadcast %c64_i32_36 : i32 to vector<64x64xi32>
    %112 = arith.select %110, %10, %111 : vector<64x64xi1>, vector<64x64xi32>
    %cst_37 = arith.constant dense<2147483647> : vector<64xi32>
    %113 = vector.multi_reduction <minsi>, %112, %cst_37 [1] : vector<64x64xi32> to vector<64xi32>
    %114 = vector.shape_cast %113 : vector<64xi32> to vector<64x1xi32>
    %115 = vector.broadcast %114 : vector<64x1xi32> to vector<64x64xi32>
    %116 = arith.cmpi eq, %10, %115 : vector<64x64xi32>
    %cst_38 = arith.constant -3.40282347E+38 : f32
    %117 = vector.broadcast %cst_38 : f32 to vector<64x64xf32>
    %118 = arith.select %116, %117, %106 : vector<64x64xi1>, vector<64x64xf32>
    %cst_39 = arith.constant dense<0xFF800000> : vector<64xf32>
    %119 = vector.multi_reduction <maximumf>, %118, %cst_39 [1] : vector<64x64xf32> to vector<64xf32>
    %120 = vector.shape_cast %119 : vector<64xf32> to vector<64x1xf32>
    %121 = vector.broadcast %120 : vector<64x1xf32> to vector<64x64xf32>
    %122 = arith.cmpf oge, %118, %121 : vector<64x64xf32>
    %c64_i32_40 = arith.constant 64 : i32
    %123 = vector.broadcast %c64_i32_40 : i32 to vector<64x64xi32>
    %124 = arith.select %122, %10, %123 : vector<64x64xi1>, vector<64x64xi32>
    %cst_41 = arith.constant dense<2147483647> : vector<64xi32>
    %125 = vector.multi_reduction <minsi>, %124, %cst_41 [1] : vector<64x64xi32> to vector<64xi32>
    %126 = vector.shape_cast %125 : vector<64xi32> to vector<64x1xi32>
    %127 = vector.broadcast %126 : vector<64x1xi32> to vector<64x64xi32>
    %128 = arith.cmpi eq, %10, %127 : vector<64x64xi32>
    %cst_42 = arith.constant -3.40282347E+38 : f32
    %129 = vector.broadcast %cst_42 : f32 to vector<64x64xf32>
    %130 = arith.select %128, %129, %118 : vector<64x64xi1>, vector<64x64xf32>
    %cst_43 = arith.constant dense<0xFF800000> : vector<64xf32>
    %131 = vector.multi_reduction <maximumf>, %130, %cst_43 [1] : vector<64x64xf32> to vector<64xf32>
    %132 = vector.shape_cast %131 : vector<64xf32> to vector<64x1xf32>
    %133 = vector.broadcast %132 : vector<64x1xf32> to vector<64x64xf32>
    %134 = arith.cmpf oge, %130, %133 : vector<64x64xf32>
    %c64_i32_44 = arith.constant 64 : i32
    %135 = vector.broadcast %c64_i32_44 : i32 to vector<64x64xi32>
    %136 = arith.select %134, %10, %135 : vector<64x64xi1>, vector<64x64xi32>
    %cst_45 = arith.constant dense<2147483647> : vector<64xi32>
    %137 = vector.multi_reduction <minsi>, %136, %cst_45 [1] : vector<64x64xi32> to vector<64xi32>
    %138 = vector.shape_cast %137 : vector<64xi32> to vector<64x1xi32>
    %139 = vector.broadcast %138 : vector<64x1xi32> to vector<64x64xi32>
    %140 = arith.cmpi eq, %10, %139 : vector<64x64xi32>
    %cst_46 = arith.constant -3.40282347E+38 : f32
    %141 = vector.broadcast %cst_46 : f32 to vector<64x64xf32>
    %142 = arith.select %140, %141, %130 : vector<64x64xi1>, vector<64x64xf32>
    %cst_47 = arith.constant dense<0xFF800000> : vector<64xf32>
    %143 = vector.multi_reduction <maximumf>, %142, %cst_47 [1] : vector<64x64xf32> to vector<64xf32>
    %144 = vector.shape_cast %143 : vector<64xf32> to vector<64x1xf32>
    %145 = vector.broadcast %144 : vector<64x1xf32> to vector<64x64xf32>
    %146 = arith.cmpf oge, %142, %145 : vector<64x64xf32>
    %c64_i32_48 = arith.constant 64 : i32
    %147 = vector.broadcast %c64_i32_48 : i32 to vector<64x64xi32>
    %148 = arith.select %146, %10, %147 : vector<64x64xi1>, vector<64x64xi32>
    %cst_49 = arith.constant dense<2147483647> : vector<64xi32>
    %149 = vector.multi_reduction <minsi>, %148, %cst_49 [1] : vector<64x64xi32> to vector<64xi32>
    %150 = vector.shape_cast %149 : vector<64xi32> to vector<64x1xi32>
    %151 = vector.broadcast %150 : vector<64x1xi32> to vector<64x64xi32>
    %152 = arith.cmpi eq, %10, %151 : vector<64x64xi32>
    %cst_50 = arith.constant -3.40282347E+38 : f32
    %153 = vector.broadcast %cst_50 : f32 to vector<64x64xf32>
    %154 = arith.select %152, %153, %142 : vector<64x64xi1>, vector<64x64xf32>
    %cst_51 = arith.constant dense<0xFF800000> : vector<64xf32>
    %155 = vector.multi_reduction <maximumf>, %154, %cst_51 [1] : vector<64x64xf32> to vector<64xf32>
    %156 = vector.shape_cast %155 : vector<64xf32> to vector<64x1xf32>
    %157 = vector.broadcast %156 : vector<64x1xf32> to vector<64x64xf32>
    %158 = arith.cmpf oge, %154, %157 : vector<64x64xf32>
    %c64_i32_52 = arith.constant 64 : i32
    %159 = vector.broadcast %c64_i32_52 : i32 to vector<64x64xi32>
    %160 = arith.select %158, %10, %159 : vector<64x64xi1>, vector<64x64xi32>
    %cst_53 = arith.constant dense<2147483647> : vector<64xi32>
    %161 = vector.multi_reduction <minsi>, %160, %cst_53 [1] : vector<64x64xi32> to vector<64xi32>
    %162 = vector.shape_cast %161 : vector<64xi32> to vector<64x1xi32>
    %163 = vector.broadcast %162 : vector<64x1xi32> to vector<64x64xi32>
    %164 = arith.cmpi eq, %10, %163 : vector<64x64xi32>
    %cst_54 = arith.constant -3.40282347E+38 : f32
    %165 = vector.broadcast %cst_54 : f32 to vector<64x64xf32>
    %166 = arith.select %164, %165, %154 : vector<64x64xi1>, vector<64x64xf32>
    %cst_55 = arith.constant dense<0xFF800000> : vector<64xf32>
    %167 = vector.multi_reduction <maximumf>, %166, %cst_55 [1] : vector<64x64xf32> to vector<64xf32>
    %168 = vector.shape_cast %167 : vector<64xf32> to vector<64x1xf32>
    %169 = vector.broadcast %168 : vector<64x1xf32> to vector<64x64xf32>
    %170 = arith.cmpf oge, %166, %169 : vector<64x64xf32>
    %c64_i32_56 = arith.constant 64 : i32
    %171 = vector.broadcast %c64_i32_56 : i32 to vector<64x64xi32>
    %172 = arith.select %170, %10, %171 : vector<64x64xi1>, vector<64x64xi32>
    %cst_57 = arith.constant dense<2147483647> : vector<64xi32>
    %173 = vector.multi_reduction <minsi>, %172, %cst_57 [1] : vector<64x64xi32> to vector<64xi32>
    %174 = vector.shape_cast %173 : vector<64xi32> to vector<64x1xi32>
    %175 = vector.broadcast %174 : vector<64x1xi32> to vector<64x64xi32>
    %176 = arith.cmpi eq, %10, %175 : vector<64x64xi32>
    %cst_58 = arith.constant -3.40282347E+38 : f32
    %177 = vector.broadcast %cst_58 : f32 to vector<64x64xf32>
    %178 = arith.select %176, %177, %166 : vector<64x64xi1>, vector<64x64xf32>
    %cst_59 = arith.constant dense<0xFF800000> : vector<64xf32>
    %179 = vector.multi_reduction <maximumf>, %178, %cst_59 [1] : vector<64x64xf32> to vector<64xf32>
    %180 = vector.shape_cast %179 : vector<64xf32> to vector<64x1xf32>
    %181 = vector.broadcast %180 : vector<64x1xf32> to vector<64x64xf32>
    %182 = arith.cmpf oge, %178, %181 : vector<64x64xf32>
    %c64_i32_60 = arith.constant 64 : i32
    %183 = vector.broadcast %c64_i32_60 : i32 to vector<64x64xi32>
    %184 = arith.select %182, %10, %183 : vector<64x64xi1>, vector<64x64xi32>
    %cst_61 = arith.constant dense<2147483647> : vector<64xi32>
    %185 = vector.multi_reduction <minsi>, %184, %cst_61 [1] : vector<64x64xi32> to vector<64xi32>
    %186 = vector.shape_cast %185 : vector<64xi32> to vector<64x1xi32>
    %187 = vector.broadcast %186 : vector<64x1xi32> to vector<64x64xi32>
    %188 = arith.cmpi eq, %10, %187 : vector<64x64xi32>
    %cst_62 = arith.constant -3.40282347E+38 : f32
    %189 = vector.broadcast %cst_62 : f32 to vector<64x64xf32>
    %190 = arith.select %188, %189, %178 : vector<64x64xi1>, vector<64x64xf32>
    %cst_63 = arith.constant dense<0xFF800000> : vector<64xf32>
    %191 = vector.multi_reduction <maximumf>, %190, %cst_63 [1] : vector<64x64xf32> to vector<64xf32>
    %192 = vector.shape_cast %191 : vector<64xf32> to vector<64x1xf32>
    %193 = vector.broadcast %192 : vector<64x1xf32> to vector<64x64xf32>
    %194 = arith.cmpf oge, %190, %193 : vector<64x64xf32>
    %c64_i32_64 = arith.constant 64 : i32
    %195 = vector.broadcast %c64_i32_64 : i32 to vector<64x64xi32>
    %196 = arith.select %194, %10, %195 : vector<64x64xi1>, vector<64x64xi32>
    %cst_65 = arith.constant dense<2147483647> : vector<64xi32>
    %197 = vector.multi_reduction <minsi>, %196, %cst_65 [1] : vector<64x64xi32> to vector<64xi32>
    %198 = vector.shape_cast %197 : vector<64xi32> to vector<64x1xi32>
    %199 = vector.broadcast %198 : vector<64x1xi32> to vector<64x64xi32>
    %200 = arith.cmpi eq, %10, %199 : vector<64x64xi32>
    %cst_66 = arith.constant -3.40282347E+38 : f32
    %201 = vector.broadcast %cst_66 : f32 to vector<32x64xf32>
    %202 = arith.extui %20 : vector<64x64xi1> to vector<64x64xi32>
    %203 = arith.sitofp %202 : vector<64x64xi32> to vector<64x64xf32>
    %cst_67 = arith.constant dense<0.000000e+00> : vector<32x64xf32>
    %204 = tpu.matmul %1, %203, %cst_67 {dimension_numbers = #tpu.dot_dimension_numbers<[1], [1], [0], [0], [0, 0, 1, 0], [], []>} : vector<32x64xf32>, vector<64x64xf32>, vector<32x64xf32> -> vector<32x64xf32>
    %205 = arith.maximumf %201, %204 : vector<32x64xf32>
    %206 = arith.extui %32 : vector<64x64xi1> to vector<64x64xi32>
    %207 = arith.sitofp %206 : vector<64x64xi32> to vector<64x64xf32>
    %cst_68 = arith.constant dense<0.000000e+00> : vector<32x64xf32>
    %208 = tpu.matmul %1, %207, %cst_68 {dimension_numbers = #tpu.dot_dimension_numbers<[1], [1], [0], [0], [0, 0, 1, 0], [], []>} : vector<32x64xf32>, vector<64x64xf32>, vector<32x64xf32> -> vector<32x64xf32>
    %209 = arith.maximumf %205, %208 : vector<32x64xf32>
    %210 = arith.extui %44 : vector<64x64xi1> to vector<64x64xi32>
    %211 = arith.sitofp %210 : vector<64x64xi32> to vector<64x64xf32>
    %cst_69 = arith.constant dense<0.000000e+00> : vector<32x64xf32>
    %212 = tpu.matmul %1, %211, %cst_69 {dimension_numbers = #tpu.dot_dimension_numbers<[1], [1], [0], [0], [0, 0, 1, 0], [], []>} : vector<32x64xf32>, vector<64x64xf32>, vector<32x64xf32> -> vector<32x64xf32>
    %213 = arith.maximumf %209, %212 : vector<32x64xf32>
    %214 = arith.extui %56 : vector<64x64xi1> to vector<64x64xi32>
    %215 = arith.sitofp %214 : vector<64x64xi32> to vector<64x64xf32>
    %cst_70 = arith.constant dense<0.000000e+00> : vector<32x64xf32>
    %216 = tpu.matmul %1, %215, %cst_70 {dimension_numbers = #tpu.dot_dimension_numbers<[1], [1], [0], [0], [0, 0, 1, 0], [], []>} : vector<32x64xf32>, vector<64x64xf32>, vector<32x64xf32> -> vector<32x64xf32>
    %217 = arith.maximumf %213, %216 : vector<32x64xf32>
    %218 = arith.extui %68 : vector<64x64xi1> to vector<64x64xi32>
    %219 = arith.sitofp %218 : vector<64x64xi32> to vector<64x64xf32>
    %cst_71 = arith.constant dense<0.000000e+00> : vector<32x64xf32>
    %220 = tpu.matmul %1, %219, %cst_71 {dimension_numbers = #tpu.dot_dimension_numbers<[1], [1], [0], [0], [0, 0, 1, 0], [], []>} : vector<32x64xf32>, vector<64x64xf32>, vector<32x64xf32> -> vector<32x64xf32>
    %221 = arith.maximumf %217, %220 : vector<32x64xf32>
    %222 = arith.extui %80 : vector<64x64xi1> to vector<64x64xi32>
    %223 = arith.sitofp %222 : vector<64x64xi32> to vector<64x64xf32>
    %cst_72 = arith.constant dense<0.000000e+00> : vector<32x64xf32>
    %224 = tpu.matmul %1, %223, %cst_72 {dimension_numbers = #tpu.dot_dimension_numbers<[1], [1], [0], [0], [0, 0, 1, 0], [], []>} : vector<32x64xf32>, vector<64x64xf32>, vector<32x64xf32> -> vector<32x64xf32>
    %225 = arith.maximumf %221, %224 : vector<32x64xf32>
    %226 = arith.extui %92 : vector<64x64xi1> to vector<64x64xi32>
    %227 = arith.sitofp %226 : vector<64x64xi32> to vector<64x64xf32>
    %cst_73 = arith.constant dense<0.000000e+00> : vector<32x64xf32>
    %228 = tpu.matmul %1, %227, %cst_73 {dimension_numbers = #tpu.dot_dimension_numbers<[1], [1], [0], [0], [0, 0, 1, 0], [], []>} : vector<32x64xf32>, vector<64x64xf32>, vector<32x64xf32> -> vector<32x64xf32>
    %229 = arith.maximumf %225, %228 : vector<32x64xf32>
    %230 = arith.extui %104 : vector<64x64xi1> to vector<64x64xi32>
    %231 = arith.sitofp %230 : vector<64x64xi32> to vector<64x64xf32>
    %cst_74 = arith.constant dense<0.000000e+00> : vector<32x64xf32>
    %232 = tpu.matmul %1, %231, %cst_74 {dimension_numbers = #tpu.dot_dimension_numbers<[1], [1], [0], [0], [0, 0, 1, 0], [], []>} : vector<32x64xf32>, vector<64x64xf32>, vector<32x64xf32> -> vector<32x64xf32>
    %233 = arith.maximumf %229, %232 : vector<32x64xf32>
    %234 = arith.extui %116 : vector<64x64xi1> to vector<64x64xi32>
    %235 = arith.sitofp %234 : vector<64x64xi32> to vector<64x64xf32>
    %cst_75 = arith.constant dense<0.000000e+00> : vector<32x64xf32>
    %236 = tpu.matmul %1, %235, %cst_75 {dimension_numbers = #tpu.dot_dimension_numbers<[1], [1], [0], [0], [0, 0, 1, 0], [], []>} : vector<32x64xf32>, vector<64x64xf32>, vector<32x64xf32> -> vector<32x64xf32>
    %237 = arith.maximumf %233, %236 : vector<32x64xf32>
    %238 = arith.extui %128 : vector<64x64xi1> to vector<64x64xi32>
    %239 = arith.sitofp %238 : vector<64x64xi32> to vector<64x64xf32>
    %cst_76 = arith.constant dense<0.000000e+00> : vector<32x64xf32>
    %240 = tpu.matmul %1, %239, %cst_76 {dimension_numbers = #tpu.dot_dimension_numbers<[1], [1], [0], [0], [0, 0, 1, 0], [], []>} : vector<32x64xf32>, vector<64x64xf32>, vector<32x64xf32> -> vector<32x64xf32>
    %241 = arith.maximumf %237, %240 : vector<32x64xf32>
    %242 = arith.extui %140 : vector<64x64xi1> to vector<64x64xi32>
    %243 = arith.sitofp %242 : vector<64x64xi32> to vector<64x64xf32>
    %cst_77 = arith.constant dense<0.000000e+00> : vector<32x64xf32>
    %244 = tpu.matmul %1, %243, %cst_77 {dimension_numbers = #tpu.dot_dimension_numbers<[1], [1], [0], [0], [0, 0, 1, 0], [], []>} : vector<32x64xf32>, vector<64x64xf32>, vector<32x64xf32> -> vector<32x64xf32>
    %245 = arith.maximumf %241, %244 : vector<32x64xf32>
    %246 = arith.extui %152 : vector<64x64xi1> to vector<64x64xi32>
    %247 = arith.sitofp %246 : vector<64x64xi32> to vector<64x64xf32>
    %cst_78 = arith.constant dense<0.000000e+00> : vector<32x64xf32>
    %248 = tpu.matmul %1, %247, %cst_78 {dimension_numbers = #tpu.dot_dimension_numbers<[1], [1], [0], [0], [0, 0, 1, 0], [], []>} : vector<32x64xf32>, vector<64x64xf32>, vector<32x64xf32> -> vector<32x64xf32>
    %249 = arith.maximumf %245, %248 : vector<32x64xf32>
    %250 = arith.extui %164 : vector<64x64xi1> to vector<64x64xi32>
    %251 = arith.sitofp %250 : vector<64x64xi32> to vector<64x64xf32>
    %cst_79 = arith.constant dense<0.000000e+00> : vector<32x64xf32>
    %252 = tpu.matmul %1, %251, %cst_79 {dimension_numbers = #tpu.dot_dimension_numbers<[1], [1], [0], [0], [0, 0, 1, 0], [], []>} : vector<32x64xf32>, vector<64x64xf32>, vector<32x64xf32> -> vector<32x64xf32>
    %253 = arith.maximumf %249, %252 : vector<32x64xf32>
    %254 = arith.extui %176 : vector<64x64xi1> to vector<64x64xi32>
    %255 = arith.sitofp %254 : vector<64x64xi32> to vector<64x64xf32>
    %cst_80 = arith.constant dense<0.000000e+00> : vector<32x64xf32>
    %256 = tpu.matmul %1, %255, %cst_80 {dimension_numbers = #tpu.dot_dimension_numbers<[1], [1], [0], [0], [0, 0, 1, 0], [], []>} : vector<32x64xf32>, vector<64x64xf32>, vector<32x64xf32> -> vector<32x64xf32>
    %257 = arith.maximumf %253, %256 : vector<32x64xf32>
    %258 = arith.extui %188 : vector<64x64xi1> to vector<64x64xi32>
    %259 = arith.sitofp %258 : vector<64x64xi32> to vector<64x64xf32>
    %cst_81 = arith.constant dense<0.000000e+00> : vector<32x64xf32>
    %260 = tpu.matmul %1, %259, %cst_81 {dimension_numbers = #tpu.dot_dimension_numbers<[1], [1], [0], [0], [0, 0, 1, 0], [], []>} : vector<32x64xf32>, vector<64x64xf32>, vector<32x64xf32> -> vector<32x64xf32>
    %261 = arith.maximumf %257, %260 : vector<32x64xf32>
    %262 = arith.extui %200 : vector<64x64xi1> to vector<64x64xi32>
    %263 = arith.sitofp %262 : vector<64x64xi32> to vector<64x64xf32>
    %cst_82 = arith.constant dense<0.000000e+00> : vector<32x64xf32>
    %264 = tpu.matmul %1, %263, %cst_82 {dimension_numbers = #tpu.dot_dimension_numbers<[1], [1], [0], [0], [0, 0, 1, 0], [], []>} : vector<32x64xf32>, vector<64x64xf32>, vector<32x64xf32> -> vector<32x64xf32>
    %265 = arith.maximumf %261, %264 : vector<32x64xf32>
    %c0_83 = arith.constant 0 : index
    %c0_84 = arith.constant 0 : index
    %266 = vector.load %arg2[%c0_83, %c0_84] : memref<64x32xf32, #tpu.memory_space<vmem>>, vector<64x32xf32>
    %cst_85 = arith.constant dense<0.000000e+00> : vector<64x64xf32>
    %267 = tpu.matmul %266, %265, %cst_85 {dimension_numbers = #tpu.dot_dimension_numbers<[1], [0], [0], [1], [0, 0, 1, 1], [], []>} : vector<64x32xf32>, vector<32x64xf32>, vector<64x64xf32> -> vector<64x64xf32>
    %c0_86 = arith.constant 0 : index
    %c0_87 = arith.constant 0 : index
    %268 = vector.load %arg3[%c0_86, %c0_87] : memref<64x1xf32, #tpu.memory_space<vmem>>, vector<64x1xf32>
    %269 = vector.broadcast %268 : vector<64x1xf32> to vector<64x64xf32>
    %270 = arith.addf %267, %269 : vector<64x64xf32>
    %c0_88 = arith.constant 0 : index
    %c0_89 = arith.constant 0 : index
    %c0_90 = arith.constant 0 : index
    %271 = vector.load %arg4[%c0_88, %c0_89, %c0_90] : memref<1x64x64xf32, #tpu.memory_space<vmem>>, vector<1x64x64xf32>
    %272 = vector.shape_cast %271 : vector<1x64x64xf32> to vector<64x64xf32>
    %273 = vector.shape_cast %270 : vector<64x64xf32> to vector<1x64x64xf32>
    tpu.vector_store %arg4[%c0_88, %c0_89, %c0_90], %273 {strides = array<i32>} : memref<1x64x64xf32, #tpu.memory_space<vmem>>, vector<1x64x64xf32>,
    %cst_91 = arith.constant dense<0.000000e+00> : vector<64xf32>
    %274 = vector.multi_reduction <add>, %270, %cst_91 [1] : vector<64x64xf32> to vector<64xf32>
    %275 = vector.shape_cast %274 : vector<64xf32> to vector<64x1xf32>
    %276 = arith.mulf %270, %270 : vector<64x64xf32>
    %cst_92 = arith.constant dense<0.000000e+00> : vector<64xf32>
    %277 = vector.multi_reduction <add>, %276, %cst_92 [1] : vector<64x64xf32> to vector<64xf32>
    %278 = vector.shape_cast %277 : vector<64xf32> to vector<64x1xf32>
    %279 = tpu.concatenate %275, %278 in 1 : vector<64x1xf32>, vector<64x1xf32> -> vector<64x2xf32>
    %c0_93 = arith.constant 0 : index
    %c0_94 = arith.constant 0 : index
    %c0_95 = arith.constant 0 : index
    %280 = vector.load %arg5[%c0_93, %c0_94, %c0_95] : memref<1x64x2xf32, #tpu.memory_space<vmem>>, vector<1x64x2xf32>
    %281 = vector.shape_cast %280 : vector<1x64x2xf32> to vector<64x2xf32>
    %282 = vector.shape_cast %279 : vector<64x2xf32> to vector<1x64x2xf32>
    tpu.vector_store %arg5[%c0_93, %c0_94, %c0_95], %282 {strides = array<i32>} : memref<1x64x2xf32, #tpu.memory_space<vmem>>, vector<1x64x2xf32>,
    return
  }
  func.func @transform_0(%arg0: i32) -> (i32, i32, i32) {
    %c0_i32 = arith.constant 0 : i32
    %c0_i32_0 = arith.constant 0 : i32
    %c0_i32_1 = arith.constant 0 : i32
    return %arg0, %c0_i32, %c0_i32_0 : i32, i32, i32
  }
  func.func @transform_1(%arg0: i32) -> (i32, i32) {
    %c0_i32 = arith.constant 0 : i32
    %c0_i32_0 = arith.constant 0 : i32
    %c0_i32_1 = arith.constant 0 : i32
    return %c0_i32, %c0_i32_0 : i32, i32
  }
  func.func @transform_2(%arg0: i32) -> (i32, i32) {
    %c0_i32 = arith.constant 0 : i32
    %c0_i32_0 = arith.constant 0 : i32
    %c0_i32_1 = arith.constant 0 : i32
    return %c0_i32, %c0_i32_0 : i32, i32
  }
  func.func @transform_3(%arg0: i32) -> (i32, i32, i32) {
    %c0_i32 = arith.constant 0 : i32
    %c0_i32_0 = arith.constant 0 : i32
    %c0_i32_1 = arith.constant 0 : i32
    return %arg0, %c0_i32, %c0_i32_0 : i32, i32, i32
  }
  func.func @transform_4(%arg0: i32) -> (i32, i32, i32) {
    %c0_i32 = arith.constant 0 : i32
    %c0_i32_0 = arith.constant 0 : i32
    %c0_i32_1 = arith.constant 0 : i32
    return %arg0, %c0_i32, %c0_i32_0 : i32, i32, i32
  }
}

</mosaic_0001>

<llo_original>
// kernel: tpu_custom_call.1
$region0: #{tpu_custom_call.1}
  #allocation0 [shape = 'u32[]', space=smem, size = 0x4, offset = 0x4, fixed_abs, tag = 'smem constant byte address 0x4 - core index']
  #allocation1 [shape = 'u32[144,128]{1,0:T(1,128)}', space=vmem, size = 0x12000, scoped, tag = 'internal scratch']
  %s0 = inlined_call_operand.vmem [shape: f32[2,32,64], index: 0, kind: input, shape index: {}]
  %s1 = inlined_call_operand.vmem [shape: f32[64,32], index: 1, kind: input, shape index: {}]
  %s2 = inlined_call_operand.vmem [shape: f32[64,1], index: 2, kind: input, shape index: {}]
  %s3 = inlined_call_operand.hbm [shape: f32[2,64,64], index: 3, kind: output, shape index: {0}]
  %s4 = inlined_call_operand.vmem [shape: f32[2,64,2], index: 4, kind: output, shape index: {1}]
  %5 = xla_tuple %s3, %s4
  %s6 = sld [smem:[#allocation0]]
  $region53: #{tpu_custom_call.1} parent=0
    _
  %s8 = ssub.s32 1, %s6
  %s9 = scalar_select 0, %s8, %s6
  $region1: #{tpu_custom_call.1} parent=0
    #allocation2 [shape = 'u8[65536]{0}', space=vmem, size = 0x10000, scoped, tag = 'output window, operand 0']
    #allocation3 [shape = 's32[2]{0}', space=sflag, size = 0x8, scoped, tag = 'scoped memory for tpu_custom_call.1']
    %10 = vsyncpa [#allocation3], 0
    %s11 = scalar_lea.sflag [#allocation3], 1
    %12 = vsyncpa %s11, 0
    loop: start=0, step=1, limit=4
    $region2: #{tpu_custom_call.1} parent=1 // loop_pre_header
      _
    $region3: #{tpu_custom_call.1} parent=1 // loop_header
      %s14 = sphi 0, %s18
      %p15 = scmp.ge.s32.totalorder %s14, 4
      %s24 = sphi 0, %s26
      %s27 = sphi 0, %s24
      %s28 = sphi 0, %s27
      %s44 = sphi 0, %s28
      %s48 = sphi 0, %s48
      %s50 = sphi 0, %s48
      %s51 = sphi 0, %s50
      %s65 = sphi 0, %s51
      %s69 = sphi 0, %s69
      %s71 = sphi 0, %s69
      %s72 = sphi 0, %s71
      %s86 = sphi 0, %s72
      %s92 = sphi 0, %s94
      %s95 = sphi 0, %s92
      %s96 = sphi 0, %s95
      %s112 = sphi 0, %s96
      %s118 = sphi 0, %s120
      %s121 = sphi 0, %s118
      %s122 = sphi 0, %s121
      %s138 = sphi 0, %s122
    $region4: #{tpu_custom_call.1} parent=1 // loop_header_branch
      %17 = sbr.rel (%p15) target = $region8
    $region5: #{tpu_custom_call.1} parent=1 // loop_body
      %s19 = ssub.s32 %s14, 1
      %s20 = ssub.s32 %s14, 2
      %s21 = sadd.s32 %s14, 1
      %s22 = ssub.s32 %s14, %s21
      %p23 = scmp.eq.s32.totalorder %s22, 0
      %s25 = sadd.s32 %s24, 1
      %s26 = scalar_select %p23, %s24, %s25
      %p29 = pneg %p23
      %p30 = scmp.eq.s32.totalorder %s14, 1
      %p31 = por %p29, %p30
      %p32 = scmp.ne.s32.totalorder %s24, %s27
      %p33 = scmp.eq.s32.totalorder %s14, 0
      %p34 = por %p32, %p33
      %p35 = scmp.ne.s32.totalorder %s24, %s27
      %p36 = scmp.eq.s32.totalorder %s19, 1
      %p37 = por %p35, %p36
      %p38 = scmp.ne.s32.totalorder %s27, %s28
      %p39 = scmp.eq.s32.totalorder %s19, 0
      %p40 = por %p38, %p39
      %p41 = scmp.ne.s32.totalorder %s27, %s28
      %p42 = scmp.eq.s32.totalorder %s20, 1
      %p43 = por %p41, %p42
      %p45 = scmp.ne.s32.totalorder %s28, %s44
      %p46 = scmp.eq.s32.totalorder %s20, 0
      %p47 = por %p45, %p46
      %s49 = sadd.s32 %s48, 1
      %p52 = scmp.eq.s32.totalorder %s14, 1
      %p53 = scmp.ne.s32.totalorder %s48, %s50
      %p54 = scmp.eq.s32.totalorder %s14, 0
      %p55 = por %p53, %p54
      %p56 = scmp.ne.s32.totalorder %s48, %s50
      %p57 = scmp.eq.s32.totalorder %s19, 1
      %p58 = por %p56, %p57
      %p59 = scmp.ne.s32.totalorder %s50, %s51
      %p60 = scmp.eq.s32.totalorder %s19, 0
      %p61 = por %p59, %p60
      %p62 = scmp.ne.s32.totalorder %s50, %s51
      %p63 = scmp.eq.s32.totalorder %s20, 1
      %p64 = por %p62, %p63
      %p66 = scmp.ne.s32.totalorder %s51, %s65
      %p67 = scmp.eq.s32.totalorder %s20, 0
      %p68 = por %p66, %p67
      %s70 = sadd.s32 %s69, 1
      %p73 = scmp.eq.s32.totalorder %s14, 1
      %p74 = scmp.ne.s32.totalorder %s69, %s71
      %p75 = scmp.eq.s32.totalorder %s14, 0
      %p76 = por %p74, %p75
      %p77 = scmp.ne.s32.totalorder %s69, %s71
      %p78 = scmp.eq.s32.totalorder %s19, 1
      %p79 = por %p77, %p78
      %p80 = scmp.ne.s32.totalorder %s71, %s72
      %p81 = scmp.eq.s32.totalorder %s19, 0
      %p82 = por %p80, %p81
      %p83 = scmp.ne.s32.totalorder %s71, %s72
      %p84 = scmp.eq.s32.totalorder %s20, 1
      %p85 = por %p83, %p84
      %p87 = scmp.ne.s32.totalorder %s72, %s86
      %p88 = scmp.eq.s32.totalorder %s20, 0
      %p89 = por %p87, %p88
      %s90 = ssub.s32 %s14, %s21
      %p91 = scmp.eq.s32.totalorder %s90, 0
      %s93 = sadd.s32 %s92, 1
      %s94 = scalar_select %p91, %s92, %s93
      %p97 = pneg %p91
      %p98 = scmp.eq.s32.totalorder %s14, 1
      %p99 = por %p97, %p98
      %p100 = scmp.ne.s32.totalorder %s92, %s95
      %p101 = scmp.eq.s32.totalorder %s14, 0
      %p102 = por %p100, %p101
      %p103 = scmp.ne.s32.totalorder %s92, %s95
      %p104 = scmp.eq.s32.totalorder %s19, 1
      %p105 = por %p103, %p104
      %p106 = scmp.ne.s32.totalorder %s95, %s96
      %p107 = scmp.eq.s32.totalorder %s19, 0
      %p108 = por %p106, %p107
      %p109 = scmp.ne.s32.totalorder %s95, %s96
      %p110 = scmp.eq.s32.totalorder %s20, 1
      %p111 = por %p109, %p110
      %p113 = scmp.ne.s32.totalorder %s96, %s112
      %p114 = scmp.eq.s32.totalorder %s20, 0
      %p115 = por %p113, %p114
      %s116 = ssub.s32 %s14, %s21
      %p117 = scmp.eq.s32.totalorder %s116, 0
      %s119 = sadd.s32 %s118, 1
      %s120 = scalar_select %p117, %s118, %s119
      %p123 = pneg %p117
      %p124 = scmp.eq.s32.totalorder %s14, 1
      %p125 = por %p123, %p124
      %p126 = scmp.ne.s32.totalorder %s118, %s121
      %p127 = scmp.eq.s32.totalorder %s14, 0
      %p128 = por %p126, %p127
      %p129 = scmp.ne.s32.totalorder %s118, %s121
      %p130 = scmp.eq.s32.totalorder %s19, 1
      %p131 = por %p129, %p130
      %p132 = scmp.ne.s32.totalorder %s121, %s122
      %p133 = scmp.eq.s32.totalorder %s19, 0
      %p134 = por %p132, %p133
      %p135 = scmp.ne.s32.totalorder %s121, %s122
      %p136 = scmp.eq.s32.totalorder %s20, 1
      %p137 = por %p135, %p136
      %p139 = scmp.ne.s32.totalorder %s122, %s138
      %p140 = scmp.eq.s32.totalorder %s20, 0
      %p141 = por %p139, %p140
      %p142 = scmp.le.s32.totalorder 1, %s14
      %p143 = scmp.lt.s32.totalorder %s14, 3
      %p144 = pnand %p142, %p143
      %p145 = pneg %p144
      // Predicated region
      $region9: #{tpu_custom_call.1} parent=5 // pred_check
        _
      $region10: #{tpu_custom_call.1} parent=5 // pred_check_branch
        %147 = sbr.rel (%p144) target = $region12
      $region11: #{tpu_custom_call.1} parent=5 // pred_region
        %s148 = ssub.s32 %s14, 1
        // Predicated region
        $region13: #{tpu_custom_call.1} parent=11 // pred_check
          %p149 = pneg %p61
        $region14: #{tpu_custom_call.1} parent=11 // pred_check_branch
          %151 = sbr.rel (%p149) target = $region16
        $region15: #{tpu_custom_call.1} parent=11 // pred_region
          _
        $region16: #{tpu_custom_call.1} parent=11 // pred_fallthru
          _
        // Predicated region
        $region17: #{tpu_custom_call.1} parent=11 // pred_check
          %p152 = pneg %p82
        $region18: #{tpu_custom_call.1} parent=11 // pred_check_branch
          %154 = sbr.rel (%p152) target = $region20
        $region19: #{tpu_custom_call.1} parent=11 // pred_region
          _
        $region20: #{tpu_custom_call.1} parent=11 // pred_fallthru
          _
      $region12: #{tpu_custom_call.1} parent=5 // pred_fallthru
        _
      %p155 = scmp.lt.s32.totalorder %s14, 2
      // Predicated region
      $region21: #{tpu_custom_call.1} parent=5 // pred_check
        %p156 = pneg %p155
      $region22: #{tpu_custom_call.1} parent=5 // pred_check_branch
        %158 = sbr.rel (%p156) target = $region24
      $region23: #{tpu_custom_call.1} parent=5 // pred_region
        // Predicated region
        $region25: #{tpu_custom_call.1} parent=23 // pred_check
          %p159 = pneg %p34
        $region26: #{tpu_custom_call.1} parent=23 // pred_check_branch
          %161 = sbr.rel (%p159) target = $region28
        $region27: #{tpu_custom_call.1} parent=23 // pred_region
          %p162 = scmp.lt.s32.totalorder %s14, 1
          %s163 = scalar_select %p162, %s14, 1
          %s164 = smul.addr %s163, 4
          %s165 = smul.addr %s164, 8
          %s166 = scalar_lea.vmem %s0, %s165
        $region28: #{tpu_custom_call.1} parent=23 // pred_fallthru
          _
      $region24: #{tpu_custom_call.1} parent=5 // pred_fallthru
        _
      %p167 = scmp.le.s32.totalorder 1, %s14
      %p168 = scmp.lt.s32.totalorder %s14, 3
      %p169 = pnand %p167, %p168
      %p170 = pneg %p169
      // Predicated region
      $region29: #{tpu_custom_call.1} parent=5 // pred_check
        _
      $region30: #{tpu_custom_call.1} parent=5 // pred_check_branch
        %172 = sbr.rel (%p169) target = $region32
      $region31: #{tpu_custom_call.1} parent=5 // pred_region
        %s173 = ssub.s32 %s14, 1
        %p174 = scmp.lt.s32.totalorder %s19, 1
        %s175 = scalar_select %p174, %s19, 1
        %s176 = smul.addr %s175, 4
        %s177 = smul.addr %s176, 8
        %s178 = scalar_lea.vmem %s0, %s177
        %p179 = pneg %p40
        %p180 = pneg %p37
        %p181 = pneg %p61
        %p182 = pneg %p58
        %p183 = pneg %p82
        %p184 = pneg %p79
        %p185 = pneg %p108
        %p186 = pneg %p105
        %s187 = sand.u32 %s95, 1
        %s188 = scalar_lea.sflag [#allocation3], %s187
        %s189 = sand.u32 %s95, 1
        %s190 = smul.addr %s189, 64
        %s191 = scalar_lea.vmem [#allocation2], %s190
        %p192 = pneg %p134
        %p193 = pneg %p131
        %p194 = scmp.lt.s32.totalorder %s19, 1
        %s195 = scalar_select %p194, %s19, 1
        %s196 = smul.addr %s195, 8
        %s197 = smul.addr %s196, 8
        %s198 = scalar_lea.vmem %s4, %s197
        %p199 = scmp.lt.s32.totalorder %s19, 1
        %s200 = scalar_select %p199, %s19, 1
        %s201 = smul.addr %s200, 4
        %s202 = smul.addr %s201, 8
        %s203 = scalar_lea.vmem %s0, %s202
        %p204 = scmp.lt.s32.totalorder %s19, 1
        %s205 = scalar_select %p204, %s19, 1
        %s206 = smul.addr %s205, 8
        %s207 = smul.addr %s206, 8
        %s208 = scalar_lea.vmem %s4, %s207
        %v209 = vld [vmem:[%s203] sm:$0xff]
        %v210 = vld [vmem:[%s203 + $0x8] sm:$0xff]
        %v211 = vld [vmem:[%s203 + $0x10] sm:$0xff]
        %v212 = vld [vmem:[%s203 + $0x18] sm:$0xff]
        %213 = vxpose.xlu0.b32.start [1/16] %v209, 128
        %214 = vxpose.xlu0.b32.cont [2/16] %v210, 128
        %215 = vxpose.xlu0.b32.cont [3/16] %v211, 128
        %216 = vxpose.xlu0.b32.cont [4/16] %v212, 128
        %217 = vxpose.xlu0.b32.cont [5/16] 0.0, 128
        %218 = vxpose.xlu0.b32.cont [6/16] 0.0, 128
        %219 = vxpose.xlu0.b32.cont [7/16] 0.0, 128
        %220 = vxpose.xlu0.b32.cont [8/16] 0.0, 128
        %221 = vxpose.xlu0.b32.cont [9/16] 0.0, 128
        %222 = vxpose.xlu0.b32.cont [10/16] 0.0, 128
        %223 = vxpose.xlu0.b32.cont [11/16] 0.0, 128
        %224 = vxpose.xlu0.b32.cont [12/16] 0.0, 128
        %225 = vxpose.xlu0.b32.cont [13/16] 0.0, 128
        %226 = vxpose.xlu0.b32.cont [14/16] 0.0, 128
        %227 = vxpose.xlu0.b32.cont [15/16] 0.0, 128
        %228 = vxpose.xlu0.b32.end [16/16] 0.0, 128
        %v229 = vpop.trf.xlu0
        %v230 = vpop.trf.xlu0
        %v231 = vpop.trf.xlu0
        %v232 = vpop.trf.xlu0
        %v233 = vpop.trf.xlu0
        %v234 = vpop.trf.xlu0
        %v235 = vpop.trf.xlu0
        %v236 = vpop.trf.xlu0
        %v237 = vpop.trf.xlu0
        %v238 = vpop.trf.xlu0
        %v239 = vpop.trf.xlu0
        %v240 = vpop.trf.xlu0
        %v241 = vpop.trf.xlu0
        %v242 = vpop.trf.xlu0
        %v243 = vpop.trf.xlu0
        %v244 = vpop.trf.xlu0
        %vm245 = vcmask 261120
        %v247 = vsel %vm245, %v229, 0
        %v250 = vsel %vm245, %v230, 0
        %v253 = vsel %vm245, %v231, 0
        %v256 = vsel %vm245, %v232, 0
        %v259 = vsel %vm245, %v233, 0
        %v262 = vsel %vm245, %v234, 0
        %v265 = vsel %vm245, %v235, 0
        %v268 = vsel %vm245, %v236, 0
        %270 = vmatprep.subr.mxu0 0.0
        %271 = vmatpush1.msra.mxu0 0.0
        %272 = vmatprep.subr.mxu0 0.0
        %273 = vmatpush1.msra.mxu0 0.0
        %274 = vmatprep.subr.mxu0 0.0
        %275 = vmatpush1.msra.mxu0 0.0
        %276 = vmatprep.subr.mxu0 0.0
        %277 = vmatpush1.msra.mxu0 0.0
        %278 = vmatprep.subr.mxu0 0.0
        %279 = vmatpush1.msra.mxu0 0.0
        %280 = vmatprep.subr.mxu0 0.0
        %281 = vmatpush1.msra.mxu0 0.0
        %282 = vmatprep.subr.mxu0 0.0
        %283 = vmatpush1.msra.mxu0 0.0
        %284 = vmatprep.subr.mxu0 0.0
        %285 = vmatpush1.msra.mxu0 0.0
        %286 = vmatprep.subr.mxu0 0.0
        %287 = vmatpush1.msra.mxu0 0.0
        %288 = vmatprep.subr.mxu0 0.0
        %289 = vmatpush1.msra.mxu0 0.0
        %290 = vmatprep.subr.mxu0 0.0
        %291 = vmatpush1.msra.mxu0 0.0
        %292 = vmatprep.subr.mxu0 0.0
        %293 = vmatpush1.msra.mxu0 0.0
        %294 = vmatprep.subr.mxu0 0.0
        %295 = vmatpush1.msra.mxu0 %v212
        %296 = vmatprep.subr.mxu0 0.0
        %297 = vmatpush1.msra.mxu0 %v211
        %298 = vmatprep.subr.mxu0 0.0
        %299 = vmatpush1.msra.mxu0 %v210
        %300 = vmatprep.subr.mxu0 0.0
        %301 = vmatpush1.msra.mxu0 %v209
        %302 = vmatprep.subr.mxu0 0.0
        %303 = vmatpush2.msra.mxu0 0.0
        %304 = vmatprep.subr.mxu0 0.0
        %305 = vmatpush2.msra.mxu0 0.0
        %306 = vmatprep.subr.mxu0 0.0
        %307 = vmatpush2.msra.mxu0 0.0
        %308 = vmatprep.subr.mxu0 0.0
        %309 = vmatpush2.msra.mxu0 0.0
        %310 = vmatprep.subr.mxu0 0.0
        %311 = vmatpush2.msra.mxu0 0.0
        %312 = vmatprep.subr.mxu0 0.0
        %313 = vmatpush2.msra.mxu0 0.0
        %314 = vmatprep.subr.mxu0 0.0
        %315 = vmatpush2.msra.mxu0 0.0
        %316 = vmatprep.subr.mxu0 0.0
        %317 = vmatpush2.msra.mxu0 0.0
        %318 = vmatprep.subr.mxu0 0.0
        %319 = vmatpush2.msra.mxu0 0.0
        %320 = vmatprep.subr.mxu0 0.0
        %321 = vmatpush2.msra.mxu0 0.0
        %322 = vmatprep.subr.mxu0 0.0
        %323 = vmatpush2.msra.mxu0 0.0
        %324 = vmatprep.subr.mxu0 0.0
        %325 = vmatpush2.msra.mxu0 0.0
        %326 = vmatprep.subr.mxu0 0.0
        %327 = vmatpush2.msra.mxu0 0.0
        %328 = vmatprep.subr.mxu0 0.0
        %329 = vmatpush2.msra.mxu0 0.0
        %330 = vmatprep.subr.mxu0 0.0
        %331 = vmatpush2.msra.mxu0 0.0
        %332 = vmatprep.subr.mxu0 0.0
        %333 = vmatpush2.msra.mxu0 0.0
        %334 = vmatprep.mubr.f32.mxu0 0.0
        %335 = vmatmul.mubr.f32.gmra.mxu0 %v247
        %v336 = vpop.f32.mrf.mxu0
        %v337 = vadd.f32 0.0, %v336
        %v338 = vpop.f32.mrf.mxu0
        %339 = vmatprep.mubr.f32.mxu0 0.0
        %340 = vmatmul.mubr.f32.gmra.mxu0 %v250
        %v341 = vpop.f32.mrf.mxu0
        %v342 = vadd.f32 0.0, %v341
        %v343 = vpop.f32.mrf.mxu0
        %344 = vmatprep.mubr.f32.mxu0 0.0
        %345 = vmatmul.mubr.f32.gmra.mxu0 %v253
        %v346 = vpop.f32.mrf.mxu0
        %v347 = vadd.f32 0.0, %v346
        %v348 = vpop.f32.mrf.mxu0
        %349 = vmatprep.mubr.f32.mxu0 0.0
        %350 = vmatmul.mubr.f32.gmra.mxu0 %v256
        %v351 = vpop.f32.mrf.mxu0
        %v352 = vadd.f32 0.0, %v351
        %v353 = vpop.f32.mrf.mxu0
        %354 = vmatprep.mubr.f32.mxu0 0.0
        %355 = vmatmul.mubr.f32.gmra.mxu0 %v259
        %v356 = vpop.f32.mrf.mxu0
        %v357 = vadd.f32 0.0, %v356
        %v358 = vpop.f32.mrf.mxu0
        %359 = vmatprep.mubr.f32.mxu0 0.0
        %360 = vmatmul.mubr.f32.gmra.mxu0 %v262
        %v361 = vpop.f32.mrf.mxu0
        %v362 = vadd.f32 0.0, %v361
        %v363 = vpop.f32.mrf.mxu0
        %364 = vmatprep.mubr.f32.mxu0 0.0
        %365 = vmatmul.mubr.f32.gmra.mxu0 %v265
        %v366 = vpop.f32.mrf.mxu0
        %v367 = vadd.f32 0.0, %v366
        %v368 = vpop.f32.mrf.mxu0
        %369 = vmatprep.mubr.f32.mxu0 0.0
        %370 = vmatmul.mubr.f32.gmra.mxu0 %v268
        %v371 = vpop.f32.mrf.mxu0
        %v372 = vadd.f32 0.0, %v371
        %v373 = vpop.f32.mrf.mxu0
        %374 = vdwg.mxu0
        %v375 = vmul.f32 %v209, %v209
        %v376 = vmul.f32 %v210, %v210
        %v377 = vmul.f32 %v211, %v211
        %v378 = vmul.f32 %v212, %v212
        %vm379 = vcmask 523264
        %v380 = vsel %vm379, %v375, 0.0
        %v381 = vsel %vm379, %v376, 0.0
        %v382 = vadd.f32 %v380, %v381
        %v383 = vsel %vm379, %v377, 0.0
        %v384 = vadd.f32 %v382, %v383
        %v385 = vsel %vm379, %v378, 0.0
        %v386 = vadd.f32 %v384, %v385
        %v387 = vrot.slane %v386, 4
        %v388 = vadd.f32 %v386, %v387
        %v389 = vrot.slane %v388, 2
        %v390 = vadd.f32 %v388, %v389
        %v391 = vrot.slane %v390, 1
        %v392 = vadd.f32 %v390, %v391
        %v393 = vmul.f32 %v337, 2.0
        %v394 = vmul.f32 %v342, 2.0
        %v395 = vmul.f32 %v347, 2.0
        %v396 = vmul.f32 %v352, 2.0
        %v397 = vmul.f32 %v357, 2.0
        %v398 = vmul.f32 %v362, 2.0
        %v399 = vmul.f32 %v367, 2.0
        %v400 = vmul.f32 %v372, 2.0
        %v401 = vsub.f32 %v393, %v392
        %v402 = vsub.f32 %v394, %v392
        %v403 = vsub.f32 %v395, %v392
        %v404 = vsub.f32 %v396, %v392
        %v405 = vsub.f32 %v397, %v392
        %v406 = vsub.f32 %v398, %v392
        %v407 = vsub.f32 %v399, %v392
        %v408 = vsub.f32 %v400, %v392
        %v409 = vlaneseq
        %v410 = vand.u32 %v409, 127
        %v411 = vsel %vm379, %v401, -inf
        %412 = vmax.xlane.f32.xlu0 %v411
        %v413 = vpop.xlane.xlu0 %412
        %v414 = vsel %vm379, %v402, -inf
        %415 = vmax.xlane.f32.xlu0 %v414
        %v416 = vpop.xlane.xlu0 %415
        %v417 = vsel %vm379, %v403, -inf
        %418 = vmax.xlane.f32.xlu0 %v417
        %v419 = vpop.xlane.xlu0 %418
        %v420 = vsel %vm379, %v404, -inf
        %421 = vmax.xlane.f32.xlu0 %v420
        %v422 = vpop.xlane.xlu0 %421
        %v423 = vsel %vm379, %v405, -inf
        %424 = vmax.xlane.f32.xlu0 %v423
        %v425 = vpop.xlane.xlu0 %424
        %v426 = vsel %vm379, %v406, -inf
        %427 = vmax.xlane.f32.xlu0 %v426
        %v428 = vpop.xlane.xlu0 %427
        %v429 = vsel %vm379, %v407, -inf
        %430 = vmax.xlane.f32.xlu0 %v429
        %v431 = vpop.xlane.xlu0 %430
        %v432 = vsel %vm379, %v408, -inf
        %433 = vmax.xlane.f32.xlu0 %v432
        %v434 = vpop.xlane.xlu0 %433
        %vm435 = vcmp.ge.f32.partialorder %v401, %v413
        %vm436 = vcmp.ge.f32.partialorder %v402, %v416
        %vm437 = vcmp.ge.f32.partialorder %v403, %v419
        %vm438 = vcmp.ge.f32.partialorder %v404, %v422
        %vm439 = vcmp.ge.f32.partialorder %v405, %v425
        %vm440 = vcmp.ge.f32.partialorder %v406, %v428
        %vm441 = vcmp.ge.f32.partialorder %v407, %v431
        %vm442 = vcmp.ge.f32.partialorder %v408, %v434
        %v443 = vsel %vm435, %v410, 64
        %v444 = vsel %vm436, %v410, 64
        %v445 = vsel %vm437, %v410, 64
        %v446 = vsel %vm438, %v410, 64
        %v447 = vsel %vm439, %v410, 64
        %v448 = vsel %vm440, %v410, 64
        %v449 = vsel %vm441, %v410, 64
        %v450 = vsel %vm442, %v410, 64
        %v451 = vsel %vm379, %v443, 2147483647
        %v452 = vand.u32 %v451, 65535
        %v453 = vshra.s32 %v451, 16
        %v454 = vcvt.s32.f32 %v452
        %v455 = vcvt.s32.f32 %v453
        %456 = vmin.xlane.f32.xlu0 %v455
        %v457 = vpop.xlane.xlu0 %456
        %vm458 = vcmp.eq.f32.partialorder %v455, %v457
        %v459 = vsel %vm458, %v454, inf
        %460 = vmin.xlane.f32.xlu0 %v459
        %v461 = vpop.xlane.xlu0 %460
        %v462 = vcvt.f32.s32 %v461
        %v463 = vcvt.f32.s32 %v457
        %v464 = vshll.u32 %v463, 16
        %v465 = vadd.s32 %v464, %v462
        %v466 = vsel %vm379, %v444, 2147483647
        %v467 = vand.u32 %v466, 65535
        %v468 = vshra.s32 %v466, 16
        %v469 = vcvt.s32.f32 %v467
        %v470 = vcvt.s32.f32 %v468
        %471 = vmin.xlane.f32.xlu0 %v470
        %v472 = vpop.xlane.xlu0 %471
        %vm473 = vcmp.eq.f32.partialorder %v470, %v472
        %v474 = vsel %vm473, %v469, inf
        %475 = vmin.xlane.f32.xlu0 %v474
        %v476 = vpop.xlane.xlu0 %475
        %v477 = vcvt.f32.s32 %v476
        %v478 = vcvt.f32.s32 %v472
        %v479 = vshll.u32 %v478, 16
        %v480 = vadd.s32 %v479, %v477
        %v481 = vsel %vm379, %v445, 2147483647
        %v482 = vand.u32 %v481, 65535
        %v483 = vshra.s32 %v481, 16
        %v484 = vcvt.s32.f32 %v482
        %v485 = vcvt.s32.f32 %v483
        %486 = vmin.xlane.f32.xlu0 %v485
        %v487 = vpop.xlane.xlu0 %486
        %vm488 = vcmp.eq.f32.partialorder %v485, %v487
        %v489 = vsel %vm488, %v484, inf
        %490 = vmin.xlane.f32.xlu0 %v489
        %v491 = vpop.xlane.xlu0 %490
        %v492 = vcvt.f32.s32 %v491
        %v493 = vcvt.f32.s32 %v487
        %v494 = vshll.u32 %v493, 16
        %v495 = vadd.s32 %v494, %v492
        %v496 = vsel %vm379, %v446, 2147483647
        %v497 = vand.u32 %v496, 65535
        %v498 = vshra.s32 %v496, 16
        %v499 = vcvt.s32.f32 %v497
        %v500 = vcvt.s32.f32 %v498
        %501 = vmin.xlane.f32.xlu0 %v500
        %v502 = vpop.xlane.xlu0 %501
        %vm503 = vcmp.eq.f32.partialorder %v500, %v502
        %v504 = vsel %vm503, %v499, inf
        %505 = vmin.xlane.f32.xlu0 %v504
        %v506 = vpop.xlane.xlu0 %505
        %v507 = vcvt.f32.s32 %v506
        %v508 = vcvt.f32.s32 %v502
        %v509 = vshll.u32 %v508, 16
        %v510 = vadd.s32 %v509, %v507
        %v511 = vsel %vm379, %v447, 2147483647
        %v512 = vand.u32 %v511, 65535
        %v513 = vshra.s32 %v511, 16
        %v514 = vcvt.s32.f32 %v512
        %v515 = vcvt.s32.f32 %v513
        %516 = vmin.xlane.f32.xlu0 %v515
        %v517 = vpop.xlane.xlu0 %516
        %vm518 = vcmp.eq.f32.partialorder %v515, %v517
        %v519 = vsel %vm518, %v514, inf
        %520 = vmin.xlane.f32.xlu0 %v519
        %v521 = vpop.xlane.xlu0 %520
        %v522 = vcvt.f32.s32 %v521
        %v523 = vcvt.f32.s32 %v517
        %v524 = vshll.u32 %v523, 16
        %v525 = vadd.s32 %v524, %v522
        %v526 = vsel %vm379, %v448, 2147483647
        %v527 = vand.u32 %v526, 65535
        %v528 = vshra.s32 %v526, 16
        %v529 = vcvt.s32.f32 %v527
        %v530 = vcvt.s32.f32 %v528
        %531 = vmin.xlane.f32.xlu0 %v530
        %v532 = vpop.xlane.xlu0 %531
        %vm533 = vcmp.eq.f32.partialorder %v530, %v532
        %v534 = vsel %vm533, %v529, inf
        %535 = vmin.xlane.f32.xlu0 %v534
        %v536 = vpop.xlane.xlu0 %535
        %v537 = vcvt.f32.s32 %v536
        %v538 = vcvt.f32.s32 %v532
        %v539 = vshll.u32 %v538, 16
        %v540 = vadd.s32 %v539, %v537
        %v541 = vsel %vm379, %v449, 2147483647
        %v542 = vand.u32 %v541, 65535
        %v543 = vshra.s32 %v541, 16
        %v544 = vcvt.s32.f32 %v542
        %v545 = vcvt.s32.f32 %v543
        %546 = vmin.xlane.f32.xlu0 %v545
        %v547 = vpop.xlane.xlu0 %546
        %vm548 = vcmp.eq.f32.partialorder %v545, %v547
        %v549 = vsel %vm548, %v544, inf
        %550 = vmin.xlane.f32.xlu0 %v549
        %v551 = vpop.xlane.xlu0 %550
        %v552 = vcvt.f32.s32 %v551
        %v553 = vcvt.f32.s32 %v547
        %v554 = vshll.u32 %v553, 16
        %v555 = vadd.s32 %v554, %v552
        %v556 = vsel %vm379, %v450, 2147483647
        %v557 = vand.u32 %v556, 65535
        %v558 = vshra.s32 %v556, 16
        %v559 = vcvt.s32.f32 %v557
        %v560 = vcvt.s32.f32 %v558
        %561 = vmin.xlane.f32.xlu0 %v560
        %v562 = vpop.xlane.xlu0 %561
        %vm563 = vcmp.eq.f32.partialorder %v560, %v562
        %v564 = vsel %vm563, %v559, inf
        %565 = vmin.xlane.f32.xlu0 %v564
        %v566 = vpop.xlane.xlu0 %565
        %v567 = vcvt.f32.s32 %v566
        %v568 = vcvt.f32.s32 %v562
        %v569 = vshll.u32 %v568, 16
        %v570 = vadd.s32 %v569, %v567
        %vm571 = vcmp.eq.s32.totalorder %v410, %v465
        %vm572 = vcmp.eq.s32.totalorder %v410, %v480
        %vm573 = vcmp.eq.s32.totalorder %v410, %v495
        %vm574 = vcmp.eq.s32.totalorder %v410, %v510
        %vm575 = vcmp.eq.s32.totalorder %v410, %v525
        %vm576 = vcmp.eq.s32.totalorder %v410, %v540
        %vm577 = vcmp.eq.s32.totalorder %v410, %v555
        %vm578 = vcmp.eq.s32.totalorder %v410, %v570
        %v579 = vsel %vm571, -3.4028235e+38, %v401
        %v580 = vsel %vm572, -3.4028235e+38, %v402
        %v581 = vsel %vm573, -3.4028235e+38, %v403
        %v582 = vsel %vm574, -3.4028235e+38, %v404
        %v583 = vsel %vm575, -3.4028235e+38, %v405
        %v584 = vsel %vm576, -3.4028235e+38, %v406
        %v585 = vsel %vm577, -3.4028235e+38, %v407
        %v586 = vsel %vm578, -3.4028235e+38, %v408
        %v587 = vsel %vm379, %v579, -inf
        %588 = vmax.xlane.f32.xlu0 %v587
        %v589 = vpop.xlane.xlu0 %588
        %v590 = vsel %vm379, %v580, -inf
        %591 = vmax.xlane.f32.xlu0 %v590
        %v592 = vpop.xlane.xlu0 %591
        %v593 = vsel %vm379, %v581, -inf
        %594 = vmax.xlane.f32.xlu0 %v593
        %v595 = vpop.xlane.xlu0 %594
        %v596 = vsel %vm379, %v582, -inf
        %597 = vmax.xlane.f32.xlu0 %v596
        %v598 = vpop.xlane.xlu0 %597
        %v599 = vsel %vm379, %v583, -inf
        %600 = vmax.xlane.f32.xlu0 %v599
        %v601 = vpop.xlane.xlu0 %600
        %v602 = vsel %vm379, %v584, -inf
        %603 = vmax.xlane.f32.xlu0 %v602
        %v604 = vpop.xlane.xlu0 %603
        %v605 = vsel %vm379, %v585, -inf
        %606 = vmax.xlane.f32.xlu0 %v605
        %v607 = vpop.xlane.xlu0 %606
        %v608 = vsel %vm379, %v586, -inf
        %609 = vmax.xlane.f32.xlu0 %v608
        %v610 = vpop.xlane.xlu0 %609
        %vm611 = vcmp.ge.f32.partialorder %v579, %v589
        %vm612 = vcmp.ge.f32.partialorder %v580, %v592
        %vm613 = vcmp.ge.f32.partialorder %v581, %v595
        %vm614 = vcmp.ge.f32.partialorder %v582, %v598
        %vm615 = vcmp.ge.f32.partialorder %v583, %v601
        %vm616 = vcmp.ge.f32.partialorder %v584, %v604
        %vm617 = vcmp.ge.f32.partialorder %v585, %v607
        %vm618 = vcmp.ge.f32.partialorder %v586, %v610
        %v619 = vsel %vm611, %v410, 64
        %v620 = vsel %vm612, %v410, 64
        %v621 = vsel %vm613, %v410, 64
        %v622 = vsel %vm614, %v410, 64
        %v623 = vsel %vm615, %v410, 64
        %v624 = vsel %vm616, %v410, 64
        %v625 = vsel %vm617, %v410, 64
        %v626 = vsel %vm618, %v410, 64
        %v627 = vsel %vm379, %v619, 2147483647
        %v628 = vand.u32 %v627, 65535
        %v629 = vshra.s32 %v627, 16
        %v630 = vcvt.s32.f32 %v628
        %v631 = vcvt.s32.f32 %v629
        %632 = vmin.xlane.f32.xlu0 %v631
        %v633 = vpop.xlane.xlu0 %632
        %vm634 = vcmp.eq.f32.partialorder %v631, %v633
        %v635 = vsel %vm634, %v630, inf
        %636 = vmin.xlane.f32.xlu0 %v635
        %v637 = vpop.xlane.xlu0 %636
        %v638 = vcvt.f32.s32 %v637
        %v639 = vcvt.f32.s32 %v633
        %v640 = vshll.u32 %v639, 16
        %v641 = vadd.s32 %v640, %v638
        %v642 = vsel %vm379, %v620, 2147483647
        %v643 = vand.u32 %v642, 65535
        %v644 = vshra.s32 %v642, 16
        %v645 = vcvt.s32.f32 %v643
        %v646 = vcvt.s32.f32 %v644
        %647 = vmin.xlane.f32.xlu0 %v646
        %v648 = vpop.xlane.xlu0 %647
        %vm649 = vcmp.eq.f32.partialorder %v646, %v648
        %v650 = vsel %vm649, %v645, inf
        %651 = vmin.xlane.f32.xlu0 %v650
        %v652 = vpop.xlane.xlu0 %651
        %v653 = vcvt.f32.s32 %v652
        %v654 = vcvt.f32.s32 %v648
        %v655 = vshll.u32 %v654, 16
        %v656 = vadd.s32 %v655, %v653
        %v657 = vsel %vm379, %v621, 2147483647
        %v658 = vand.u32 %v657, 65535
        %v659 = vshra.s32 %v657, 16
        %v660 = vcvt.s32.f32 %v658
        %v661 = vcvt.s32.f32 %v659
        %662 = vmin.xlane.f32.xlu0 %v661
        %v663 = vpop.xlane.xlu0 %662
        %vm664 = vcmp.eq.f32.partialorder %v661, %v663
        %v665 = vsel %vm664, %v660, inf
        %666 = vmin.xlane.f32.xlu0 %v665
        %v667 = vpop.xlane.xlu0 %666
        %v668 = vcvt.f32.s32 %v667
        %v669 = vcvt.f32.s32 %v663
        %v670 = vshll.u32 %v669, 16
        %v671 = vadd.s32 %v670, %v668
        %v672 = vsel %vm379, %v622, 2147483647
        %v673 = vand.u32 %v672, 65535
        %v674 = vshra.s32 %v672, 16
        %v675 = vcvt.s32.f32 %v673
        %v676 = vcvt.s32.f32 %v674
        %677 = vmin.xlane.f32.xlu0 %v676
        %v678 = vpop.xlane.xlu0 %677
        %vm679 = vcmp.eq.f32.partialorder %v676, %v678
        %v680 = vsel %vm679, %v675, inf
        %681 = vmin.xlane.f32.xlu0 %v680
        %v682 = vpop.xlane.xlu0 %681
        %v683 = vcvt.f32.s32 %v682
        %v684 = vcvt.f32.s32 %v678
        %v685 = vshll.u32 %v684, 16
        %v686 = vadd.s32 %v685, %v683
        %v687 = vsel %vm379, %v623, 2147483647
        %v688 = vand.u32 %v687, 65535
        %v689 = vshra.s32 %v687, 16
        %v690 = vcvt.s32.f32 %v688
        %v691 = vcvt.s32.f32 %v689
        %692 = vmin.xlane.f32.xlu0 %v691
        %v693 = vpop.xlane.xlu0 %692
        %vm694 = vcmp.eq.f32.partialorder %v691, %v693
        %v695 = vsel %vm694, %v690, inf
        %696 = vmin.xlane.f32.xlu0 %v695
        %v697 = vpop.xlane.xlu0 %696
        %v698 = vcvt.f32.s32 %v697
        %v699 = vcvt.f32.s32 %v693
        %v700 = vshll.u32 %v699, 16
        %v701 = vadd.s32 %v700, %v698
        %v702 = vsel %vm379, %v624, 2147483647
        %v703 = vand.u32 %v702, 65535
        %v704 = vshra.s32 %v702, 16
        %v705 = vcvt.s32.f32 %v703
        %v706 = vcvt.s32.f32 %v704
        %707 = vmin.xlane.f32.xlu0 %v706
        %v708 = vpop.xlane.xlu0 %707
        %vm709 = vcmp.eq.f32.partialorder %v706, %v708
        %v710 = vsel %vm709, %v705, inf
        %711 = vmin.xlane.f32.xlu0 %v710
        %v712 = vpop.xlane.xlu0 %711
        %v713 = vcvt.f32.s32 %v712
        %v714 = vcvt.f32.s32 %v708
        %v715 = vshll.u32 %v714, 16
        %v716 = vadd.s32 %v715, %v713
        %v717 = vsel %vm379, %v625, 2147483647
        %v718 = vand.u32 %v717, 65535
        %v719 = vshra.s32 %v717, 16
        %v720 = vcvt.s32.f32 %v718
        %v721 = vcvt.s32.f32 %v719
        %722 = vmin.xlane.f32.xlu0 %v721
        %v723 = vpop.xlane.xlu0 %722
        %vm724 = vcmp.eq.f32.partialorder %v721, %v723
        %v725 = vsel %vm724, %v720, inf
        %726 = vmin.xlane.f32.xlu0 %v725
        %v727 = vpop.xlane.xlu0 %726
        %v728 = vcvt.f32.s32 %v727
        %v729 = vcvt.f32.s32 %v723
        %v730 = vshll.u32 %v729, 16
        %v731 = vadd.s32 %v730, %v728
        %v732 = vsel %vm379, %v626, 2147483647
        %v733 = vand.u32 %v732, 65535
        %v734 = vshra.s32 %v732, 16
        %v735 = vcvt.s32.f32 %v733
        %v736 = vcvt.s32.f32 %v734
        %737 = vmin.xlane.f32.xlu0 %v736
        %v738 = vpop.xlane.xlu0 %737
        %vm739 = vcmp.eq.f32.partialorder %v736, %v738
        %v740 = vsel %vm739, %v735, inf
        %741 = vmin.xlane.f32.xlu0 %v740
        %v742 = vpop.xlane.xlu0 %741
        %v743 = vcvt.f32.s32 %v742
        %v744 = vcvt.f32.s32 %v738
        %v745 = vshll.u32 %v744, 16
        %v746 = vadd.s32 %v745, %v743
        %vm747 = vcmp.eq.s32.totalorder %v410, %v641
        %vm748 = vcmp.eq.s32.totalorder %v410, %v656
        %vm749 = vcmp.eq.s32.totalorder %v410, %v671
        %vm750 = vcmp.eq.s32.totalorder %v410, %v686
        %vm751 = vcmp.eq.s32.totalorder %v410, %v701
        %vm752 = vcmp.eq.s32.totalorder %v410, %v716
        %vm753 = vcmp.eq.s32.totalorder %v410, %v731
        %vm754 = vcmp.eq.s32.totalorder %v410, %v746
        %v755 = vsel %vm747, -3.4028235e+38, %v579
        %v756 = vsel %vm748, -3.4028235e+38, %v580
        %v757 = vsel %vm749, -3.4028235e+38, %v581
        %v758 = vsel %vm750, -3.4028235e+38, %v582
        %v759 = vsel %vm751, -3.4028235e+38, %v583
        %v760 = vsel %vm752, -3.4028235e+38, %v584
        %v761 = vsel %vm753, -3.4028235e+38, %v585
        %v762 = vsel %vm754, -3.4028235e+38, %v586
        %v763 = vsel %vm379, %v755, -inf
        %764 = vmax.xlane.f32.xlu0 %v763
        %v765 = vpop.xlane.xlu0 %764
        %v766 = vsel %vm379, %v756, -inf
        %767 = vmax.xlane.f32.xlu0 %v766
        %v768 = vpop.xlane.xlu0 %767
        %v769 = vsel %vm379, %v757, -inf
        %770 = vmax.xlane.f32.xlu0 %v769
        %v771 = vpop.xlane.xlu0 %770
        %v772 = vsel %vm379, %v758, -inf
        %773 = vmax.xlane.f32.xlu0 %v772
        %v774 = vpop.xlane.xlu0 %773
        %v775 = vsel %vm379, %v759, -inf
        %776 = vmax.xlane.f32.xlu0 %v775
        %v777 = vpop.xlane.xlu0 %776
        %v778 = vsel %vm379, %v760, -inf
        %779 = vmax.xlane.f32.xlu0 %v778
        %v780 = vpop.xlane.xlu0 %779
        %v781 = vsel %vm379, %v761, -inf
        %782 = vmax.xlane.f32.xlu0 %v781
        %v783 = vpop.xlane.xlu0 %782
        %v784 = vsel %vm379, %v762, -inf
        %785 = vmax.xlane.f32.xlu0 %v784
        %v786 = vpop.xlane.xlu0 %785
        %vm787 = vcmp.ge.f32.partialorder %v755, %v765
        %vm788 = vcmp.ge.f32.partialorder %v756, %v768
        %vm789 = vcmp.ge.f32.partialorder %v757, %v771
        %vm790 = vcmp.ge.f32.partialorder %v758, %v774
        %vm791 = vcmp.ge.f32.partialorder %v759, %v777
        %vm792 = vcmp.ge.f32.partialorder %v760, %v780
        %vm793 = vcmp.ge.f32.partialorder %v761, %v783
        %vm794 = vcmp.ge.f32.partialorder %v762, %v786
        %v795 = vsel %vm787, %v410, 64
        %v796 = vsel %vm788, %v410, 64
        %v797 = vsel %vm789, %v410, 64
        %v798 = vsel %vm790, %v410, 64
        %v799 = vsel %vm791, %v410, 64
        %v800 = vsel %vm792, %v410, 64
        %v801 = vsel %vm793, %v410, 64
        %v802 = vsel %vm794, %v410, 64
        %v803 = vsel %vm379, %v795, 2147483647
        %v804 = vand.u32 %v803, 65535
        %v805 = vshra.s32 %v803, 16
        %v806 = vcvt.s32.f32 %v804
        %v807 = vcvt.s32.f32 %v805
        %808 = vmin.xlane.f32.xlu0 %v807
        %v809 = vpop.xlane.xlu0 %808
        %vm810 = vcmp.eq.f32.partialorder %v807, %v809
        %v811 = vsel %vm810, %v806, inf
        %812 = vmin.xlane.f32.xlu0 %v811
        %v813 = vpop.xlane.xlu0 %812
        %v814 = vcvt.f32.s32 %v813
        %v815 = vcvt.f32.s32 %v809
        %v816 = vshll.u32 %v815, 16
        %v817 = vadd.s32 %v816, %v814
        %v818 = vsel %vm379, %v796, 2147483647
        %v819 = vand.u32 %v818, 65535
        %v820 = vshra.s32 %v818, 16
        %v821 = vcvt.s32.f32 %v819
        %v822 = vcvt.s32.f32 %v820
        %823 = vmin.xlane.f32.xlu0 %v822
        %v824 = vpop.xlane.xlu0 %823
        %vm825 = vcmp.eq.f32.partialorder %v822, %v824
        %v826 = vsel %vm825, %v821, inf
        %827 = vmin.xlane.f32.xlu0 %v826
        %v828 = vpop.xlane.xlu0 %827
        %v829 = vcvt.f32.s32 %v828
        %v830 = vcvt.f32.s32 %v824
        %v831 = vshll.u32 %v830, 16
        %v832 = vadd.s32 %v831, %v829
        %v833 = vsel %vm379, %v797, 2147483647
        %v834 = vand.u32 %v833, 65535
        %v835 = vshra.s32 %v833, 16
        %v836 = vcvt.s32.f32 %v834
        %v837 = vcvt.s32.f32 %v835
        %838 = vmin.xlane.f32.xlu0 %v837
        %v839 = vpop.xlane.xlu0 %838
        %vm840 = vcmp.eq.f32.partialorder %v837, %v839
        %v841 = vsel %vm840, %v836, inf
        %842 = vmin.xlane.f32.xlu0 %v841
        %v843 = vpop.xlane.xlu0 %842
        %v844 = vcvt.f32.s32 %v843
        %v845 = vcvt.f32.s32 %v839
        %v846 = vshll.u32 %v845, 16
        %v847 = vadd.s32 %v846, %v844
        %v848 = vsel %vm379, %v798, 2147483647
        %v849 = vand.u32 %v848, 65535
        %v850 = vshra.s32 %v848, 16
        %v851 = vcvt.s32.f32 %v849
        %v852 = vcvt.s32.f32 %v850
        %853 = vmin.xlane.f32.xlu0 %v852
        %v854 = vpop.xlane.xlu0 %853
        %vm855 = vcmp.eq.f32.partialorder %v852, %v854
        %v856 = vsel %vm855, %v851, inf
        %857 = vmin.xlane.f32.xlu0 %v856
        %v858 = vpop.xlane.xlu0 %857
        %v859 = vcvt.f32.s32 %v858
        %v860 = vcvt.f32.s32 %v854
        %v861 = vshll.u32 %v860, 16
        %v862 = vadd.s32 %v861, %v859
        %v863 = vsel %vm379, %v799, 2147483647
        %v864 = vand.u32 %v863, 65535
        %v865 = vshra.s32 %v863, 16
        %v866 = vcvt.s32.f32 %v864
        %v867 = vcvt.s32.f32 %v865
        %868 = vmin.xlane.f32.xlu0 %v867
        %v869 = vpop.xlane.xlu0 %868
        %vm870 = vcmp.eq.f32.partialorder %v867, %v869
        %v871 = vsel %vm870, %v866, inf
        %872 = vmin.xlane.f32.xlu0 %v871
        %v873 = vpop.xlane.xlu0 %872
        %v874 = vcvt.f32.s32 %v873
        %v875 = vcvt.f32.s32 %v869
        %v876 = vshll.u32 %v875, 16
        %v877 = vadd.s32 %v876, %v874
        %v878 = vsel %vm379, %v800, 2147483647
        %v879 = vand.u32 %v878, 65535
        %v880 = vshra.s32 %v878, 16
        %v881 = vcvt.s32.f32 %v879
        %v882 = vcvt.s32.f32 %v880
        %883 = vmin.xlane.f32.xlu0 %v882
        %v884 = vpop.xlane.xlu0 %883
        %vm885 = vcmp.eq.f32.partialorder %v882, %v884
        %v886 = vsel %vm885, %v881, inf
        %887 = vmin.xlane.f32.xlu0 %v886
        %v888 = vpop.xlane.xlu0 %887
        %v889 = vcvt.f32.s32 %v888
        %v890 = vcvt.f32.s32 %v884
        %v891 = vshll.u32 %v890, 16
        %v892 = vadd.s32 %v891, %v889
        %v893 = vsel %vm379, %v801, 2147483647
        %v894 = vand.u32 %v893, 65535
        %v895 = vshra.s32 %v893, 16
        %v896 = vcvt.s32.f32 %v894
        %v897 = vcvt.s32.f32 %v895
        %898 = vmin.xlane.f32.xlu0 %v897
        %v899 = vpop.xlane.xlu0 %898
        %vm900 = vcmp.eq.f32.partialorder %v897, %v899
        %v901 = vsel %vm900, %v896, inf
        %902 = vmin.xlane.f32.xlu0 %v901
        %v903 = vpop.xlane.xlu0 %902
        %v904 = vcvt.f32.s32 %v903
        %v905 = vcvt.f32.s32 %v899
        %v906 = vshll.u32 %v905, 16
        %v907 = vadd.s32 %v906, %v904
        %v908 = vsel %vm379, %v802, 2147483647
        %v909 = vand.u32 %v908, 65535
        %v910 = vshra.s32 %v908, 16
        %v911 = vcvt.s32.f32 %v909
        %v912 = vcvt.s32.f32 %v910
        %913 = vmin.xlane.f32.xlu0 %v912
        %v914 = vpop.xlane.xlu0 %913
        %vm915 = vcmp.eq.f32.partialorder %v912, %v914
        %v916 = vsel %vm915, %v911, inf
        %917 = vmin.xlane.f32.xlu0 %v916
        %v918 = vpop.xlane.xlu0 %917
        %v919 = vcvt.f32.s32 %v918
        %v920 = vcvt.f32.s32 %v914
        %v921 = vshll.u32 %v920, 16
        %v922 = vadd.s32 %v921, %v919
        %vm923 = vcmp.eq.s32.totalorder %v410, %v817
        %vm924 = vcmp.eq.s32.totalorder %v410, %v832
        %vm925 = vcmp.eq.s32.totalorder %v410, %v847
        %vm926 = vcmp.eq.s32.totalorder %v410, %v862
        %vm927 = vcmp.eq.s32.totalorder %v410, %v877
        %vm928 = vcmp.eq.s32.totalorder %v410, %v892
        %vm929 = vcmp.eq.s32.totalorder %v410, %v907
        %vm930 = vcmp.eq.s32.totalorder %v410, %v922
        %v931 = vsel %vm923, -3.4028235e+38, %v755
        %v932 = vsel %vm924, -3.4028235e+38, %v756
        %v933 = vsel %vm925, -3.4028235e+38, %v757
        %v934 = vsel %vm926, -3.4028235e+38, %v758
        %v935 = vsel %vm927, -3.4028235e+38, %v759
        %v936 = vsel %vm928, -3.4028235e+38, %v760
        %v937 = vsel %vm929, -3.4028235e+38, %v761
        %v938 = vsel %vm930, -3.4028235e+38, %v762
        %v939 = vsel %vm379, %v931, -inf
        %940 = vmax.xlane.f32.xlu0 %v939
        %v941 = vpop.xlane.xlu0 %940
        %v942 = vsel %vm379, %v932, -inf
        %943 = vmax.xlane.f32.xlu0 %v942
        %v944 = vpop.xlane.xlu0 %943
        %v945 = vsel %vm379, %v933, -inf
        %946 = vmax.xlane.f32.xlu0 %v945
        %v947 = vpop.xlane.xlu0 %946
        %v948 = vsel %vm379, %v934, -inf
        %949 = vmax.xlane.f32.xlu0 %v948
        %v950 = vpop.xlane.xlu0 %949
        %v951 = vsel %vm379, %v935, -inf
        %952 = vmax.xlane.f32.xlu0 %v951
        %v953 = vpop.xlane.xlu0 %952
        %v954 = vsel %vm379, %v936, -inf
        %955 = vmax.xlane.f32.xlu0 %v954
        %v956 = vpop.xlane.xlu0 %955
        %v957 = vsel %vm379, %v937, -inf
        %958 = vmax.xlane.f32.xlu0 %v957
        %v959 = vpop.xlane.xlu0 %958
        %v960 = vsel %vm379, %v938, -inf
        %961 = vmax.xlane.f32.xlu0 %v960
        %v962 = vpop.xlane.xlu0 %961
        %vm963 = vcmp.ge.f32.partialorder %v931, %v941
        %vm964 = vcmp.ge.f32.partialorder %v932, %v944
        %vm965 = vcmp.ge.f32.partialorder %v933, %v947
        %vm966 = vcmp.ge.f32.partialorder %v934, %v950
        %vm967 = vcmp.ge.f32.partialorder %v935, %v953
        %vm968 = vcmp.ge.f32.partialorder %v936, %v956
        %vm969 = vcmp.ge.f32.partialorder %v937, %v959
        %vm970 = vcmp.ge.f32.partialorder %v938, %v962
        %v971 = vsel %vm963, %v410, 64
        %v972 = vsel %vm964, %v410, 64
        %v973 = vsel %vm965, %v410, 64
        %v974 = vsel %vm966, %v410, 64
        %v975 = vsel %vm967, %v410, 64
        %v976 = vsel %vm968, %v410, 64
        %v977 = vsel %vm969, %v410, 64
        %v978 = vsel %vm970, %v410, 64
        %v979 = vsel %vm379, %v971, 2147483647
        %v980 = vand.u32 %v979, 65535
        %v981 = vshra.s32 %v979, 16
        %v982 = vcvt.s32.f32 %v980
        %v983 = vcvt.s32.f32 %v981
        %984 = vmin.xlane.f32.xlu0 %v983
        %v985 = vpop.xlane.xlu0 %984
        %vm986 = vcmp.eq.f32.partialorder %v983, %v985
        %v987 = vsel %vm986, %v982, inf
        %988 = vmin.xlane.f32.xlu0 %v987
        %v989 = vpop.xlane.xlu0 %988
        %v990 = vcvt.f32.s32 %v989
        %v991 = vcvt.f32.s32 %v985
        %v992 = vshll.u32 %v991, 16
        %v993 = vadd.s32 %v992, %v990
        %v994 = vsel %vm379, %v972, 2147483647
        %v995 = vand.u32 %v994, 65535
        %v996 = vshra.s32 %v994, 16
        %v997 = vcvt.s32.f32 %v995
        %v998 = vcvt.s32.f32 %v996
        %999 = vmin.xlane.f32.xlu0 %v998
        %v1000 = vpop.xlane.xlu0 %999
        %vm1001 = vcmp.eq.f32.partialorder %v998, %v1000
        %v1002 = vsel %vm1001, %v997, inf
        %1003 = vmin.xlane.f32.xlu0 %v1002
        %v1004 = vpop.xlane.xlu0 %1003
        %v1005 = vcvt.f32.s32 %v1004
        %v1006 = vcvt.f32.s32 %v1000
        %v1007 = vshll.u32 %v1006, 16
        %v1008 = vadd.s32 %v1007, %v1005
        %v1009 = vsel %vm379, %v973, 2147483647
        %v1010 = vand.u32 %v1009, 65535
        %v1011 = vshra.s32 %v1009, 16
        %v1012 = vcvt.s32.f32 %v1010
        %v1013 = vcvt.s32.f32 %v1011
        %1014 = vmin.xlane.f32.xlu0 %v1013
        %v1015 = vpop.xlane.xlu0 %1014
        %vm1016 = vcmp.eq.f32.partialorder %v1013, %v1015
        %v1017 = vsel %vm1016, %v1012, inf
        %1018 = vmin.xlane.f32.xlu0 %v1017
        %v1019 = vpop.xlane.xlu0 %1018
        %v1020 = vcvt.f32.s32 %v1019
        %v1021 = vcvt.f32.s32 %v1015
        %v1022 = vshll.u32 %v1021, 16
        %v1023 = vadd.s32 %v1022, %v1020
        %v1024 = vsel %vm379, %v974, 2147483647
        %v1025 = vand.u32 %v1024, 65535
        %v1026 = vshra.s32 %v1024, 16
        %v1027 = vcvt.s32.f32 %v1025
        %v1028 = vcvt.s32.f32 %v1026
        %1029 = vmin.xlane.f32.xlu0 %v1028
        %v1030 = vpop.xlane.xlu0 %1029
        %vm1031 = vcmp.eq.f32.partialorder %v1028, %v1030
        %v1032 = vsel %vm1031, %v1027, inf
        %1033 = vmin.xlane.f32.xlu0 %v1032
        %v1034 = vpop.xlane.xlu0 %1033
        %v1035 = vcvt.f32.s32 %v1034
        %v1036 = vcvt.f32.s32 %v1030
        %v1037 = vshll.u32 %v1036, 16
        %v1038 = vadd.s32 %v1037, %v1035
        %v1039 = vsel %vm379, %v975, 2147483647
        %v1040 = vand.u32 %v1039, 65535
        %v1041 = vshra.s32 %v1039, 16
        %v1042 = vcvt.s32.f32 %v1040
        %v1043 = vcvt.s32.f32 %v1041
        %1044 = vmin.xlane.f32.xlu0 %v1043
        %v1045 = vpop.xlane.xlu0 %1044
        %vm1046 = vcmp.eq.f32.partialorder %v1043, %v1045
        %v1047 = vsel %vm1046, %v1042, inf
        %1048 = vmin.xlane.f32.xlu0 %v1047
        %v1049 = vpop.xlane.xlu0 %1048
        %v1050 = vcvt.f32.s32 %v1049
        %v1051 = vcvt.f32.s32 %v1045
        %v1052 = vshll.u32 %v1051, 16
        %v1053 = vadd.s32 %v1052, %v1050
        %v1054 = vsel %vm379, %v976, 2147483647
        %v1055 = vand.u32 %v1054, 65535
        %v1056 = vshra.s32 %v1054, 16
        %v1057 = vcvt.s32.f32 %v1055
        %v1058 = vcvt.s32.f32 %v1056
        %1059 = vmin.xlane.f32.xlu0 %v1058
        %v1060 = vpop.xlane.xlu0 %1059
        %vm1061 = vcmp.eq.f32.partialorder %v1058, %v1060
        %v1062 = vsel %vm1061, %v1057, inf
        %1063 = vmin.xlane.f32.xlu0 %v1062
        %v1064 = vpop.xlane.xlu0 %1063
        %v1065 = vcvt.f32.s32 %v1064
        %v1066 = vcvt.f32.s32 %v1060
        %v1067 = vshll.u32 %v1066, 16
        %v1068 = vadd.s32 %v1067, %v1065
        %v1069 = vsel %vm379, %v977, 2147483647
        %v1070 = vand.u32 %v1069, 65535
        %v1071 = vshra.s32 %v1069, 16
        %v1072 = vcvt.s32.f32 %v1070
        %v1073 = vcvt.s32.f32 %v1071
        %1074 = vmin.xlane.f32.xlu0 %v1073
        %v1075 = vpop.xlane.xlu0 %1074
        %vm1076 = vcmp.eq.f32.partialorder %v1073, %v1075
        %v1077 = vsel %vm1076, %v1072, inf
        %1078 = vmin.xlane.f32.xlu0 %v1077
        %v1079 = vpop.xlane.xlu0 %1078
        %v1080 = vcvt.f32.s32 %v1079
        %v1081 = vcvt.f32.s32 %v1075
        %v1082 = vshll.u32 %v1081, 16
        %v1083 = vadd.s32 %v1082, %v1080
        %v1084 = vsel %vm379, %v978, 2147483647
        %v1085 = vand.u32 %v1084, 65535
        %v1086 = vshra.s32 %v1084, 16
        %v1087 = vcvt.s32.f32 %v1085
        %v1088 = vcvt.s32.f32 %v1086
        %1089 = vmin.xlane.f32.xlu0 %v1088
        %v1090 = vpop.xlane.xlu0 %1089
        %vm1091 = vcmp.eq.f32.partialorder %v1088, %v1090
        %v1092 = vsel %vm1091, %v1087, inf
        %1093 = vmin.xlane.f32.xlu0 %v1092
        %v1094 = vpop.xlane.xlu0 %1093
        %v1095 = vcvt.f32.s32 %v1094
        %v1096 = vcvt.f32.s32 %v1090
        %v1097 = vshll.u32 %v1096, 16
        %v1098 = vadd.s32 %v1097, %v1095
        %vm1099 = vcmp.eq.s32.totalorder %v410, %v993
        %vm1100 = vcmp.eq.s32.totalorder %v410, %v1008
        %vm1101 = vcmp.eq.s32.totalorder %v410, %v1023
        %vm1102 = vcmp.eq.s32.totalorder %v410, %v1038
        %vm1103 = vcmp.eq.s32.totalorder %v410, %v1053
        %vm1104 = vcmp.eq.s32.totalorder %v410, %v1068
        %vm1105 = vcmp.eq.s32.totalorder %v410, %v1083
        %vm1106 = vcmp.eq.s32.totalorder %v410, %v1098
        %v1107 = vsel %vm1099, -3.4028235e+38, %v931
        %v1108 = vsel %vm1100, -3.4028235e+38, %v932
        %v1109 = vsel %vm1101, -3.4028235e+38, %v933
        %v1110 = vsel %vm1102, -3.4028235e+38, %v934
        %v1111 = vsel %vm1103, -3.4028235e+38, %v935
        %v1112 = vsel %vm1104, -3.4028235e+38, %v936
        %v1113 = vsel %vm1105, -3.4028235e+38, %v937
        %v1114 = vsel %vm1106, -3.4028235e+38, %v938
        %v1115 = vsel %vm379, %v1107, -inf
        %1116 = vmax.xlane.f32.xlu0 %v1115
        %v1117 = vpop.xlane.xlu0 %1116
        %v1118 = vsel %vm379, %v1108, -inf
        %1119 = vmax.xlane.f32.xlu0 %v1118
        %v1120 = vpop.xlane.xlu0 %1119
        %v1121 = vsel %vm379, %v1109, -inf
        %1122 = vmax.xlane.f32.xlu0 %v1121
        %v1123 = vpop.xlane.xlu0 %1122
        %v1124 = vsel %vm379, %v1110, -inf
        %1125 = vmax.xlane.f32.xlu0 %v1124
        %v1126 = vpop.xlane.xlu0 %1125
        %v1127 = vsel %vm379, %v1111, -inf
        %1128 = vmax.xlane.f32.xlu0 %v1127
        %v1129 = vpop.xlane.xlu0 %1128
        %v1130 = vsel %vm379, %v1112, -inf
        %1131 = vmax.xlane.f32.xlu0 %v1130
        %v1132 = vpop.xlane.xlu0 %1131
        %v1133 = vsel %vm379, %v1113, -inf
        %1134 = vmax.xlane.f32.xlu0 %v1133
        %v1135 = vpop.xlane.xlu0 %1134
        %v1136 = vsel %vm379, %v1114, -inf
        %1137 = vmax.xlane.f32.xlu0 %v1136
        %v1138 = vpop.xlane.xlu0 %1137
        %vm1139 = vcmp.ge.f32.partialorder %v1107, %v1117
        %vm1140 = vcmp.ge.f32.partialorder %v1108, %v1120
        %vm1141 = vcmp.ge.f32.partialorder %v1109, %v1123
        %vm1142 = vcmp.ge.f32.partialorder %v1110, %v1126
        %vm1143 = vcmp.ge.f32.partialorder %v1111, %v1129
        %vm1144 = vcmp.ge.f32.partialorder %v1112, %v1132
        %vm1145 = vcmp.ge.f32.partialorder %v1113, %v1135
        %vm1146 = vcmp.ge.f32.partialorder %v1114, %v1138
        %v1147 = vsel %vm1139, %v410, 64
        %v1148 = vsel %vm1140, %v410, 64
        %v1149 = vsel %vm1141, %v410, 64
        %v1150 = vsel %vm1142, %v410, 64
        %v1151 = vsel %vm1143, %v410, 64
        %v1152 = vsel %vm1144, %v410, 64
        %v1153 = vsel %vm1145, %v410, 64
        %v1154 = vsel %vm1146, %v410, 64
        %v1155 = vsel %vm379, %v1147, 2147483647
        %v1156 = vand.u32 %v1155, 65535
        %v1157 = vshra.s32 %v1155, 16
        %v1158 = vcvt.s32.f32 %v1156
        %v1159 = vcvt.s32.f32 %v1157
        %1160 = vmin.xlane.f32.xlu0 %v1159
        %v1161 = vpop.xlane.xlu0 %1160
        %vm1162 = vcmp.eq.f32.partialorder %v1159, %v1161
        %v1163 = vsel %vm1162, %v1158, inf
        %1164 = vmin.xlane.f32.xlu0 %v1163
        %v1165 = vpop.xlane.xlu0 %1164
        %v1166 = vcvt.f32.s32 %v1165
        %v1167 = vcvt.f32.s32 %v1161
        %v1168 = vshll.u32 %v1167, 16
        %v1169 = vadd.s32 %v1168, %v1166
        %v1170 = vsel %vm379, %v1148, 2147483647
        %v1171 = vand.u32 %v1170, 65535
        %v1172 = vshra.s32 %v1170, 16
        %v1173 = vcvt.s32.f32 %v1171
        %v1174 = vcvt.s32.f32 %v1172
        %1175 = vmin.xlane.f32.xlu0 %v1174
        %v1176 = vpop.xlane.xlu0 %1175
        %vm1177 = vcmp.eq.f32.partialorder %v1174, %v1176
        %v1178 = vsel %vm1177, %v1173, inf
        %1179 = vmin.xlane.f32.xlu0 %v1178
        %v1180 = vpop.xlane.xlu0 %1179
        %v1181 = vcvt.f32.s32 %v1180
        %v1182 = vcvt.f32.s32 %v1176
        %v1183 = vshll.u32 %v1182, 16
        %v1184 = vadd.s32 %v1183, %v1181
        %v1185 = vsel %vm379, %v1149, 2147483647
        %v1186 = vand.u32 %v1185, 65535
        %v1187 = vshra.s32 %v1185, 16
        %v1188 = vcvt.s32.f32 %v1186
        %v1189 = vcvt.s32.f32 %v1187
        %1190 = vmin.xlane.f32.xlu0 %v1189
        %v1191 = vpop.xlane.xlu0 %1190
        %vm1192 = vcmp.eq.f32.partialorder %v1189, %v1191
        %v1193 = vsel %vm1192, %v1188, inf
        %1194 = vmin.xlane.f32.xlu0 %v1193
        %v1195 = vpop.xlane.xlu0 %1194
        %v1196 = vcvt.f32.s32 %v1195
        %v1197 = vcvt.f32.s32 %v1191
        %v1198 = vshll.u32 %v1197, 16
        %v1199 = vadd.s32 %v1198, %v1196
        %v1200 = vsel %vm379, %v1150, 2147483647
        %v1201 = vand.u32 %v1200, 65535
        %v1202 = vshra.s32 %v1200, 16
        %v1203 = vcvt.s32.f32 %v1201
        %v1204 = vcvt.s32.f32 %v1202
        %1205 = vmin.xlane.f32.xlu0 %v1204
        %v1206 = vpop.xlane.xlu0 %1205
        %vm1207 = vcmp.eq.f32.partialorder %v1204, %v1206
        %v1208 = vsel %vm1207, %v1203, inf
        %1209 = vmin.xlane.f32.xlu0 %v1208
        %v1210 = vpop.xlane.xlu0 %1209
        %v1211 = vcvt.f32.s32 %v1210
        %v1212 = vcvt.f32.s32 %v1206
        %v1213 = vshll.u32 %v1212, 16
        %v1214 = vadd.s32 %v1213, %v1211
        %v1215 = vsel %vm379, %v1151, 2147483647
        %v1216 = vand.u32 %v1215, 65535
        %v1217 = vshra.s32 %v1215, 16
        %v1218 = vcvt.s32.f32 %v1216
        %v1219 = vcvt.s32.f32 %v1217
        %1220 = vmin.xlane.f32.xlu0 %v1219
        %v1221 = vpop.xlane.xlu0 %1220
        %vm1222 = vcmp.eq.f32.partialorder %v1219, %v1221
        %v1223 = vsel %vm1222, %v1218, inf
        %1224 = vmin.xlane.f32.xlu0 %v1223
        %v1225 = vpop.xlane.xlu0 %1224
        %v1226 = vcvt.f32.s32 %v1225
        %v1227 = vcvt.f32.s32 %v1221
        %v1228 = vshll.u32 %v1227, 16
        %v1229 = vadd.s32 %v1228, %v1226
        %v1230 = vsel %vm379, %v1152, 2147483647
        %v1231 = vand.u32 %v1230, 65535
        %v1232 = vshra.s32 %v1230, 16
        %v1233 = vcvt.s32.f32 %v1231
        %v1234 = vcvt.s32.f32 %v1232
        %1235 = vmin.xlane.f32.xlu0 %v1234
        %v1236 = vpop.xlane.xlu0 %1235
        %vm1237 = vcmp.eq.f32.partialorder %v1234, %v1236
        %v1238 = vsel %vm1237, %v1233, inf
        %1239 = vmin.xlane.f32.xlu0 %v1238
        %v1240 = vpop.xlane.xlu0 %1239
        %v1241 = vcvt.f32.s32 %v1240
        %v1242 = vcvt.f32.s32 %v1236
        %v1243 = vshll.u32 %v1242, 16
        %v1244 = vadd.s32 %v1243, %v1241
        %v1245 = vsel %vm379, %v1153, 2147483647
        %v1246 = vand.u32 %v1245, 65535
        %v1247 = vshra.s32 %v1245, 16
        %v1248 = vcvt.s32.f32 %v1246
        %v1249 = vcvt.s32.f32 %v1247
        %1250 = vmin.xlane.f32.xlu0 %v1249
        %v1251 = vpop.xlane.xlu0 %1250
        %vm1252 = vcmp.eq.f32.partialorder %v1249, %v1251
        %v1253 = vsel %vm1252, %v1248, inf
        %1254 = vmin.xlane.f32.xlu0 %v1253
        %v1255 = vpop.xlane.xlu0 %1254
        %v1256 = vcvt.f32.s32 %v1255
        %v1257 = vcvt.f32.s32 %v1251
        %v1258 = vshll.u32 %v1257, 16
        %v1259 = vadd.s32 %v1258, %v1256
        %v1260 = vsel %vm379, %v1154, 2147483647
        %v1261 = vand.u32 %v1260, 65535
        %v1262 = vshra.s32 %v1260, 16
        %v1263 = vcvt.s32.f32 %v1261
        %v1264 = vcvt.s32.f32 %v1262
        %1265 = vmin.xlane.f32.xlu0 %v1264
        %v1266 = vpop.xlane.xlu0 %1265
        %vm1267 = vcmp.eq.f32.partialorder %v1264, %v1266
        %v1268 = vsel %vm1267, %v1263, inf
        %1269 = vmin.xlane.f32.xlu0 %v1268
        %v1270 = vpop.xlane.xlu0 %1269
        %v1271 = vcvt.f32.s32 %v1270
        %v1272 = vcvt.f32.s32 %v1266
        %v1273 = vshll.u32 %v1272, 16
        %v1274 = vadd.s32 %v1273, %v1271
        %vm1275 = vcmp.eq.s32.totalorder %v410, %v1169
        %vm1276 = vcmp.eq.s32.totalorder %v410, %v1184
        %vm1277 = vcmp.eq.s32.totalorder %v410, %v1199
        %vm1278 = vcmp.eq.s32.totalorder %v410, %v1214
        %vm1279 = vcmp.eq.s32.totalorder %v410, %v1229
        %vm1280 = vcmp.eq.s32.totalorder %v410, %v1244
        %vm1281 = vcmp.eq.s32.totalorder %v410, %v1259
        %vm1282 = vcmp.eq.s32.totalorder %v410, %v1274
        %v1283 = vsel %vm1275, -3.4028235e+38, %v1107
        %v1284 = vsel %vm1276, -3.4028235e+38, %v1108
        %v1285 = vsel %vm1277, -3.4028235e+38, %v1109
        %v1286 = vsel %vm1278, -3.4028235e+38, %v1110
        %v1287 = vsel %vm1279, -3.4028235e+38, %v1111
        %v1288 = vsel %vm1280, -3.4028235e+38, %v1112
        %v1289 = vsel %vm1281, -3.4028235e+38, %v1113
        %v1290 = vsel %vm1282, -3.4028235e+38, %v1114
        %v1291 = vsel %vm379, %v1283, -inf
        %1292 = vmax.xlane.f32.xlu0 %v1291
        %v1293 = vpop.xlane.xlu0 %1292
        %v1294 = vsel %vm379, %v1284, -inf
        %1295 = vmax.xlane.f32.xlu0 %v1294
        %v1296 = vpop.xlane.xlu0 %1295
        %v1297 = vsel %vm379, %v1285, -inf
        %1298 = vmax.xlane.f32.xlu0 %v1297
        %v1299 = vpop.xlane.xlu0 %1298
        %v1300 = vsel %vm379, %v1286, -inf
        %1301 = vmax.xlane.f32.xlu0 %v1300
        %v1302 = vpop.xlane.xlu0 %1301
        %v1303 = vsel %vm379, %v1287, -inf
        %1304 = vmax.xlane.f32.xlu0 %v1303
        %v1305 = vpop.xlane.xlu0 %1304
        %v1306 = vsel %vm379, %v1288, -inf
        %1307 = vmax.xlane.f32.xlu0 %v1306
        %v1308 = vpop.xlane.xlu0 %1307
        %v1309 = vsel %vm379, %v1289, -inf
        %1310 = vmax.xlane.f32.xlu0 %v1309
        %v1311 = vpop.xlane.xlu0 %1310
        %v1312 = vsel %vm379, %v1290, -inf
        %1313 = vmax.xlane.f32.xlu0 %v1312
        %v1314 = vpop.xlane.xlu0 %1313
        %vm1315 = vcmp.ge.f32.partialorder %v1283, %v1293
        %vm1316 = vcmp.ge.f32.partialorder %v1284, %v1296
        %vm1317 = vcmp.ge.f32.partialorder %v1285, %v1299
        %vm1318 = vcmp.ge.f32.partialorder %v1286, %v1302
        %vm1319 = vcmp.ge.f32.partialorder %v1287, %v1305
        %vm1320 = vcmp.ge.f32.partialorder %v1288, %v1308
        %vm1321 = vcmp.ge.f32.partialorder %v1289, %v1311
        %vm1322 = vcmp.ge.f32.partialorder %v1290, %v1314
        %v1323 = vsel %vm1315, %v410, 64
        %v1324 = vsel %vm1316, %v410, 64
        %v1325 = vsel %vm1317, %v410, 64
        %v1326 = vsel %vm1318, %v410, 64
        %v1327 = vsel %vm1319, %v410, 64
        %v1328 = vsel %vm1320, %v410, 64
        %v1329 = vsel %vm1321, %v410, 64
        %v1330 = vsel %vm1322, %v410, 64
        %v1331 = vsel %vm379, %v1323, 2147483647
        %v1332 = vand.u32 %v1331, 65535
        %v1333 = vshra.s32 %v1331, 16
        %v1334 = vcvt.s32.f32 %v1332
        %v1335 = vcvt.s32.f32 %v1333
        %1336 = vmin.xlane.f32.xlu0 %v1335
        %v1337 = vpop.xlane.xlu0 %1336
        %vm1338 = vcmp.eq.f32.partialorder %v1335, %v1337
        %v1339 = vsel %vm1338, %v1334, inf
        %1340 = vmin.xlane.f32.xlu0 %v1339
        %v1341 = vpop.xlane.xlu0 %1340
        %v1342 = vcvt.f32.s32 %v1341
        %v1343 = vcvt.f32.s32 %v1337
        %v1344 = vshll.u32 %v1343, 16
        %v1345 = vadd.s32 %v1344, %v1342
        %v1346 = vsel %vm379, %v1324, 2147483647
        %v1347 = vand.u32 %v1346, 65535
        %v1348 = vshra.s32 %v1346, 16
        %v1349 = vcvt.s32.f32 %v1347
        %v1350 = vcvt.s32.f32 %v1348
        %1351 = vmin.xlane.f32.xlu0 %v1350
        %v1352 = vpop.xlane.xlu0 %1351
        %vm1353 = vcmp.eq.f32.partialorder %v1350, %v1352
        %v1354 = vsel %vm1353, %v1349, inf
        %1355 = vmin.xlane.f32.xlu0 %v1354
        %v1356 = vpop.xlane.xlu0 %1355
        %v1357 = vcvt.f32.s32 %v1356
        %v1358 = vcvt.f32.s32 %v1352
        %v1359 = vshll.u32 %v1358, 16
        %v1360 = vadd.s32 %v1359, %v1357
        %v1361 = vsel %vm379, %v1325, 2147483647
        %v1362 = vand.u32 %v1361, 65535
        %v1363 = vshra.s32 %v1361, 16
        %v1364 = vcvt.s32.f32 %v1362
        %v1365 = vcvt.s32.f32 %v1363
        %1366 = vmin.xlane.f32.xlu0 %v1365
        %v1367 = vpop.xlane.xlu0 %1366
        %vm1368 = vcmp.eq.f32.partialorder %v1365, %v1367
        %v1369 = vsel %vm1368, %v1364, inf
        %1370 = vmin.xlane.f32.xlu0 %v1369
        %v1371 = vpop.xlane.xlu0 %1370
        %v1372 = vcvt.f32.s32 %v1371
        %v1373 = vcvt.f32.s32 %v1367
        %v1374 = vshll.u32 %v1373, 16
        %v1375 = vadd.s32 %v1374, %v1372
        %v1376 = vsel %vm379, %v1326, 2147483647
        %v1377 = vand.u32 %v1376, 65535
        %v1378 = vshra.s32 %v1376, 16
        %v1379 = vcvt.s32.f32 %v1377
        %v1380 = vcvt.s32.f32 %v1378
        %1381 = vmin.xlane.f32.xlu0 %v1380
        %v1382 = vpop.xlane.xlu0 %1381
        %vm1383 = vcmp.eq.f32.partialorder %v1380, %v1382
        %v1384 = vsel %vm1383, %v1379, inf
        %1385 = vmin.xlane.f32.xlu0 %v1384
        %v1386 = vpop.xlane.xlu0 %1385
        %v1387 = vcvt.f32.s32 %v1386
        %v1388 = vcvt.f32.s32 %v1382
        %v1389 = vshll.u32 %v1388, 16
        %v1390 = vadd.s32 %v1389, %v1387
        %v1391 = vsel %vm379, %v1327, 2147483647
        %v1392 = vand.u32 %v1391, 65535
        %v1393 = vshra.s32 %v1391, 16
        %v1394 = vcvt.s32.f32 %v1392
        %v1395 = vcvt.s32.f32 %v1393
        %1396 = vmin.xlane.f32.xlu0 %v1395
        %v1397 = vpop.xlane.xlu0 %1396
        %vm1398 = vcmp.eq.f32.partialorder %v1395, %v1397
        %v1399 = vsel %vm1398, %v1394, inf
        %1400 = vmin.xlane.f32.xlu0 %v1399
        %v1401 = vpop.xlane.xlu0 %1400
        %v1402 = vcvt.f32.s32 %v1401
        %v1403 = vcvt.f32.s32 %v1397
        %v1404 = vshll.u32 %v1403, 16
        %v1405 = vadd.s32 %v1404, %v1402
        %v1406 = vsel %vm379, %v1328, 2147483647
        %v1407 = vand.u32 %v1406, 65535
        %v1408 = vshra.s32 %v1406, 16
        %v1409 = vcvt.s32.f32 %v1407
        %v1410 = vcvt.s32.f32 %v1408
        %1411 = vmin.xlane.f32.xlu0 %v1410
        %v1412 = vpop.xlane.xlu0 %1411
        %vm1413 = vcmp.eq.f32.partialorder %v1410, %v1412
        %v1414 = vsel %vm1413, %v1409, inf
        %1415 = vmin.xlane.f32.xlu0 %v1414
        %v1416 = vpop.xlane.xlu0 %1415
        %v1417 = vcvt.f32.s32 %v1416
        %v1418 = vcvt.f32.s32 %v1412
        %v1419 = vshll.u32 %v1418, 16
        %v1420 = vadd.s32 %v1419, %v1417
        %v1421 = vsel %vm379, %v1329, 2147483647
        %v1422 = vand.u32 %v1421, 65535
        %v1423 = vshra.s32 %v1421, 16
        %v1424 = vcvt.s32.f32 %v1422
        %v1425 = vcvt.s32.f32 %v1423
        %1426 = vmin.xlane.f32.xlu0 %v1425
        %v1427 = vpop.xlane.xlu0 %1426
        %vm1428 = vcmp.eq.f32.partialorder %v1425, %v1427
        %v1429 = vsel %vm1428, %v1424, inf
        %1430 = vmin.xlane.f32.xlu0 %v1429
        %v1431 = vpop.xlane.xlu0 %1430
        %v1432 = vcvt.f32.s32 %v1431
        %v1433 = vcvt.f32.s32 %v1427
        %v1434 = vshll.u32 %v1433, 16
        %v1435 = vadd.s32 %v1434, %v1432
        %v1436 = vsel %vm379, %v1330, 2147483647
        %v1437 = vand.u32 %v1436, 65535
        %v1438 = vshra.s32 %v1436, 16
        %v1439 = vcvt.s32.f32 %v1437
        %v1440 = vcvt.s32.f32 %v1438
        %1441 = vmin.xlane.f32.xlu0 %v1440
        %v1442 = vpop.xlane.xlu0 %1441
        %vm1443 = vcmp.eq.f32.partialorder %v1440, %v1442
        %v1444 = vsel %vm1443, %v1439, inf
        %1445 = vmin.xlane.f32.xlu0 %v1444
        %v1446 = vpop.xlane.xlu0 %1445
        %v1447 = vcvt.f32.s32 %v1446
        %v1448 = vcvt.f32.s32 %v1442
        %v1449 = vshll.u32 %v1448, 16
        %v1450 = vadd.s32 %v1449, %v1447
        %vm1451 = vcmp.eq.s32.totalorder %v410, %v1345
        %vm1452 = vcmp.eq.s32.totalorder %v410, %v1360
        %vm1453 = vcmp.eq.s32.totalorder %v410, %v1375
        %vm1454 = vcmp.eq.s32.totalorder %v410, %v1390
        %vm1455 = vcmp.eq.s32.totalorder %v410, %v1405
        %vm1456 = vcmp.eq.s32.totalorder %v410, %v1420
        %vm1457 = vcmp.eq.s32.totalorder %v410, %v1435
        %vm1458 = vcmp.eq.s32.totalorder %v410, %v1450
        %v1459 = vsel %vm1451, -3.4028235e+38, %v1283
        %v1460 = vsel %vm1452, -3.4028235e+38, %v1284
        %v1461 = vsel %vm1453, -3.4028235e+38, %v1285
        %v1462 = vsel %vm1454, -3.4028235e+38, %v1286
        %v1463 = vsel %vm1455, -3.4028235e+38, %v1287
        %v1464 = vsel %vm1456, -3.4028235e+38, %v1288
        %v1465 = vsel %vm1457, -3.4028235e+38, %v1289
        %v1466 = vsel %vm1458, -3.4028235e+38, %v1290
        %v1467 = vsel %vm379, %v1459, -inf
        %1468 = vmax.xlane.f32.xlu0 %v1467
        %v1469 = vpop.xlane.xlu0 %1468
        %v1470 = vsel %vm379, %v1460, -inf
        %1471 = vmax.xlane.f32.xlu0 %v1470
        %v1472 = vpop.xlane.xlu0 %1471
        %v1473 = vsel %vm379, %v1461, -inf
        %1474 = vmax.xlane.f32.xlu0 %v1473
        %v1475 = vpop.xlane.xlu0 %1474
        %v1476 = vsel %vm379, %v1462, -inf
        %1477 = vmax.xlane.f32.xlu0 %v1476
        %v1478 = vpop.xlane.xlu0 %1477
        %v1479 = vsel %vm379, %v1463, -inf
        %1480 = vmax.xlane.f32.xlu0 %v1479
        %v1481 = vpop.xlane.xlu0 %1480
        %v1482 = vsel %vm379, %v1464, -inf
        %1483 = vmax.xlane.f32.xlu0 %v1482
        %v1484 = vpop.xlane.xlu0 %1483
        %v1485 = vsel %vm379, %v1465, -inf
        %1486 = vmax.xlane.f32.xlu0 %v1485
        %v1487 = vpop.xlane.xlu0 %1486
        %v1488 = vsel %vm379, %v1466, -inf
        %1489 = vmax.xlane.f32.xlu0 %v1488
        %v1490 = vpop.xlane.xlu0 %1489
        %vm1491 = vcmp.ge.f32.partialorder %v1459, %v1469
        %vm1492 = vcmp.ge.f32.partialorder %v1460, %v1472
        %vm1493 = vcmp.ge.f32.partialorder %v1461, %v1475
        %vm1494 = vcmp.ge.f32.partialorder %v1462, %v1478
        %vm1495 = vcmp.ge.f32.partialorder %v1463, %v1481
        %vm1496 = vcmp.ge.f32.partialorder %v1464, %v1484
        %vm1497 = vcmp.ge.f32.partialorder %v1465, %v1487
        %vm1498 = vcmp.ge.f32.partialorder %v1466, %v1490
        %v1499 = vsel %vm1491, %v410, 64
        %v1500 = vsel %vm1492, %v410, 64
        %v1501 = vsel %vm1493, %v410, 64
        %v1502 = vsel %vm1494, %v410, 64
        %v1503 = vsel %vm1495, %v410, 64
        %v1504 = vsel %vm1496, %v410, 64
        %v1505 = vsel %vm1497, %v410, 64
        %v1506 = vsel %vm1498, %v410, 64
        %v1507 = vsel %vm379, %v1499, 2147483647
        %v1508 = vand.u32 %v1507, 65535
        %v1509 = vshra.s32 %v1507, 16
        %v1510 = vcvt.s32.f32 %v1508
        %v1511 = vcvt.s32.f32 %v1509
        %1512 = vmin.xlane.f32.xlu0 %v1511
        %v1513 = vpop.xlane.xlu0 %1512
        %vm1514 = vcmp.eq.f32.partialorder %v1511, %v1513
        %v1515 = vsel %vm1514, %v1510, inf
        %1516 = vmin.xlane.f32.xlu0 %v1515
        %v1517 = vpop.xlane.xlu0 %1516
        %v1518 = vcvt.f32.s32 %v1517
        %v1519 = vcvt.f32.s32 %v1513
        %v1520 = vshll.u32 %v1519, 16
        %v1521 = vadd.s32 %v1520, %v1518
        %v1522 = vsel %vm379, %v1500, 2147483647
        %v1523 = vand.u32 %v1522, 65535
        %v1524 = vshra.s32 %v1522, 16
        %v1525 = vcvt.s32.f32 %v1523
        %v1526 = vcvt.s32.f32 %v1524
        %1527 = vmin.xlane.f32.xlu0 %v1526
        %v1528 = vpop.xlane.xlu0 %1527
        %vm1529 = vcmp.eq.f32.partialorder %v1526, %v1528
        %v1530 = vsel %vm1529, %v1525, inf
        %1531 = vmin.xlane.f32.xlu0 %v1530
        %v1532 = vpop.xlane.xlu0 %1531
        %v1533 = vcvt.f32.s32 %v1532
        %v1534 = vcvt.f32.s32 %v1528
        %v1535 = vshll.u32 %v1534, 16
        %v1536 = vadd.s32 %v1535, %v1533
        %v1537 = vsel %vm379, %v1501, 2147483647
        %v1538 = vand.u32 %v1537, 65535
        %v1539 = vshra.s32 %v1537, 16
        %v1540 = vcvt.s32.f32 %v1538
        %v1541 = vcvt.s32.f32 %v1539
        %1542 = vmin.xlane.f32.xlu0 %v1541
        %v1543 = vpop.xlane.xlu0 %1542
        %vm1544 = vcmp.eq.f32.partialorder %v1541, %v1543
        %v1545 = vsel %vm1544, %v1540, inf
        %1546 = vmin.xlane.f32.xlu0 %v1545
        %v1547 = vpop.xlane.xlu0 %1546
        %v1548 = vcvt.f32.s32 %v1547
        %v1549 = vcvt.f32.s32 %v1543
        %v1550 = vshll.u32 %v1549, 16
        %v1551 = vadd.s32 %v1550, %v1548
        %v1552 = vsel %vm379, %v1502, 2147483647
        %v1553 = vand.u32 %v1552, 65535
        %v1554 = vshra.s32 %v1552, 16
        %v1555 = vcvt.s32.f32 %v1553
        %v1556 = vcvt.s32.f32 %v1554
        %1557 = vmin.xlane.f32.xlu0 %v1556
        %v1558 = vpop.xlane.xlu0 %1557
        %vm1559 = vcmp.eq.f32.partialorder %v1556, %v1558
        %v1560 = vsel %vm1559, %v1555, inf
        %1561 = vmin.xlane.f32.xlu0 %v1560
        %v1562 = vpop.xlane.xlu0 %1561
        %v1563 = vcvt.f32.s32 %v1562
        %v1564 = vcvt.f32.s32 %v1558
        %v1565 = vshll.u32 %v1564, 16
        %v1566 = vadd.s32 %v1565, %v1563
        %v1567 = vsel %vm379, %v1503, 2147483647
        %v1568 = vand.u32 %v1567, 65535
        %v1569 = vshra.s32 %v1567, 16
        %v1570 = vcvt.s32.f32 %v1568
        %v1571 = vcvt.s32.f32 %v1569
        %1572 = vmin.xlane.f32.xlu0 %v1571
        %v1573 = vpop.xlane.xlu0 %1572
        %vm1574 = vcmp.eq.f32.partialorder %v1571, %v1573
        %v1575 = vsel %vm1574, %v1570, inf
        %1576 = vmin.xlane.f32.xlu0 %v1575
        %v1577 = vpop.xlane.xlu0 %1576
        %v1578 = vcvt.f32.s32 %v1577
        %v1579 = vcvt.f32.s32 %v1573
        %v1580 = vshll.u32 %v1579, 16
        %v1581 = vadd.s32 %v1580, %v1578
        %v1582 = vsel %vm379, %v1504, 2147483647
        %v1583 = vand.u32 %v1582, 65535
        %v1584 = vshra.s32 %v1582, 16
        %v1585 = vcvt.s32.f32 %v1583
        %v1586 = vcvt.s32.f32 %v1584
        %1587 = vmin.xlane.f32.xlu0 %v1586
        %v1588 = vpop.xlane.xlu0 %1587
        %vm1589 = vcmp.eq.f32.partialorder %v1586, %v1588
        %v1590 = vsel %vm1589, %v1585, inf
        %1591 = vmin.xlane.f32.xlu0 %v1590
        %v1592 = vpop.xlane.xlu0 %1591
        %v1593 = vcvt.f32.s32 %v1592
        %v1594 = vcvt.f32.s32 %v1588
        %v1595 = vshll.u32 %v1594, 16
        %v1596 = vadd.s32 %v1595, %v1593
        %v1597 = vsel %vm379, %v1505, 2147483647
        %v1598 = vand.u32 %v1597, 65535
        %v1599 = vshra.s32 %v1597, 16
        %v1600 = vcvt.s32.f32 %v1598
        %v1601 = vcvt.s32.f32 %v1599
        %1602 = vmin.xlane.f32.xlu0 %v1601
        %v1603 = vpop.xlane.xlu0 %1602
        %vm1604 = vcmp.eq.f32.partialorder %v1601, %v1603
        %v1605 = vsel %vm1604, %v1600, inf
        %1606 = vmin.xlane.f32.xlu0 %v1605
        %v1607 = vpop.xlane.xlu0 %1606
        %v1608 = vcvt.f32.s32 %v1607
        %v1609 = vcvt.f32.s32 %v1603
        %v1610 = vshll.u32 %v1609, 16
        %v1611 = vadd.s32 %v1610, %v1608
        %v1612 = vsel %vm379, %v1506, 2147483647
        %v1613 = vand.u32 %v1612, 65535
        %v1614 = vshra.s32 %v1612, 16
        %v1615 = vcvt.s32.f32 %v1613
        %v1616 = vcvt.s32.f32 %v1614
        %1617 = vmin.xlane.f32.xlu0 %v1616
        %v1618 = vpop.xlane.xlu0 %1617
        %vm1619 = vcmp.eq.f32.partialorder %v1616, %v1618
        %v1620 = vsel %vm1619, %v1615, inf
        %1621 = vmin.xlane.f32.xlu0 %v1620
        %v1622 = vpop.xlane.xlu0 %1621
        %v1623 = vcvt.f32.s32 %v1622
        %v1624 = vcvt.f32.s32 %v1618
        %v1625 = vshll.u32 %v1624, 16
        %v1626 = vadd.s32 %v1625, %v1623
        %vm1627 = vcmp.eq.s32.totalorder %v410, %v1521
        %vm1628 = vcmp.eq.s32.totalorder %v410, %v1536
        %vm1629 = vcmp.eq.s32.totalorder %v410, %v1551
        %vm1630 = vcmp.eq.s32.totalorder %v410, %v1566
        %vm1631 = vcmp.eq.s32.totalorder %v410, %v1581
        %vm1632 = vcmp.eq.s32.totalorder %v410, %v1596
        %vm1633 = vcmp.eq.s32.totalorder %v410, %v1611
        %vm1634 = vcmp.eq.s32.totalorder %v410, %v1626
        %v1635 = vsel %vm1627, -3.4028235e+38, %v1459
        %v1636 = vsel %vm1628, -3.4028235e+38, %v1460
        %v1637 = vsel %vm1629, -3.4028235e+38, %v1461
        %v1638 = vsel %vm1630, -3.4028235e+38, %v1462
        %v1639 = vsel %vm1631, -3.4028235e+38, %v1463
        %v1640 = vsel %vm1632, -3.4028235e+38, %v1464
        %v1641 = vsel %vm1633, -3.4028235e+38, %v1465
        %v1642 = vsel %vm1634, -3.4028235e+38, %v1466
        %v1643 = vsel %vm379, %v1635, -inf
        %1644 = vmax.xlane.f32.xlu0 %v1643
        %v1645 = vpop.xlane.xlu0 %1644
        %v1646 = vsel %vm379, %v1636, -inf
        %1647 = vmax.xlane.f32.xlu0 %v1646
        %v1648 = vpop.xlane.xlu0 %1647
        %v1649 = vsel %vm379, %v1637, -inf
        %1650 = vmax.xlane.f32.xlu0 %v1649
        %v1651 = vpop.xlane.xlu0 %1650
        %v1652 = vsel %vm379, %v1638, -inf
        %1653 = vmax.xlane.f32.xlu0 %v1652
        %v1654 = vpop.xlane.xlu0 %1653
        %v1655 = vsel %vm379, %v1639, -inf
        %1656 = vmax.xlane.f32.xlu0 %v1655
        %v1657 = vpop.xlane.xlu0 %1656
        %v1658 = vsel %vm379, %v1640, -inf
        %1659 = vmax.xlane.f32.xlu0 %v1658
        %v1660 = vpop.xlane.xlu0 %1659
        %v1661 = vsel %vm379, %v1641, -inf
        %1662 = vmax.xlane.f32.xlu0 %v1661
        %v1663 = vpop.xlane.xlu0 %1662
        %v1664 = vsel %vm379, %v1642, -inf
        %1665 = vmax.xlane.f32.xlu0 %v1664
        %v1666 = vpop.xlane.xlu0 %1665
        %vm1667 = vcmp.ge.f32.partialorder %v1635, %v1645
        %vm1668 = vcmp.ge.f32.partialorder %v1636, %v1648
        %vm1669 = vcmp.ge.f32.partialorder %v1637, %v1651
        %vm1670 = vcmp.ge.f32.partialorder %v1638, %v1654
        %vm1671 = vcmp.ge.f32.partialorder %v1639, %v1657
        %vm1672 = vcmp.ge.f32.partialorder %v1640, %v1660
        %vm1673 = vcmp.ge.f32.partialorder %v1641, %v1663
        %vm1674 = vcmp.ge.f32.partialorder %v1642, %v1666
        %v1675 = vsel %vm1667, %v410, 64
        %v1676 = vsel %vm1668, %v410, 64
        %v1677 = vsel %vm1669, %v410, 64
        %v1678 = vsel %vm1670, %v410, 64
        %v1679 = vsel %vm1671, %v410, 64
        %v1680 = vsel %vm1672, %v410, 64
        %v1681 = vsel %vm1673, %v410, 64
        %v1682 = vsel %vm1674, %v410, 64
        %v1683 = vsel %vm379, %v1675, 2147483647
        %v1684 = vand.u32 %v1683, 65535
        %v1685 = vshra.s32 %v1683, 16
        %v1686 = vcvt.s32.f32 %v1684
        %v1687 = vcvt.s32.f32 %v1685
        %1688 = vmin.xlane.f32.xlu0 %v1687
        %v1689 = vpop.xlane.xlu0 %1688
        %vm1690 = vcmp.eq.f32.partialorder %v1687, %v1689
        %v1691 = vsel %vm1690, %v1686, inf
        %1692 = vmin.xlane.f32.xlu0 %v1691
        %v1693 = vpop.xlane.xlu0 %1692
        %v1694 = vcvt.f32.s32 %v1693
        %v1695 = vcvt.f32.s32 %v1689
        %v1696 = vshll.u32 %v1695, 16
        %v1697 = vadd.s32 %v1696, %v1694
        %v1698 = vsel %vm379, %v1676, 2147483647
        %v1699 = vand.u32 %v1698, 65535
        %v1700 = vshra.s32 %v1698, 16
        %v1701 = vcvt.s32.f32 %v1699
        %v1702 = vcvt.s32.f32 %v1700
        %1703 = vmin.xlane.f32.xlu0 %v1702
        %v1704 = vpop.xlane.xlu0 %1703
        %vm1705 = vcmp.eq.f32.partialorder %v1702, %v1704
        %v1706 = vsel %vm1705, %v1701, inf
        %1707 = vmin.xlane.f32.xlu0 %v1706
        %v1708 = vpop.xlane.xlu0 %1707
        %v1709 = vcvt.f32.s32 %v1708
        %v1710 = vcvt.f32.s32 %v1704
        %v1711 = vshll.u32 %v1710, 16
        %v1712 = vadd.s32 %v1711, %v1709
        %v1713 = vsel %vm379, %v1677, 2147483647
        %v1714 = vand.u32 %v1713, 65535
        %v1715 = vshra.s32 %v1713, 16
        %v1716 = vcvt.s32.f32 %v1714
        %v1717 = vcvt.s32.f32 %v1715
        %1718 = vmin.xlane.f32.xlu0 %v1717
        %v1719 = vpop.xlane.xlu0 %1718
        %vm1720 = vcmp.eq.f32.partialorder %v1717, %v1719
        %v1721 = vsel %vm1720, %v1716, inf
        %1722 = vmin.xlane.f32.xlu0 %v1721
        %v1723 = vpop.xlane.xlu0 %1722
        %v1724 = vcvt.f32.s32 %v1723
        %v1725 = vcvt.f32.s32 %v1719
        %v1726 = vshll.u32 %v1725, 16
        %v1727 = vadd.s32 %v1726, %v1724
        %v1728 = vsel %vm379, %v1678, 2147483647
        %v1729 = vand.u32 %v1728, 65535
        %v1730 = vshra.s32 %v1728, 16
        %v1731 = vcvt.s32.f32 %v1729
        %v1732 = vcvt.s32.f32 %v1730
        %1733 = vmin.xlane.f32.xlu0 %v1732
        %v1734 = vpop.xlane.xlu0 %1733
        %vm1735 = vcmp.eq.f32.partialorder %v1732, %v1734
        %v1736 = vsel %vm1735, %v1731, inf
        %1737 = vmin.xlane.f32.xlu0 %v1736
        %v1738 = vpop.xlane.xlu0 %1737
        %v1739 = vcvt.f32.s32 %v1738
        %v1740 = vcvt.f32.s32 %v1734
        %v1741 = vshll.u32 %v1740, 16
        %v1742 = vadd.s32 %v1741, %v1739
        %v1743 = vsel %vm379, %v1679, 2147483647
        %v1744 = vand.u32 %v1743, 65535
        %v1745 = vshra.s32 %v1743, 16
        %v1746 = vcvt.s32.f32 %v1744
        %v1747 = vcvt.s32.f32 %v1745
        %1748 = vmin.xlane.f32.xlu0 %v1747
        %v1749 = vpop.xlane.xlu0 %1748
        %vm1750 = vcmp.eq.f32.partialorder %v1747, %v1749
        %v1751 = vsel %vm1750, %v1746, inf
        %1752 = vmin.xlane.f32.xlu0 %v1751
        %v1753 = vpop.xlane.xlu0 %1752
        %v1754 = vcvt.f32.s32 %v1753
        %v1755 = vcvt.f32.s32 %v1749
        %v1756 = vshll.u32 %v1755, 16
        %v1757 = vadd.s32 %v1756, %v1754
        %v1758 = vsel %vm379, %v1680, 2147483647
        %v1759 = vand.u32 %v1758, 65535
        %v1760 = vshra.s32 %v1758, 16
        %v1761 = vcvt.s32.f32 %v1759
        %v1762 = vcvt.s32.f32 %v1760
        %1763 = vmin.xlane.f32.xlu0 %v1762
        %v1764 = vpop.xlane.xlu0 %1763
        %vm1765 = vcmp.eq.f32.partialorder %v1762, %v1764
        %v1766 = vsel %vm1765, %v1761, inf
        %1767 = vmin.xlane.f32.xlu0 %v1766
        %v1768 = vpop.xlane.xlu0 %1767
        %v1769 = vcvt.f32.s32 %v1768
        %v1770 = vcvt.f32.s32 %v1764
        %v1771 = vshll.u32 %v1770, 16
        %v1772 = vadd.s32 %v1771, %v1769
        %v1773 = vsel %vm379, %v1681, 2147483647
        %v1774 = vand.u32 %v1773, 65535
        %v1775 = vshra.s32 %v1773, 16
        %v1776 = vcvt.s32.f32 %v1774
        %v1777 = vcvt.s32.f32 %v1775
        %1778 = vmin.xlane.f32.xlu0 %v1777
        %v1779 = vpop.xlane.xlu0 %1778
        %vm1780 = vcmp.eq.f32.partialorder %v1777, %v1779
        %v1781 = vsel %vm1780, %v1776, inf
        %1782 = vmin.xlane.f32.xlu0 %v1781
        %v1783 = vpop.xlane.xlu0 %1782
        %v1784 = vcvt.f32.s32 %v1783
        %v1785 = vcvt.f32.s32 %v1779
        %v1786 = vshll.u32 %v1785, 16
        %v1787 = vadd.s32 %v1786, %v1784
        %v1788 = vsel %vm379, %v1682, 2147483647
        %v1789 = vand.u32 %v1788, 65535
        %v1790 = vshra.s32 %v1788, 16
        %v1791 = vcvt.s32.f32 %v1789
        %v1792 = vcvt.s32.f32 %v1790
        %1793 = vmin.xlane.f32.xlu0 %v1792
        %v1794 = vpop.xlane.xlu0 %1793
        %vm1795 = vcmp.eq.f32.partialorder %v1792, %v1794
        %v1796 = vsel %vm1795, %v1791, inf
        %1797 = vmin.xlane.f32.xlu0 %v1796
        %v1798 = vpop.xlane.xlu0 %1797
        %v1799 = vcvt.f32.s32 %v1798
        %v1800 = vcvt.f32.s32 %v1794
        %v1801 = vshll.u32 %v1800, 16
        %v1802 = vadd.s32 %v1801, %v1799
        %vm1803 = vcmp.eq.s32.totalorder %v410, %v1697
        %vm1804 = vcmp.eq.s32.totalorder %v410, %v1712
        %vm1805 = vcmp.eq.s32.totalorder %v410, %v1727
        %vm1806 = vcmp.eq.s32.totalorder %v410, %v1742
        %vm1807 = vcmp.eq.s32.totalorder %v410, %v1757
        %vm1808 = vcmp.eq.s32.totalorder %v410, %v1772
        %vm1809 = vcmp.eq.s32.totalorder %v410, %v1787
        %vm1810 = vcmp.eq.s32.totalorder %v410, %v1802
        %v1811 = vsel %vm1803, -3.4028235e+38, %v1635
        %v1812 = vsel %vm1804, -3.4028235e+38, %v1636
        %v1813 = vsel %vm1805, -3.4028235e+38, %v1637
        %v1814 = vsel %vm1806, -3.4028235e+38, %v1638
        %v1815 = vsel %vm1807, -3.4028235e+38, %v1639
        %v1816 = vsel %vm1808, -3.4028235e+38, %v1640
        %v1817 = vsel %vm1809, -3.4028235e+38, %v1641
        %v1818 = vsel %vm1810, -3.4028235e+38, %v1642
        %v1819 = vsel %vm379, %v1811, -inf
        %1820 = vmax.xlane.f32.xlu0 %v1819
        %v1821 = vpop.xlane.xlu0 %1820
        %v1822 = vsel %vm379, %v1812, -inf
        %1823 = vmax.xlane.f32.xlu0 %v1822
        %v1824 = vpop.xlane.xlu0 %1823
        %v1825 = vsel %vm379, %v1813, -inf
        %1826 = vmax.xlane.f32.xlu0 %v1825
        %v1827 = vpop.xlane.xlu0 %1826
        %v1828 = vsel %vm379, %v1814, -inf
        %1829 = vmax.xlane.f32.xlu0 %v1828
        %v1830 = vpop.xlane.xlu0 %1829
        %v1831 = vsel %vm379, %v1815, -inf
        %1832 = vmax.xlane.f32.xlu0 %v1831
        %v1833 = vpop.xlane.xlu0 %1832
        %v1834 = vsel %vm379, %v1816, -inf
        %1835 = vmax.xlane.f32.xlu0 %v1834
        %v1836 = vpop.xlane.xlu0 %1835
        %v1837 = vsel %vm379, %v1817, -inf
        %1838 = vmax.xlane.f32.xlu0 %v1837
        %v1839 = vpop.xlane.xlu0 %1838
        %v1840 = vsel %vm379, %v1818, -inf
        %1841 = vmax.xlane.f32.xlu0 %v1840
        %v1842 = vpop.xlane.xlu0 %1841
        %vm1843 = vcmp.ge.f32.partialorder %v1811, %v1821
        %vm1844 = vcmp.ge.f32.partialorder %v1812, %v1824
        %vm1845 = vcmp.ge.f32.partialorder %v1813, %v1827
        %vm1846 = vcmp.ge.f32.partialorder %v1814, %v1830
        %vm1847 = vcmp.ge.f32.partialorder %v1815, %v1833
        %vm1848 = vcmp.ge.f32.partialorder %v1816, %v1836
        %vm1849 = vcmp.ge.f32.partialorder %v1817, %v1839
        %vm1850 = vcmp.ge.f32.partialorder %v1818, %v1842
        %v1851 = vsel %vm1843, %v410, 64
        %v1852 = vsel %vm1844, %v410, 64
        %v1853 = vsel %vm1845, %v410, 64
        %v1854 = vsel %vm1846, %v410, 64
        %v1855 = vsel %vm1847, %v410, 64
        %v1856 = vsel %vm1848, %v410, 64
        %v1857 = vsel %vm1849, %v410, 64
        %v1858 = vsel %vm1850, %v410, 64
        %v1859 = vsel %vm379, %v1851, 2147483647
        %v1860 = vand.u32 %v1859, 65535
        %v1861 = vshra.s32 %v1859, 16
        %v1862 = vcvt.s32.f32 %v1860
        %v1863 = vcvt.s32.f32 %v1861
        %1864 = vmin.xlane.f32.xlu0 %v1863
        %v1865 = vpop.xlane.xlu0 %1864
        %vm1866 = vcmp.eq.f32.partialorder %v1863, %v1865
        %v1867 = vsel %vm1866, %v1862, inf
        %1868 = vmin.xlane.f32.xlu0 %v1867
        %v1869 = vpop.xlane.xlu0 %1868
        %v1870 = vcvt.f32.s32 %v1869
        %v1871 = vcvt.f32.s32 %v1865
        %v1872 = vshll.u32 %v1871, 16
        %v1873 = vadd.s32 %v1872, %v1870
        %v1874 = vsel %vm379, %v1852, 2147483647
        %v1875 = vand.u32 %v1874, 65535
        %v1876 = vshra.s32 %v1874, 16
        %v1877 = vcvt.s32.f32 %v1875
        %v1878 = vcvt.s32.f32 %v1876
        %1879 = vmin.xlane.f32.xlu0 %v1878
        %v1880 = vpop.xlane.xlu0 %1879
        %vm1881 = vcmp.eq.f32.partialorder %v1878, %v1880
        %v1882 = vsel %vm1881, %v1877, inf
        %1883 = vmin.xlane.f32.xlu0 %v1882
        %v1884 = vpop.xlane.xlu0 %1883
        %v1885 = vcvt.f32.s32 %v1884
        %v1886 = vcvt.f32.s32 %v1880
        %v1887 = vshll.u32 %v1886, 16
        %v1888 = vadd.s32 %v1887, %v1885
        %v1889 = vsel %vm379, %v1853, 2147483647
        %v1890 = vand.u32 %v1889, 65535
        %v1891 = vshra.s32 %v1889, 16
        %v1892 = vcvt.s32.f32 %v1890
        %v1893 = vcvt.s32.f32 %v1891
        %1894 = vmin.xlane.f32.xlu0 %v1893
        %v1895 = vpop.xlane.xlu0 %1894
        %vm1896 = vcmp.eq.f32.partialorder %v1893, %v1895
        %v1897 = vsel %vm1896, %v1892, inf
        %1898 = vmin.xlane.f32.xlu0 %v1897
        %v1899 = vpop.xlane.xlu0 %1898
        %v1900 = vcvt.f32.s32 %v1899
        %v1901 = vcvt.f32.s32 %v1895
        %v1902 = vshll.u32 %v1901, 16
        %v1903 = vadd.s32 %v1902, %v1900
        %v1904 = vsel %vm379, %v1854, 2147483647
        %v1905 = vand.u32 %v1904, 65535
        %v1906 = vshra.s32 %v1904, 16
        %v1907 = vcvt.s32.f32 %v1905
        %v1908 = vcvt.s32.f32 %v1906
        %1909 = vmin.xlane.f32.xlu0 %v1908
        %v1910 = vpop.xlane.xlu0 %1909
        %vm1911 = vcmp.eq.f32.partialorder %v1908, %v1910
        %v1912 = vsel %vm1911, %v1907, inf
        %1913 = vmin.xlane.f32.xlu0 %v1912
        %v1914 = vpop.xlane.xlu0 %1913
        %v1915 = vcvt.f32.s32 %v1914
        %v1916 = vcvt.f32.s32 %v1910
        %v1917 = vshll.u32 %v1916, 16
        %v1918 = vadd.s32 %v1917, %v1915
        %v1919 = vsel %vm379, %v1855, 2147483647
        %v1920 = vand.u32 %v1919, 65535
        %v1921 = vshra.s32 %v1919, 16
        %v1922 = vcvt.s32.f32 %v1920
        %v1923 = vcvt.s32.f32 %v1921
        %1924 = vmin.xlane.f32.xlu0 %v1923
        %v1925 = vpop.xlane.xlu0 %1924
        %vm1926 = vcmp.eq.f32.partialorder %v1923, %v1925
        %v1927 = vsel %vm1926, %v1922, inf
        %1928 = vmin.xlane.f32.xlu0 %v1927
        %v1929 = vpop.xlane.xlu0 %1928
        %v1930 = vcvt.f32.s32 %v1929
        %v1931 = vcvt.f32.s32 %v1925
        %v1932 = vshll.u32 %v1931, 16
        %v1933 = vadd.s32 %v1932, %v1930
        %v1934 = vsel %vm379, %v1856, 2147483647
        %v1935 = vand.u32 %v1934, 65535
        %v1936 = vshra.s32 %v1934, 16
        %v1937 = vcvt.s32.f32 %v1935
        %v1938 = vcvt.s32.f32 %v1936
        %1939 = vmin.xlane.f32.xlu0 %v1938
        %v1940 = vpop.xlane.xlu0 %1939
        %vm1941 = vcmp.eq.f32.partialorder %v1938, %v1940
        %v1942 = vsel %vm1941, %v1937, inf
        %1943 = vmin.xlane.f32.xlu0 %v1942
        %v1944 = vpop.xlane.xlu0 %1943
        %v1945 = vcvt.f32.s32 %v1944
        %v1946 = vcvt.f32.s32 %v1940
        %v1947 = vshll.u32 %v1946, 16
        %v1948 = vadd.s32 %v1947, %v1945
        %v1949 = vsel %vm379, %v1857, 2147483647
        %v1950 = vand.u32 %v1949, 65535
        %v1951 = vshra.s32 %v1949, 16
        %v1952 = vcvt.s32.f32 %v1950
        %v1953 = vcvt.s32.f32 %v1951
        %1954 = vmin.xlane.f32.xlu0 %v1953
        %v1955 = vpop.xlane.xlu0 %1954
        %vm1956 = vcmp.eq.f32.partialorder %v1953, %v1955
        %v1957 = vsel %vm1956, %v1952, inf
        %1958 = vmin.xlane.f32.xlu0 %v1957
        %v1959 = vpop.xlane.xlu0 %1958
        %v1960 = vcvt.f32.s32 %v1959
        %v1961 = vcvt.f32.s32 %v1955
        %v1962 = vshll.u32 %v1961, 16
        %v1963 = vadd.s32 %v1962, %v1960
        %v1964 = vsel %vm379, %v1858, 2147483647
        %v1965 = vand.u32 %v1964, 65535
        %v1966 = vshra.s32 %v1964, 16
        %v1967 = vcvt.s32.f32 %v1965
        %v1968 = vcvt.s32.f32 %v1966
        %1969 = vmin.xlane.f32.xlu0 %v1968
        %v1970 = vpop.xlane.xlu0 %1969
        %vm1971 = vcmp.eq.f32.partialorder %v1968, %v1970
        %v1972 = vsel %vm1971, %v1967, inf
        %1973 = vmin.xlane.f32.xlu0 %v1972
        %v1974 = vpop.xlane.xlu0 %1973
        %v1975 = vcvt.f32.s32 %v1974
        %v1976 = vcvt.f32.s32 %v1970
        %v1977 = vshll.u32 %v1976, 16
        %v1978 = vadd.s32 %v1977, %v1975
        %vm1979 = vcmp.eq.s32.totalorder %v410, %v1873
        %vm1980 = vcmp.eq.s32.totalorder %v410, %v1888
        %vm1981 = vcmp.eq.s32.totalorder %v410, %v1903
        %vm1982 = vcmp.eq.s32.totalorder %v410, %v1918
        %vm1983 = vcmp.eq.s32.totalorder %v410, %v1933
        %vm1984 = vcmp.eq.s32.totalorder %v410, %v1948
        %vm1985 = vcmp.eq.s32.totalorder %v410, %v1963
        %vm1986 = vcmp.eq.s32.totalorder %v410, %v1978
        %v1987 = vsel %vm1979, -3.4028235e+38, %v1811
        %v1988 = vsel %vm1980, -3.4028235e+38, %v1812
        %v1989 = vsel %vm1981, -3.4028235e+38, %v1813
        %v1990 = vsel %vm1982, -3.4028235e+38, %v1814
        %v1991 = vsel %vm1983, -3.4028235e+38, %v1815
        %v1992 = vsel %vm1984, -3.4028235e+38, %v1816
        %v1993 = vsel %vm1985, -3.4028235e+38, %v1817
        %v1994 = vsel %vm1986, -3.4028235e+38, %v1818
        %v1995 = vsel %vm379, %v1987, -inf
        %1996 = vmax.xlane.f32.xlu0 %v1995
        %v1997 = vpop.xlane.xlu0 %1996
        %v1998 = vsel %vm379, %v1988, -inf
        %1999 = vmax.xlane.f32.xlu0 %v1998
        %v2000 = vpop.xlane.xlu0 %1999
        %v2001 = vsel %vm379, %v1989, -inf
        %2002 = vmax.xlane.f32.xlu0 %v2001
        %v2003 = vpop.xlane.xlu0 %2002
        %v2004 = vsel %vm379, %v1990, -inf
        %2005 = vmax.xlane.f32.xlu0 %v2004
        %v2006 = vpop.xlane.xlu0 %2005
        %v2007 = vsel %vm379, %v1991, -inf
        %2008 = vmax.xlane.f32.xlu0 %v2007
        %v2009 = vpop.xlane.xlu0 %2008
        %v2010 = vsel %vm379, %v1992, -inf
        %2011 = vmax.xlane.f32.xlu0 %v2010
        %v2012 = vpop.xlane.xlu0 %2011
        %v2013 = vsel %vm379, %v1993, -inf
        %2014 = vmax.xlane.f32.xlu0 %v2013
        %v2015 = vpop.xlane.xlu0 %2014
        %v2016 = vsel %vm379, %v1994, -inf
        %2017 = vmax.xlane.f32.xlu0 %v2016
        %v2018 = vpop.xlane.xlu0 %2017
        %vm2019 = vcmp.ge.f32.partialorder %v1987, %v1997
        %vm2020 = vcmp.ge.f32.partialorder %v1988, %v2000
        %vm2021 = vcmp.ge.f32.partialorder %v1989, %v2003
        %vm2022 = vcmp.ge.f32.partialorder %v1990, %v2006
        %vm2023 = vcmp.ge.f32.partialorder %v1991, %v2009
        %vm2024 = vcmp.ge.f32.partialorder %v1992, %v2012
        %vm2025 = vcmp.ge.f32.partialorder %v1993, %v2015
        %vm2026 = vcmp.ge.f32.partialorder %v1994, %v2018
        %v2027 = vsel %vm2019, %v410, 64
        %v2028 = vsel %vm2020, %v410, 64
        %v2029 = vsel %vm2021, %v410, 64
        %v2030 = vsel %vm2022, %v410, 64
        %v2031 = vsel %vm2023, %v410, 64
        %v2032 = vsel %vm2024, %v410, 64
        %v2033 = vsel %vm2025, %v410, 64
        %v2034 = vsel %vm2026, %v410, 64
        %v2035 = vsel %vm379, %v2027, 2147483647
        %v2036 = vand.u32 %v2035, 65535
        %v2037 = vshra.s32 %v2035, 16
        %v2038 = vcvt.s32.f32 %v2036
        %v2039 = vcvt.s32.f32 %v2037
        %2040 = vmin.xlane.f32.xlu0 %v2039
        %v2041 = vpop.xlane.xlu0 %2040
        %vm2042 = vcmp.eq.f32.partialorder %v2039, %v2041
        %v2043 = vsel %vm2042, %v2038, inf
        %2044 = vmin.xlane.f32.xlu0 %v2043
        %v2045 = vpop.xlane.xlu0 %2044
        %v2046 = vcvt.f32.s32 %v2045
        %v2047 = vcvt.f32.s32 %v2041
        %v2048 = vshll.u32 %v2047, 16
        %v2049 = vadd.s32 %v2048, %v2046
        %v2050 = vsel %vm379, %v2028, 2147483647
        %v2051 = vand.u32 %v2050, 65535
        %v2052 = vshra.s32 %v2050, 16
        %v2053 = vcvt.s32.f32 %v2051
        %v2054 = vcvt.s32.f32 %v2052
        %2055 = vmin.xlane.f32.xlu0 %v2054
        %v2056 = vpop.xlane.xlu0 %2055
        %vm2057 = vcmp.eq.f32.partialorder %v2054, %v2056
        %v2058 = vsel %vm2057, %v2053, inf
        %2059 = vmin.xlane.f32.xlu0 %v2058
        %v2060 = vpop.xlane.xlu0 %2059
        %v2061 = vcvt.f32.s32 %v2060
        %v2062 = vcvt.f32.s32 %v2056
        %v2063 = vshll.u32 %v2062, 16
        %v2064 = vadd.s32 %v2063, %v2061
        %v2065 = vsel %vm379, %v2029, 2147483647
        %v2066 = vand.u32 %v2065, 65535
        %v2067 = vshra.s32 %v2065, 16
        %v2068 = vcvt.s32.f32 %v2066
        %v2069 = vcvt.s32.f32 %v2067
        %2070 = vmin.xlane.f32.xlu0 %v2069
        %v2071 = vpop.xlane.xlu0 %2070
        %vm2072 = vcmp.eq.f32.partialorder %v2069, %v2071
        %v2073 = vsel %vm2072, %v2068, inf
        %2074 = vmin.xlane.f32.xlu0 %v2073
        %v2075 = vpop.xlane.xlu0 %2074
        %v2076 = vcvt.f32.s32 %v2075
        %v2077 = vcvt.f32.s32 %v2071
        %v2078 = vshll.u32 %v2077, 16
        %v2079 = vadd.s32 %v2078, %v2076
        %v2080 = vsel %vm379, %v2030, 2147483647
        %v2081 = vand.u32 %v2080, 65535
        %v2082 = vshra.s32 %v2080, 16
        %v2083 = vcvt.s32.f32 %v2081
        %v2084 = vcvt.s32.f32 %v2082
        %2085 = vmin.xlane.f32.xlu0 %v2084
        %v2086 = vpop.xlane.xlu0 %2085
        %vm2087 = vcmp.eq.f32.partialorder %v2084, %v2086
        %v2088 = vsel %vm2087, %v2083, inf
        %2089 = vmin.xlane.f32.xlu0 %v2088
        %v2090 = vpop.xlane.xlu0 %2089
        %v2091 = vcvt.f32.s32 %v2090
        %v2092 = vcvt.f32.s32 %v2086
        %v2093 = vshll.u32 %v2092, 16
        %v2094 = vadd.s32 %v2093, %v2091
        %v2095 = vsel %vm379, %v2031, 2147483647
        %v2096 = vand.u32 %v2095, 65535
        %v2097 = vshra.s32 %v2095, 16
        %v2098 = vcvt.s32.f32 %v2096
        %v2099 = vcvt.s32.f32 %v2097
        %2100 = vmin.xlane.f32.xlu0 %v2099
        %v2101 = vpop.xlane.xlu0 %2100
        %vm2102 = vcmp.eq.f32.partialorder %v2099, %v2101
        %v2103 = vsel %vm2102, %v2098, inf
        %2104 = vmin.xlane.f32.xlu0 %v2103
        %v2105 = vpop.xlane.xlu0 %2104
        %v2106 = vcvt.f32.s32 %v2105
        %v2107 = vcvt.f32.s32 %v2101
        %v2108 = vshll.u32 %v2107, 16
        %v2109 = vadd.s32 %v2108, %v2106
        %v2110 = vsel %vm379, %v2032, 2147483647
        %v2111 = vand.u32 %v2110, 65535
        %v2112 = vshra.s32 %v2110, 16
        %v2113 = vcvt.s32.f32 %v2111
        %v2114 = vcvt.s32.f32 %v2112
        %2115 = vmin.xlane.f32.xlu0 %v2114
        %v2116 = vpop.xlane.xlu0 %2115
        %vm2117 = vcmp.eq.f32.partialorder %v2114, %v2116
        %v2118 = vsel %vm2117, %v2113, inf
        %2119 = vmin.xlane.f32.xlu0 %v2118
        %v2120 = vpop.xlane.xlu0 %2119
        %v2121 = vcvt.f32.s32 %v2120
        %v2122 = vcvt.f32.s32 %v2116
        %v2123 = vshll.u32 %v2122, 16
        %v2124 = vadd.s32 %v2123, %v2121
        %v2125 = vsel %vm379, %v2033, 2147483647
        %v2126 = vand.u32 %v2125, 65535
        %v2127 = vshra.s32 %v2125, 16
        %v2128 = vcvt.s32.f32 %v2126
        %v2129 = vcvt.s32.f32 %v2127
        %2130 = vmin.xlane.f32.xlu0 %v2129
        %v2131 = vpop.xlane.xlu0 %2130
        %vm2132 = vcmp.eq.f32.partialorder %v2129, %v2131
        %v2133 = vsel %vm2132, %v2128, inf
        %2134 = vmin.xlane.f32.xlu0 %v2133
        %v2135 = vpop.xlane.xlu0 %2134
        %v2136 = vcvt.f32.s32 %v2135
        %v2137 = vcvt.f32.s32 %v2131
        %v2138 = vshll.u32 %v2137, 16
        %v2139 = vadd.s32 %v2138, %v2136
        %v2140 = vsel %vm379, %v2034, 2147483647
        %v2141 = vand.u32 %v2140, 65535
        %v2142 = vshra.s32 %v2140, 16
        %v2143 = vcvt.s32.f32 %v2141
        %v2144 = vcvt.s32.f32 %v2142
        %2145 = vmin.xlane.f32.xlu0 %v2144
        %v2146 = vpop.xlane.xlu0 %2145
        %vm2147 = vcmp.eq.f32.partialorder %v2144, %v2146
        %v2148 = vsel %vm2147, %v2143, inf
        %2149 = vmin.xlane.f32.xlu0 %v2148
        %v2150 = vpop.xlane.xlu0 %2149
        %v2151 = vcvt.f32.s32 %v2150
        %v2152 = vcvt.f32.s32 %v2146
        %v2153 = vshll.u32 %v2152, 16
        %v2154 = vadd.s32 %v2153, %v2151
        %vm2155 = vcmp.eq.s32.totalorder %v410, %v2049
        %vm2156 = vcmp.eq.s32.totalorder %v410, %v2064
        %vm2157 = vcmp.eq.s32.totalorder %v410, %v2079
        %vm2158 = vcmp.eq.s32.totalorder %v410, %v2094
        %vm2159 = vcmp.eq.s32.totalorder %v410, %v2109
        %vm2160 = vcmp.eq.s32.totalorder %v410, %v2124
        %vm2161 = vcmp.eq.s32.totalorder %v410, %v2139
        %vm2162 = vcmp.eq.s32.totalorder %v410, %v2154
        %v2163 = vsel %vm2155, -3.4028235e+38, %v1987
        %v2164 = vsel %vm2156, -3.4028235e+38, %v1988
        %v2165 = vsel %vm2157, -3.4028235e+38, %v1989
        %v2166 = vsel %vm2158, -3.4028235e+38, %v1990
        %v2167 = vsel %vm2159, -3.4028235e+38, %v1991
        %v2168 = vsel %vm2160, -3.4028235e+38, %v1992
        %v2169 = vsel %vm2161, -3.4028235e+38, %v1993
        %v2170 = vsel %vm2162, -3.4028235e+38, %v1994
        %v2171 = vsel %vm379, %v2163, -inf
        %2172 = vmax.xlane.f32.xlu0 %v2171
        %v2173 = vpop.xlane.xlu0 %2172
        %v2174 = vsel %vm379, %v2164, -inf
        %2175 = vmax.xlane.f32.xlu0 %v2174
        %v2176 = vpop.xlane.xlu0 %2175
        %v2177 = vsel %vm379, %v2165, -inf
        %2178 = vmax.xlane.f32.xlu0 %v2177
        %v2179 = vpop.xlane.xlu0 %2178
        %v2180 = vsel %vm379, %v2166, -inf
        %2181 = vmax.xlane.f32.xlu0 %v2180
        %v2182 = vpop.xlane.xlu0 %2181
        %v2183 = vsel %vm379, %v2167, -inf
        %2184 = vmax.xlane.f32.xlu0 %v2183
        %v2185 = vpop.xlane.xlu0 %2184
        %v2186 = vsel %vm379, %v2168, -inf
        %2187 = vmax.xlane.f32.xlu0 %v2186
        %v2188 = vpop.xlane.xlu0 %2187
        %v2189 = vsel %vm379, %v2169, -inf
        %2190 = vmax.xlane.f32.xlu0 %v2189
        %v2191 = vpop.xlane.xlu0 %2190
        %v2192 = vsel %vm379, %v2170, -inf
        %2193 = vmax.xlane.f32.xlu0 %v2192
        %v2194 = vpop.xlane.xlu0 %2193
        %vm2195 = vcmp.ge.f32.partialorder %v2163, %v2173
        %vm2196 = vcmp.ge.f32.partialorder %v2164, %v2176
        %vm2197 = vcmp.ge.f32.partialorder %v2165, %v2179
        %vm2198 = vcmp.ge.f32.partialorder %v2166, %v2182
        %vm2199 = vcmp.ge.f32.partialorder %v2167, %v2185
        %vm2200 = vcmp.ge.f32.partialorder %v2168, %v2188
        %vm2201 = vcmp.ge.f32.partialorder %v2169, %v2191
        %vm2202 = vcmp.ge.f32.partialorder %v2170, %v2194
        %v2203 = vsel %vm2195, %v410, 64
        %v2204 = vsel %vm2196, %v410, 64
        %v2205 = vsel %vm2197, %v410, 64
        %v2206 = vsel %vm2198, %v410, 64
        %v2207 = vsel %vm2199, %v410, 64
        %v2208 = vsel %vm2200, %v410, 64
        %v2209 = vsel %vm2201, %v410, 64
        %v2210 = vsel %vm2202, %v410, 64
        %v2211 = vsel %vm379, %v2203, 2147483647
        %v2212 = vand.u32 %v2211, 65535
        %v2213 = vshra.s32 %v2211, 16
        %v2214 = vcvt.s32.f32 %v2212
        %v2215 = vcvt.s32.f32 %v2213
        %2216 = vmin.xlane.f32.xlu0 %v2215
        %v2217 = vpop.xlane.xlu0 %2216
        %vm2218 = vcmp.eq.f32.partialorder %v2215, %v2217
        %v2219 = vsel %vm2218, %v2214, inf
        %2220 = vmin.xlane.f32.xlu0 %v2219
        %v2221 = vpop.xlane.xlu0 %2220
        %v2222 = vcvt.f32.s32 %v2221
        %v2223 = vcvt.f32.s32 %v2217
        %v2224 = vshll.u32 %v2223, 16
        %v2225 = vadd.s32 %v2224, %v2222
        %v2226 = vsel %vm379, %v2204, 2147483647
        %v2227 = vand.u32 %v2226, 65535
        %v2228 = vshra.s32 %v2226, 16
        %v2229 = vcvt.s32.f32 %v2227
        %v2230 = vcvt.s32.f32 %v2228
        %2231 = vmin.xlane.f32.xlu0 %v2230
        %v2232 = vpop.xlane.xlu0 %2231
        %vm2233 = vcmp.eq.f32.partialorder %v2230, %v2232
        %v2234 = vsel %vm2233, %v2229, inf
        %2235 = vmin.xlane.f32.xlu0 %v2234
        %v2236 = vpop.xlane.xlu0 %2235
        %v2237 = vcvt.f32.s32 %v2236
        %v2238 = vcvt.f32.s32 %v2232
        %v2239 = vshll.u32 %v2238, 16
        %v2240 = vadd.s32 %v2239, %v2237
        %v2241 = vsel %vm379, %v2205, 2147483647
        %v2242 = vand.u32 %v2241, 65535
        %v2243 = vshra.s32 %v2241, 16
        %v2244 = vcvt.s32.f32 %v2242
        %v2245 = vcvt.s32.f32 %v2243
        %2246 = vmin.xlane.f32.xlu0 %v2245
        %v2247 = vpop.xlane.xlu0 %2246
        %vm2248 = vcmp.eq.f32.partialorder %v2245, %v2247
        %v2249 = vsel %vm2248, %v2244, inf
        %2250 = vmin.xlane.f32.xlu0 %v2249
        %v2251 = vpop.xlane.xlu0 %2250
        %v2252 = vcvt.f32.s32 %v2251
        %v2253 = vcvt.f32.s32 %v2247
        %v2254 = vshll.u32 %v2253, 16
        %v2255 = vadd.s32 %v2254, %v2252
        %v2256 = vsel %vm379, %v2206, 2147483647
        %v2257 = vand.u32 %v2256, 65535
        %v2258 = vshra.s32 %v2256, 16
        %v2259 = vcvt.s32.f32 %v2257
        %v2260 = vcvt.s32.f32 %v2258
        %2261 = vmin.xlane.f32.xlu0 %v2260
        %v2262 = vpop.xlane.xlu0 %2261
        %vm2263 = vcmp.eq.f32.partialorder %v2260, %v2262
        %v2264 = vsel %vm2263, %v2259, inf
        %2265 = vmin.xlane.f32.xlu0 %v2264
        %v2266 = vpop.xlane.xlu0 %2265
        %v2267 = vcvt.f32.s32 %v2266
        %v2268 = vcvt.f32.s32 %v2262
        %v2269 = vshll.u32 %v2268, 16
        %v2270 = vadd.s32 %v2269, %v2267
        %v2271 = vsel %vm379, %v2207, 2147483647
        %v2272 = vand.u32 %v2271, 65535
        %v2273 = vshra.s32 %v2271, 16
        %v2274 = vcvt.s32.f32 %v2272
        %v2275 = vcvt.s32.f32 %v2273
        %2276 = vmin.xlane.f32.xlu0 %v2275
        %v2277 = vpop.xlane.xlu0 %2276
        %vm2278 = vcmp.eq.f32.partialorder %v2275, %v2277
        %v2279 = vsel %vm2278, %v2274, inf
        %2280 = vmin.xlane.f32.xlu0 %v2279
        %v2281 = vpop.xlane.xlu0 %2280
        %v2282 = vcvt.f32.s32 %v2281
        %v2283 = vcvt.f32.s32 %v2277
        %v2284 = vshll.u32 %v2283, 16
        %v2285 = vadd.s32 %v2284, %v2282
        %v2286 = vsel %vm379, %v2208, 2147483647
        %v2287 = vand.u32 %v2286, 65535
        %v2288 = vshra.s32 %v2286, 16
        %v2289 = vcvt.s32.f32 %v2287
        %v2290 = vcvt.s32.f32 %v2288
        %2291 = vmin.xlane.f32.xlu0 %v2290
        %v2292 = vpop.xlane.xlu0 %2291
        %vm2293 = vcmp.eq.f32.partialorder %v2290, %v2292
        %v2294 = vsel %vm2293, %v2289, inf
        %2295 = vmin.xlane.f32.xlu0 %v2294
        %v2296 = vpop.xlane.xlu0 %2295
        %v2297 = vcvt.f32.s32 %v2296
        %v2298 = vcvt.f32.s32 %v2292
        %v2299 = vshll.u32 %v2298, 16
        %v2300 = vadd.s32 %v2299, %v2297
        %v2301 = vsel %vm379, %v2209, 2147483647
        %v2302 = vand.u32 %v2301, 65535
        %v2303 = vshra.s32 %v2301, 16
        %v2304 = vcvt.s32.f32 %v2302
        %v2305 = vcvt.s32.f32 %v2303
        %2306 = vmin.xlane.f32.xlu0 %v2305
        %v2307 = vpop.xlane.xlu0 %2306
        %vm2308 = vcmp.eq.f32.partialorder %v2305, %v2307
        %v2309 = vsel %vm2308, %v2304, inf
        %2310 = vmin.xlane.f32.xlu0 %v2309
        %v2311 = vpop.xlane.xlu0 %2310
        %v2312 = vcvt.f32.s32 %v2311
        %v2313 = vcvt.f32.s32 %v2307
        %v2314 = vshll.u32 %v2313, 16
        %v2315 = vadd.s32 %v2314, %v2312
        %v2316 = vsel %vm379, %v2210, 2147483647
        %v2317 = vand.u32 %v2316, 65535
        %v2318 = vshra.s32 %v2316, 16
        %v2319 = vcvt.s32.f32 %v2317
        %v2320 = vcvt.s32.f32 %v2318
        %2321 = vmin.xlane.f32.xlu0 %v2320
        %v2322 = vpop.xlane.xlu0 %2321
        %vm2323 = vcmp.eq.f32.partialorder %v2320, %v2322
        %v2324 = vsel %vm2323, %v2319, inf
        %2325 = vmin.xlane.f32.xlu0 %v2324
        %v2326 = vpop.xlane.xlu0 %2325
        %v2327 = vcvt.f32.s32 %v2326
        %v2328 = vcvt.f32.s32 %v2322
        %v2329 = vshll.u32 %v2328, 16
        %v2330 = vadd.s32 %v2329, %v2327
        %vm2331 = vcmp.eq.s32.totalorder %v410, %v2225
        %vm2332 = vcmp.eq.s32.totalorder %v410, %v2240
        %vm2333 = vcmp.eq.s32.totalorder %v410, %v2255
        %vm2334 = vcmp.eq.s32.totalorder %v410, %v2270
        %vm2335 = vcmp.eq.s32.totalorder %v410, %v2285
        %vm2336 = vcmp.eq.s32.totalorder %v410, %v2300
        %vm2337 = vcmp.eq.s32.totalorder %v410, %v2315
        %vm2338 = vcmp.eq.s32.totalorder %v410, %v2330
        %v2339 = vsel %vm2331, -3.4028235e+38, %v2163
        %v2340 = vsel %vm2332, -3.4028235e+38, %v2164
        %v2341 = vsel %vm2333, -3.4028235e+38, %v2165
        %v2342 = vsel %vm2334, -3.4028235e+38, %v2166
        %v2343 = vsel %vm2335, -3.4028235e+38, %v2167
        %v2344 = vsel %vm2336, -3.4028235e+38, %v2168
        %v2345 = vsel %vm2337, -3.4028235e+38, %v2169
        %v2346 = vsel %vm2338, -3.4028235e+38, %v2170
        %v2347 = vsel %vm379, %v2339, -inf
        %2348 = vmax.xlane.f32.xlu0 %v2347
        %v2349 = vpop.xlane.xlu0 %2348
        %v2350 = vsel %vm379, %v2340, -inf
        %2351 = vmax.xlane.f32.xlu0 %v2350
        %v2352 = vpop.xlane.xlu0 %2351
        %v2353 = vsel %vm379, %v2341, -inf
        %2354 = vmax.xlane.f32.xlu0 %v2353
        %v2355 = vpop.xlane.xlu0 %2354
        %v2356 = vsel %vm379, %v2342, -inf
        %2357 = vmax.xlane.f32.xlu0 %v2356
        %v2358 = vpop.xlane.xlu0 %2357
        %v2359 = vsel %vm379, %v2343, -inf
        %2360 = vmax.xlane.f32.xlu0 %v2359
        %v2361 = vpop.xlane.xlu0 %2360
        %v2362 = vsel %vm379, %v2344, -inf
        %2363 = vmax.xlane.f32.xlu0 %v2362
        %v2364 = vpop.xlane.xlu0 %2363
        %v2365 = vsel %vm379, %v2345, -inf
        %2366 = vmax.xlane.f32.xlu0 %v2365
        %v2367 = vpop.xlane.xlu0 %2366
        %v2368 = vsel %vm379, %v2346, -inf
        %2369 = vmax.xlane.f32.xlu0 %v2368
        %v2370 = vpop.xlane.xlu0 %2369
        %vm2371 = vcmp.ge.f32.partialorder %v2339, %v2349
        %vm2372 = vcmp.ge.f32.partialorder %v2340, %v2352
        %vm2373 = vcmp.ge.f32.partialorder %v2341, %v2355
        %vm2374 = vcmp.ge.f32.partialorder %v2342, %v2358
        %vm2375 = vcmp.ge.f32.partialorder %v2343, %v2361
        %vm2376 = vcmp.ge.f32.partialorder %v2344, %v2364
        %vm2377 = vcmp.ge.f32.partialorder %v2345, %v2367
        %vm2378 = vcmp.ge.f32.partialorder %v2346, %v2370
        %v2379 = vsel %vm2371, %v410, 64
        %v2380 = vsel %vm2372, %v410, 64
        %v2381 = vsel %vm2373, %v410, 64
        %v2382 = vsel %vm2374, %v410, 64
        %v2383 = vsel %vm2375, %v410, 64
        %v2384 = vsel %vm2376, %v410, 64
        %v2385 = vsel %vm2377, %v410, 64
        %v2386 = vsel %vm2378, %v410, 64
        %v2387 = vsel %vm379, %v2379, 2147483647
        %v2388 = vand.u32 %v2387, 65535
        %v2389 = vshra.s32 %v2387, 16
        %v2390 = vcvt.s32.f32 %v2388
        %v2391 = vcvt.s32.f32 %v2389
        %2392 = vmin.xlane.f32.xlu0 %v2391
        %v2393 = vpop.xlane.xlu0 %2392
        %vm2394 = vcmp.eq.f32.partialorder %v2391, %v2393
        %v2395 = vsel %vm2394, %v2390, inf
        %2396 = vmin.xlane.f32.xlu0 %v2395
        %v2397 = vpop.xlane.xlu0 %2396
        %v2398 = vcvt.f32.s32 %v2397
        %v2399 = vcvt.f32.s32 %v2393
        %v2400 = vshll.u32 %v2399, 16
        %v2401 = vadd.s32 %v2400, %v2398
        %v2402 = vsel %vm379, %v2380, 2147483647
        %v2403 = vand.u32 %v2402, 65535
        %v2404 = vshra.s32 %v2402, 16
        %v2405 = vcvt.s32.f32 %v2403
        %v2406 = vcvt.s32.f32 %v2404
        %2407 = vmin.xlane.f32.xlu0 %v2406
        %v2408 = vpop.xlane.xlu0 %2407
        %vm2409 = vcmp.eq.f32.partialorder %v2406, %v2408
        %v2410 = vsel %vm2409, %v2405, inf
        %2411 = vmin.xlane.f32.xlu0 %v2410
        %v2412 = vpop.xlane.xlu0 %2411
        %v2413 = vcvt.f32.s32 %v2412
        %v2414 = vcvt.f32.s32 %v2408
        %v2415 = vshll.u32 %v2414, 16
        %v2416 = vadd.s32 %v2415, %v2413
        %v2417 = vsel %vm379, %v2381, 2147483647
        %v2418 = vand.u32 %v2417, 65535
        %v2419 = vshra.s32 %v2417, 16
        %v2420 = vcvt.s32.f32 %v2418
        %v2421 = vcvt.s32.f32 %v2419
        %2422 = vmin.xlane.f32.xlu0 %v2421
        %v2423 = vpop.xlane.xlu0 %2422
        %vm2424 = vcmp.eq.f32.partialorder %v2421, %v2423
        %v2425 = vsel %vm2424, %v2420, inf
        %2426 = vmin.xlane.f32.xlu0 %v2425
        %v2427 = vpop.xlane.xlu0 %2426
        %v2428 = vcvt.f32.s32 %v2427
        %v2429 = vcvt.f32.s32 %v2423
        %v2430 = vshll.u32 %v2429, 16
        %v2431 = vadd.s32 %v2430, %v2428
        %v2432 = vsel %vm379, %v2382, 2147483647
        %v2433 = vand.u32 %v2432, 65535
        %v2434 = vshra.s32 %v2432, 16
        %v2435 = vcvt.s32.f32 %v2433
        %v2436 = vcvt.s32.f32 %v2434
        %2437 = vmin.xlane.f32.xlu0 %v2436
        %v2438 = vpop.xlane.xlu0 %2437
        %vm2439 = vcmp.eq.f32.partialorder %v2436, %v2438
        %v2440 = vsel %vm2439, %v2435, inf
        %2441 = vmin.xlane.f32.xlu0 %v2440
        %v2442 = vpop.xlane.xlu0 %2441
        %v2443 = vcvt.f32.s32 %v2442
        %v2444 = vcvt.f32.s32 %v2438
        %v2445 = vshll.u32 %v2444, 16
        %v2446 = vadd.s32 %v2445, %v2443
        %v2447 = vsel %vm379, %v2383, 2147483647
        %v2448 = vand.u32 %v2447, 65535
        %v2449 = vshra.s32 %v2447, 16
        %v2450 = vcvt.s32.f32 %v2448
        %v2451 = vcvt.s32.f32 %v2449
        %2452 = vmin.xlane.f32.xlu0 %v2451
        %v2453 = vpop.xlane.xlu0 %2452
        %vm2454 = vcmp.eq.f32.partialorder %v2451, %v2453
        %v2455 = vsel %vm2454, %v2450, inf
        %2456 = vmin.xlane.f32.xlu0 %v2455
        %v2457 = vpop.xlane.xlu0 %2456
        %v2458 = vcvt.f32.s32 %v2457
        %v2459 = vcvt.f32.s32 %v2453
        %v2460 = vshll.u32 %v2459, 16
        %v2461 = vadd.s32 %v2460, %v2458
        %v2462 = vsel %vm379, %v2384, 2147483647
        %v2463 = vand.u32 %v2462, 65535
        %v2464 = vshra.s32 %v2462, 16
        %v2465 = vcvt.s32.f32 %v2463
        %v2466 = vcvt.s32.f32 %v2464
        %2467 = vmin.xlane.f32.xlu0 %v2466
        %v2468 = vpop.xlane.xlu0 %2467
        %vm2469 = vcmp.eq.f32.partialorder %v2466, %v2468
        %v2470 = vsel %vm2469, %v2465, inf
        %2471 = vmin.xlane.f32.xlu0 %v2470
        %v2472 = vpop.xlane.xlu0 %2471
        %v2473 = vcvt.f32.s32 %v2472
        %v2474 = vcvt.f32.s32 %v2468
        %v2475 = vshll.u32 %v2474, 16
        %v2476 = vadd.s32 %v2475, %v2473
        %v2477 = vsel %vm379, %v2385, 2147483647
        %v2478 = vand.u32 %v2477, 65535
        %v2479 = vshra.s32 %v2477, 16
        %v2480 = vcvt.s32.f32 %v2478
        %v2481 = vcvt.s32.f32 %v2479
        %2482 = vmin.xlane.f32.xlu0 %v2481
        %v2483 = vpop.xlane.xlu0 %2482
        %vm2484 = vcmp.eq.f32.partialorder %v2481, %v2483
        %v2485 = vsel %vm2484, %v2480, inf
        %2486 = vmin.xlane.f32.xlu0 %v2485
        %v2487 = vpop.xlane.xlu0 %2486
        %v2488 = vcvt.f32.s32 %v2487
        %v2489 = vcvt.f32.s32 %v2483
        %v2490 = vshll.u32 %v2489, 16
        %v2491 = vadd.s32 %v2490, %v2488
        %v2492 = vsel %vm379, %v2386, 2147483647
        %v2493 = vand.u32 %v2492, 65535
        %v2494 = vshra.s32 %v2492, 16
        %v2495 = vcvt.s32.f32 %v2493
        %v2496 = vcvt.s32.f32 %v2494
        %2497 = vmin.xlane.f32.xlu0 %v2496
        %v2498 = vpop.xlane.xlu0 %2497
        %vm2499 = vcmp.eq.f32.partialorder %v2496, %v2498
        %v2500 = vsel %vm2499, %v2495, inf
        %2501 = vmin.xlane.f32.xlu0 %v2500
        %v2502 = vpop.xlane.xlu0 %2501
        %v2503 = vcvt.f32.s32 %v2502
        %v2504 = vcvt.f32.s32 %v2498
        %v2505 = vshll.u32 %v2504, 16
        %v2506 = vadd.s32 %v2505, %v2503
        %vm2507 = vcmp.eq.s32.totalorder %v410, %v2401
        %vm2508 = vcmp.eq.s32.totalorder %v410, %v2416
        %vm2509 = vcmp.eq.s32.totalorder %v410, %v2431
        %vm2510 = vcmp.eq.s32.totalorder %v410, %v2446
        %vm2511 = vcmp.eq.s32.totalorder %v410, %v2461
        %vm2512 = vcmp.eq.s32.totalorder %v410, %v2476
        %vm2513 = vcmp.eq.s32.totalorder %v410, %v2491
        %vm2514 = vcmp.eq.s32.totalorder %v410, %v2506
        %v2515 = vsel %vm2507, -3.4028235e+38, %v2339
        %v2516 = vsel %vm2508, -3.4028235e+38, %v2340
        %v2517 = vsel %vm2509, -3.4028235e+38, %v2341
        %v2518 = vsel %vm2510, -3.4028235e+38, %v2342
        %v2519 = vsel %vm2511, -3.4028235e+38, %v2343
        %v2520 = vsel %vm2512, -3.4028235e+38, %v2344
        %v2521 = vsel %vm2513, -3.4028235e+38, %v2345
        %v2522 = vsel %vm2514, -3.4028235e+38, %v2346
        %v2523 = vsel %vm379, %v2515, -inf
        %2524 = vmax.xlane.f32.xlu0 %v2523
        %v2525 = vpop.xlane.xlu0 %2524
        %v2526 = vsel %vm379, %v2516, -inf
        %2527 = vmax.xlane.f32.xlu0 %v2526
        %v2528 = vpop.xlane.xlu0 %2527
        %v2529 = vsel %vm379, %v2517, -inf
        %2530 = vmax.xlane.f32.xlu0 %v2529
        %v2531 = vpop.xlane.xlu0 %2530
        %v2532 = vsel %vm379, %v2518, -inf
        %2533 = vmax.xlane.f32.xlu0 %v2532
        %v2534 = vpop.xlane.xlu0 %2533
        %v2535 = vsel %vm379, %v2519, -inf
        %2536 = vmax.xlane.f32.xlu0 %v2535
        %v2537 = vpop.xlane.xlu0 %2536
        %v2538 = vsel %vm379, %v2520, -inf
        %2539 = vmax.xlane.f32.xlu0 %v2538
        %v2540 = vpop.xlane.xlu0 %2539
        %v2541 = vsel %vm379, %v2521, -inf
        %2542 = vmax.xlane.f32.xlu0 %v2541
        %v2543 = vpop.xlane.xlu0 %2542
        %v2544 = vsel %vm379, %v2522, -inf
        %2545 = vmax.xlane.f32.xlu0 %v2544
        %v2546 = vpop.xlane.xlu0 %2545
        %vm2547 = vcmp.ge.f32.partialorder %v2515, %v2525
        %vm2548 = vcmp.ge.f32.partialorder %v2516, %v2528
        %vm2549 = vcmp.ge.f32.partialorder %v2517, %v2531
        %vm2550 = vcmp.ge.f32.partialorder %v2518, %v2534
        %vm2551 = vcmp.ge.f32.partialorder %v2519, %v2537
        %vm2552 = vcmp.ge.f32.partialorder %v2520, %v2540
        %vm2553 = vcmp.ge.f32.partialorder %v2521, %v2543
        %vm2554 = vcmp.ge.f32.partialorder %v2522, %v2546
        %v2555 = vsel %vm2547, %v410, 64
        %v2556 = vsel %vm2548, %v410, 64
        %v2557 = vsel %vm2549, %v410, 64
        %v2558 = vsel %vm2550, %v410, 64
        %v2559 = vsel %vm2551, %v410, 64
        %v2560 = vsel %vm2552, %v410, 64
        %v2561 = vsel %vm2553, %v410, 64
        %v2562 = vsel %vm2554, %v410, 64
        %v2563 = vsel %vm379, %v2555, 2147483647
        %v2564 = vand.u32 %v2563, 65535
        %v2565 = vshra.s32 %v2563, 16
        %v2566 = vcvt.s32.f32 %v2564
        %v2567 = vcvt.s32.f32 %v2565
        %2568 = vmin.xlane.f32.xlu0 %v2567
        %v2569 = vpop.xlane.xlu0 %2568
        %vm2570 = vcmp.eq.f32.partialorder %v2567, %v2569
        %v2571 = vsel %vm2570, %v2566, inf
        %2572 = vmin.xlane.f32.xlu0 %v2571
        %v2573 = vpop.xlane.xlu0 %2572
        %v2574 = vcvt.f32.s32 %v2573
        %v2575 = vcvt.f32.s32 %v2569
        %v2576 = vshll.u32 %v2575, 16
        %v2577 = vadd.s32 %v2576, %v2574
        %v2578 = vsel %vm379, %v2556, 2147483647
        %v2579 = vand.u32 %v2578, 65535
        %v2580 = vshra.s32 %v2578, 16
        %v2581 = vcvt.s32.f32 %v2579
        %v2582 = vcvt.s32.f32 %v2580
        %2583 = vmin.xlane.f32.xlu0 %v2582
        %v2584 = vpop.xlane.xlu0 %2583
        %vm2585 = vcmp.eq.f32.partialorder %v2582, %v2584
        %v2586 = vsel %vm2585, %v2581, inf
        %2587 = vmin.xlane.f32.xlu0 %v2586
        %v2588 = vpop.xlane.xlu0 %2587
        %v2589 = vcvt.f32.s32 %v2588
        %v2590 = vcvt.f32.s32 %v2584
        %v2591 = vshll.u32 %v2590, 16
        %v2592 = vadd.s32 %v2591, %v2589
        %v2593 = vsel %vm379, %v2557, 2147483647
        %v2594 = vand.u32 %v2593, 65535
        %v2595 = vshra.s32 %v2593, 16
        %v2596 = vcvt.s32.f32 %v2594
        %v2597 = vcvt.s32.f32 %v2595
        %2598 = vmin.xlane.f32.xlu0 %v2597
        %v2599 = vpop.xlane.xlu0 %2598
        %vm2600 = vcmp.eq.f32.partialorder %v2597, %v2599
        %v2601 = vsel %vm2600, %v2596, inf
        %2602 = vmin.xlane.f32.xlu0 %v2601
        %v2603 = vpop.xlane.xlu0 %2602
        %v2604 = vcvt.f32.s32 %v2603
        %v2605 = vcvt.f32.s32 %v2599
        %v2606 = vshll.u32 %v2605, 16
        %v2607 = vadd.s32 %v2606, %v2604
        %v2608 = vsel %vm379, %v2558, 2147483647
        %v2609 = vand.u32 %v2608, 65535
        %v2610 = vshra.s32 %v2608, 16
        %v2611 = vcvt.s32.f32 %v2609
        %v2612 = vcvt.s32.f32 %v2610
        %2613 = vmin.xlane.f32.xlu0 %v2612
        %v2614 = vpop.xlane.xlu0 %2613
        %vm2615 = vcmp.eq.f32.partialorder %v2612, %v2614
        %v2616 = vsel %vm2615, %v2611, inf
        %2617 = vmin.xlane.f32.xlu0 %v2616
        %v2618 = vpop.xlane.xlu0 %2617
        %v2619 = vcvt.f32.s32 %v2618
        %v2620 = vcvt.f32.s32 %v2614
        %v2621 = vshll.u32 %v2620, 16
        %v2622 = vadd.s32 %v2621, %v2619
        %v2623 = vsel %vm379, %v2559, 2147483647
        %v2624 = vand.u32 %v2623, 65535
        %v2625 = vshra.s32 %v2623, 16
        %v2626 = vcvt.s32.f32 %v2624
        %v2627 = vcvt.s32.f32 %v2625
        %2628 = vmin.xlane.f32.xlu0 %v2627
        %v2629 = vpop.xlane.xlu0 %2628
        %vm2630 = vcmp.eq.f32.partialorder %v2627, %v2629
        %v2631 = vsel %vm2630, %v2626, inf
        %2632 = vmin.xlane.f32.xlu0 %v2631
        %v2633 = vpop.xlane.xlu0 %2632
        %v2634 = vcvt.f32.s32 %v2633
        %v2635 = vcvt.f32.s32 %v2629
        %v2636 = vshll.u32 %v2635, 16
        %v2637 = vadd.s32 %v2636, %v2634
        %v2638 = vsel %vm379, %v2560, 2147483647
        %v2639 = vand.u32 %v2638, 65535
        %v2640 = vshra.s32 %v2638, 16
        %v2641 = vcvt.s32.f32 %v2639
        %v2642 = vcvt.s32.f32 %v2640
        %2643 = vmin.xlane.f32.xlu0 %v2642
        %v2644 = vpop.xlane.xlu0 %2643
        %vm2645 = vcmp.eq.f32.partialorder %v2642, %v2644
        %v2646 = vsel %vm2645, %v2641, inf
        %2647 = vmin.xlane.f32.xlu0 %v2646
        %v2648 = vpop.xlane.xlu0 %2647
        %v2649 = vcvt.f32.s32 %v2648
        %v2650 = vcvt.f32.s32 %v2644
        %v2651 = vshll.u32 %v2650, 16
        %v2652 = vadd.s32 %v2651, %v2649
        %v2653 = vsel %vm379, %v2561, 2147483647
        %v2654 = vand.u32 %v2653, 65535
        %v2655 = vshra.s32 %v2653, 16
        %v2656 = vcvt.s32.f32 %v2654
        %v2657 = vcvt.s32.f32 %v2655
        %2658 = vmin.xlane.f32.xlu0 %v2657
        %v2659 = vpop.xlane.xlu0 %2658
        %vm2660 = vcmp.eq.f32.partialorder %v2657, %v2659
        %v2661 = vsel %vm2660, %v2656, inf
        %2662 = vmin.xlane.f32.xlu0 %v2661
        %v2663 = vpop.xlane.xlu0 %2662
        %v2664 = vcvt.f32.s32 %v2663
        %v2665 = vcvt.f32.s32 %v2659
        %v2666 = vshll.u32 %v2665, 16
        %v2667 = vadd.s32 %v2666, %v2664
        %v2668 = vsel %vm379, %v2562, 2147483647
        %v2669 = vand.u32 %v2668, 65535
        %v2670 = vshra.s32 %v2668, 16
        %v2671 = vcvt.s32.f32 %v2669
        %v2672 = vcvt.s32.f32 %v2670
        %2673 = vmin.xlane.f32.xlu0 %v2672
        %v2674 = vpop.xlane.xlu0 %2673
        %vm2675 = vcmp.eq.f32.partialorder %v2672, %v2674
        %v2676 = vsel %vm2675, %v2671, inf
        %2677 = vmin.xlane.f32.xlu0 %v2676
        %v2678 = vpop.xlane.xlu0 %2677
        %v2679 = vcvt.f32.s32 %v2678
        %v2680 = vcvt.f32.s32 %v2674
        %v2681 = vshll.u32 %v2680, 16
        %v2682 = vadd.s32 %v2681, %v2679
        %vm2683 = vcmp.eq.s32.totalorder %v410, %v2577
        %vm2684 = vcmp.eq.s32.totalorder %v410, %v2592
        %vm2685 = vcmp.eq.s32.totalorder %v410, %v2607
        %vm2686 = vcmp.eq.s32.totalorder %v410, %v2622
        %vm2687 = vcmp.eq.s32.totalorder %v410, %v2637
        %vm2688 = vcmp.eq.s32.totalorder %v410, %v2652
        %vm2689 = vcmp.eq.s32.totalorder %v410, %v2667
        %vm2690 = vcmp.eq.s32.totalorder %v410, %v2682
        %v2691 = vsel %vm2683, -3.4028235e+38, %v2515
        %v2692 = vsel %vm2684, -3.4028235e+38, %v2516
        %v2693 = vsel %vm2685, -3.4028235e+38, %v2517
        %v2694 = vsel %vm2686, -3.4028235e+38, %v2518
        %v2695 = vsel %vm2687, -3.4028235e+38, %v2519
        %v2696 = vsel %vm2688, -3.4028235e+38, %v2520
        %v2697 = vsel %vm2689, -3.4028235e+38, %v2521
        %v2698 = vsel %vm2690, -3.4028235e+38, %v2522
        %v2699 = vsel %vm379, %v2691, -inf
        %2700 = vmax.xlane.f32.xlu0 %v2699
        %v2701 = vpop.xlane.xlu0 %2700
        %v2702 = vsel %vm379, %v2692, -inf
        %2703 = vmax.xlane.f32.xlu0 %v2702
        %v2704 = vpop.xlane.xlu0 %2703
        %v2705 = vsel %vm379, %v2693, -inf
        %2706 = vmax.xlane.f32.xlu0 %v2705
        %v2707 = vpop.xlane.xlu0 %2706
        %v2708 = vsel %vm379, %v2694, -inf
        %2709 = vmax.xlane.f32.xlu0 %v2708
        %v2710 = vpop.xlane.xlu0 %2709
        %v2711 = vsel %vm379, %v2695, -inf
        %2712 = vmax.xlane.f32.xlu0 %v2711
        %v2713 = vpop.xlane.xlu0 %2712
        %v2714 = vsel %vm379, %v2696, -inf
        %2715 = vmax.xlane.f32.xlu0 %v2714
        %v2716 = vpop.xlane.xlu0 %2715
        %v2717 = vsel %vm379, %v2697, -inf
        %2718 = vmax.xlane.f32.xlu0 %v2717
        %v2719 = vpop.xlane.xlu0 %2718
        %v2720 = vsel %vm379, %v2698, -inf
        %2721 = vmax.xlane.f32.xlu0 %v2720
        %v2722 = vpop.xlane.xlu0 %2721
        %vm2723 = vcmp.ge.f32.partialorder %v2691, %v2701
        %vm2724 = vcmp.ge.f32.partialorder %v2692, %v2704
        %vm2725 = vcmp.ge.f32.partialorder %v2693, %v2707
        %vm2726 = vcmp.ge.f32.partialorder %v2694, %v2710
        %vm2727 = vcmp.ge.f32.partialorder %v2695, %v2713
        %vm2728 = vcmp.ge.f32.partialorder %v2696, %v2716
        %vm2729 = vcmp.ge.f32.partialorder %v2697, %v2719
        %vm2730 = vcmp.ge.f32.partialorder %v2698, %v2722
        %v2731 = vsel %vm2723, %v410, 64
        %v2732 = vsel %vm2724, %v410, 64
        %v2733 = vsel %vm2725, %v410, 64
        %v2734 = vsel %vm2726, %v410, 64
        %v2735 = vsel %vm2727, %v410, 64
        %v2736 = vsel %vm2728, %v410, 64
        %v2737 = vsel %vm2729, %v410, 64
        %v2738 = vsel %vm2730, %v410, 64
        %v2739 = vsel %vm379, %v2731, 2147483647
        %v2740 = vand.u32 %v2739, 65535
        %v2741 = vshra.s32 %v2739, 16
        %v2742 = vcvt.s32.f32 %v2740
        %v2743 = vcvt.s32.f32 %v2741
        %2744 = vmin.xlane.f32.xlu0 %v2743
        %v2745 = vpop.xlane.xlu0 %2744
        %vm2746 = vcmp.eq.f32.partialorder %v2743, %v2745
        %v2747 = vsel %vm2746, %v2742, inf
        %2748 = vmin.xlane.f32.xlu0 %v2747
        %v2749 = vpop.xlane.xlu0 %2748
        %v2750 = vcvt.f32.s32 %v2749
        %v2751 = vcvt.f32.s32 %v2745
        %v2752 = vshll.u32 %v2751, 16
        %v2753 = vadd.s32 %v2752, %v2750
        %v2754 = vsel %vm379, %v2732, 2147483647
        %v2755 = vand.u32 %v2754, 65535
        %v2756 = vshra.s32 %v2754, 16
        %v2757 = vcvt.s32.f32 %v2755
        %v2758 = vcvt.s32.f32 %v2756
        %2759 = vmin.xlane.f32.xlu0 %v2758
        %v2760 = vpop.xlane.xlu0 %2759
        %vm2761 = vcmp.eq.f32.partialorder %v2758, %v2760
        %v2762 = vsel %vm2761, %v2757, inf
        %2763 = vmin.xlane.f32.xlu0 %v2762
        %v2764 = vpop.xlane.xlu0 %2763
        %v2765 = vcvt.f32.s32 %v2764
        %v2766 = vcvt.f32.s32 %v2760
        %v2767 = vshll.u32 %v2766, 16
        %v2768 = vadd.s32 %v2767, %v2765
        %v2769 = vsel %vm379, %v2733, 2147483647
        %v2770 = vand.u32 %v2769, 65535
        %v2771 = vshra.s32 %v2769, 16
        %v2772 = vcvt.s32.f32 %v2770
        %v2773 = vcvt.s32.f32 %v2771
        %2774 = vmin.xlane.f32.xlu0 %v2773
        %v2775 = vpop.xlane.xlu0 %2774
        %vm2776 = vcmp.eq.f32.partialorder %v2773, %v2775
        %v2777 = vsel %vm2776, %v2772, inf
        %2778 = vmin.xlane.f32.xlu0 %v2777
        %v2779 = vpop.xlane.xlu0 %2778
        %v2780 = vcvt.f32.s32 %v2779
        %v2781 = vcvt.f32.s32 %v2775
        %v2782 = vshll.u32 %v2781, 16
        %v2783 = vadd.s32 %v2782, %v2780
        %v2784 = vsel %vm379, %v2734, 2147483647
        %v2785 = vand.u32 %v2784, 65535
        %v2786 = vshra.s32 %v2784, 16
        %v2787 = vcvt.s32.f32 %v2785
        %v2788 = vcvt.s32.f32 %v2786
        %2789 = vmin.xlane.f32.xlu0 %v2788
        %v2790 = vpop.xlane.xlu0 %2789
        %vm2791 = vcmp.eq.f32.partialorder %v2788, %v2790
        %v2792 = vsel %vm2791, %v2787, inf
        %2793 = vmin.xlane.f32.xlu0 %v2792
        %v2794 = vpop.xlane.xlu0 %2793
        %v2795 = vcvt.f32.s32 %v2794
        %v2796 = vcvt.f32.s32 %v2790
        %v2797 = vshll.u32 %v2796, 16
        %v2798 = vadd.s32 %v2797, %v2795
        %v2799 = vsel %vm379, %v2735, 2147483647
        %v2800 = vand.u32 %v2799, 65535
        %v2801 = vshra.s32 %v2799, 16
        %v2802 = vcvt.s32.f32 %v2800
        %v2803 = vcvt.s32.f32 %v2801
        %2804 = vmin.xlane.f32.xlu0 %v2803
        %v2805 = vpop.xlane.xlu0 %2804
        %vm2806 = vcmp.eq.f32.partialorder %v2803, %v2805
        %v2807 = vsel %vm2806, %v2802, inf
        %2808 = vmin.xlane.f32.xlu0 %v2807
        %v2809 = vpop.xlane.xlu0 %2808
        %v2810 = vcvt.f32.s32 %v2809
        %v2811 = vcvt.f32.s32 %v2805
        %v2812 = vshll.u32 %v2811, 16
        %v2813 = vadd.s32 %v2812, %v2810
        %v2814 = vsel %vm379, %v2736, 2147483647
        %v2815 = vand.u32 %v2814, 65535
        %v2816 = vshra.s32 %v2814, 16
        %v2817 = vcvt.s32.f32 %v2815
        %v2818 = vcvt.s32.f32 %v2816
        %2819 = vmin.xlane.f32.xlu0 %v2818
        %v2820 = vpop.xlane.xlu0 %2819
        %vm2821 = vcmp.eq.f32.partialorder %v2818, %v2820
        %v2822 = vsel %vm2821, %v2817, inf
        %2823 = vmin.xlane.f32.xlu0 %v2822
        %v2824 = vpop.xlane.xlu0 %2823
        %v2825 = vcvt.f32.s32 %v2824
        %v2826 = vcvt.f32.s32 %v2820
        %v2827 = vshll.u32 %v2826, 16
        %v2828 = vadd.s32 %v2827, %v2825
        %v2829 = vsel %vm379, %v2737, 2147483647
        %v2830 = vand.u32 %v2829, 65535
        %v2831 = vshra.s32 %v2829, 16
        %v2832 = vcvt.s32.f32 %v2830
        %v2833 = vcvt.s32.f32 %v2831
        %2834 = vmin.xlane.f32.xlu0 %v2833
        %v2835 = vpop.xlane.xlu0 %2834
        %vm2836 = vcmp.eq.f32.partialorder %v2833, %v2835
        %v2837 = vsel %vm2836, %v2832, inf
        %2838 = vmin.xlane.f32.xlu0 %v2837
        %v2839 = vpop.xlane.xlu0 %2838
        %v2840 = vcvt.f32.s32 %v2839
        %v2841 = vcvt.f32.s32 %v2835
        %v2842 = vshll.u32 %v2841, 16
        %v2843 = vadd.s32 %v2842, %v2840
        %v2844 = vsel %vm379, %v2738, 2147483647
        %v2845 = vand.u32 %v2844, 65535
        %v2846 = vshra.s32 %v2844, 16
        %v2847 = vcvt.s32.f32 %v2845
        %v2848 = vcvt.s32.f32 %v2846
        %2849 = vmin.xlane.f32.xlu0 %v2848
        %v2850 = vpop.xlane.xlu0 %2849
        %vm2851 = vcmp.eq.f32.partialorder %v2848, %v2850
        %v2852 = vsel %vm2851, %v2847, inf
        %2853 = vmin.xlane.f32.xlu0 %v2852
        %v2854 = vpop.xlane.xlu0 %2853
        %v2855 = vcvt.f32.s32 %v2854
        %v2856 = vcvt.f32.s32 %v2850
        %v2857 = vshll.u32 %v2856, 16
        %v2858 = vadd.s32 %v2857, %v2855
        %vm2859 = vcmp.eq.s32.totalorder %v410, %v2753
        %vm2860 = vcmp.eq.s32.totalorder %v410, %v2768
        %vm2861 = vcmp.eq.s32.totalorder %v410, %v2783
        %vm2862 = vcmp.eq.s32.totalorder %v410, %v2798
        %vm2863 = vcmp.eq.s32.totalorder %v410, %v2813
        %vm2864 = vcmp.eq.s32.totalorder %v410, %v2828
        %vm2865 = vcmp.eq.s32.totalorder %v410, %v2843
        %vm2866 = vcmp.eq.s32.totalorder %v410, %v2858
        %v2867 = vsel %vm2859, -3.4028235e+38, %v2691
        %v2868 = vsel %vm2860, -3.4028235e+38, %v2692
        %v2869 = vsel %vm2861, -3.4028235e+38, %v2693
        %v2870 = vsel %vm2862, -3.4028235e+38, %v2694
        %v2871 = vsel %vm2863, -3.4028235e+38, %v2695
        %v2872 = vsel %vm2864, -3.4028235e+38, %v2696
        %v2873 = vsel %vm2865, -3.4028235e+38, %v2697
        %v2874 = vsel %vm2866, -3.4028235e+38, %v2698
        %v2875 = vsel %vm379, %v2867, -inf
        %2876 = vmax.xlane.f32.xlu0 %v2875
        %v2877 = vpop.xlane.xlu0 %2876
        %v2878 = vsel %vm379, %v2868, -inf
        %2879 = vmax.xlane.f32.xlu0 %v2878
        %v2880 = vpop.xlane.xlu0 %2879
        %v2881 = vsel %vm379, %v2869, -inf
        %2882 = vmax.xlane.f32.xlu0 %v2881
        %v2883 = vpop.xlane.xlu0 %2882
        %v2884 = vsel %vm379, %v2870, -inf
        %2885 = vmax.xlane.f32.xlu0 %v2884
        %v2886 = vpop.xlane.xlu0 %2885
        %v2887 = vsel %vm379, %v2871, -inf
        %2888 = vmax.xlane.f32.xlu0 %v2887
        %v2889 = vpop.xlane.xlu0 %2888
        %v2890 = vsel %vm379, %v2872, -inf
        %2891 = vmax.xlane.f32.xlu0 %v2890
        %v2892 = vpop.xlane.xlu0 %2891
        %v2893 = vsel %vm379, %v2873, -inf
        %2894 = vmax.xlane.f32.xlu0 %v2893
        %v2895 = vpop.xlane.xlu0 %2894
        %v2896 = vsel %vm379, %v2874, -inf
        %2897 = vmax.xlane.f32.xlu0 %v2896
        %v2898 = vpop.xlane.xlu0 %2897
        %vm2899 = vcmp.ge.f32.partialorder %v2867, %v2877
        %vm2900 = vcmp.ge.f32.partialorder %v2868, %v2880
        %vm2901 = vcmp.ge.f32.partialorder %v2869, %v2883
        %vm2902 = vcmp.ge.f32.partialorder %v2870, %v2886
        %vm2903 = vcmp.ge.f32.partialorder %v2871, %v2889
        %vm2904 = vcmp.ge.f32.partialorder %v2872, %v2892
        %vm2905 = vcmp.ge.f32.partialorder %v2873, %v2895
        %vm2906 = vcmp.ge.f32.partialorder %v2874, %v2898
        %v2907 = vsel %vm2899, %v410, 64
        %v2908 = vsel %vm2900, %v410, 64
        %v2909 = vsel %vm2901, %v410, 64
        %v2910 = vsel %vm2902, %v410, 64
        %v2911 = vsel %vm2903, %v410, 64
        %v2912 = vsel %vm2904, %v410, 64
        %v2913 = vsel %vm2905, %v410, 64
        %v2914 = vsel %vm2906, %v410, 64
        %v2915 = vsel %vm379, %v2907, 2147483647
        %v2916 = vand.u32 %v2915, 65535
        %v2917 = vshra.s32 %v2915, 16
        %v2918 = vcvt.s32.f32 %v2916
        %v2919 = vcvt.s32.f32 %v2917
        %2920 = vmin.xlane.f32.xlu0 %v2919
        %v2921 = vpop.xlane.xlu0 %2920
        %vm2922 = vcmp.eq.f32.partialorder %v2919, %v2921
        %v2923 = vsel %vm2922, %v2918, inf
        %2924 = vmin.xlane.f32.xlu0 %v2923
        %v2925 = vpop.xlane.xlu0 %2924
        %v2926 = vcvt.f32.s32 %v2925
        %v2927 = vcvt.f32.s32 %v2921
        %v2928 = vshll.u32 %v2927, 16
        %v2929 = vadd.s32 %v2928, %v2926
        %v2930 = vsel %vm379, %v2908, 2147483647
        %v2931 = vand.u32 %v2930, 65535
        %v2932 = vshra.s32 %v2930, 16
        %v2933 = vcvt.s32.f32 %v2931
        %v2934 = vcvt.s32.f32 %v2932
        %2935 = vmin.xlane.f32.xlu0 %v2934
        %v2936 = vpop.xlane.xlu0 %2935
        %vm2937 = vcmp.eq.f32.partialorder %v2934, %v2936
        %v2938 = vsel %vm2937, %v2933, inf
        %2939 = vmin.xlane.f32.xlu0 %v2938
        %v2940 = vpop.xlane.xlu0 %2939
        %v2941 = vcvt.f32.s32 %v2940
        %v2942 = vcvt.f32.s32 %v2936
        %v2943 = vshll.u32 %v2942, 16
        %v2944 = vadd.s32 %v2943, %v2941
        %v2945 = vsel %vm379, %v2909, 2147483647
        %v2946 = vand.u32 %v2945, 65535
        %v2947 = vshra.s32 %v2945, 16
        %v2948 = vcvt.s32.f32 %v2946
        %v2949 = vcvt.s32.f32 %v2947
        %2950 = vmin.xlane.f32.xlu0 %v2949
        %v2951 = vpop.xlane.xlu0 %2950
        %vm2952 = vcmp.eq.f32.partialorder %v2949, %v2951
        %v2953 = vsel %vm2952, %v2948, inf
        %2954 = vmin.xlane.f32.xlu0 %v2953
        %v2955 = vpop.xlane.xlu0 %2954
        %v2956 = vcvt.f32.s32 %v2955
        %v2957 = vcvt.f32.s32 %v2951
        %v2958 = vshll.u32 %v2957, 16
        %v2959 = vadd.s32 %v2958, %v2956
        %v2960 = vsel %vm379, %v2910, 2147483647
        %v2961 = vand.u32 %v2960, 65535
        %v2962 = vshra.s32 %v2960, 16
        %v2963 = vcvt.s32.f32 %v2961
        %v2964 = vcvt.s32.f32 %v2962
        %2965 = vmin.xlane.f32.xlu0 %v2964
        %v2966 = vpop.xlane.xlu0 %2965
        %vm2967 = vcmp.eq.f32.partialorder %v2964, %v2966
        %v2968 = vsel %vm2967, %v2963, inf
        %2969 = vmin.xlane.f32.xlu0 %v2968
        %v2970 = vpop.xlane.xlu0 %2969
        %v2971 = vcvt.f32.s32 %v2970
        %v2972 = vcvt.f32.s32 %v2966
        %v2973 = vshll.u32 %v2972, 16
        %v2974 = vadd.s32 %v2973, %v2971
        %v2975 = vsel %vm379, %v2911, 2147483647
        %v2976 = vand.u32 %v2975, 65535
        %v2977 = vshra.s32 %v2975, 16
        %v2978 = vcvt.s32.f32 %v2976
        %v2979 = vcvt.s32.f32 %v2977
        %2980 = vmin.xlane.f32.xlu0 %v2979
        %v2981 = vpop.xlane.xlu0 %2980
        %vm2982 = vcmp.eq.f32.partialorder %v2979, %v2981
        %v2983 = vsel %vm2982, %v2978, inf
        %2984 = vmin.xlane.f32.xlu0 %v2983
        %v2985 = vpop.xlane.xlu0 %2984
        %v2986 = vcvt.f32.s32 %v2985
        %v2987 = vcvt.f32.s32 %v2981
        %v2988 = vshll.u32 %v2987, 16
        %v2989 = vadd.s32 %v2988, %v2986
        %v2990 = vsel %vm379, %v2912, 2147483647
        %v2991 = vand.u32 %v2990, 65535
        %v2992 = vshra.s32 %v2990, 16
        %v2993 = vcvt.s32.f32 %v2991
        %v2994 = vcvt.s32.f32 %v2992
        %2995 = vmin.xlane.f32.xlu0 %v2994
        %v2996 = vpop.xlane.xlu0 %2995
        %vm2997 = vcmp.eq.f32.partialorder %v2994, %v2996
        %v2998 = vsel %vm2997, %v2993, inf
        %2999 = vmin.xlane.f32.xlu0 %v2998
        %v3000 = vpop.xlane.xlu0 %2999
        %v3001 = vcvt.f32.s32 %v3000
        %v3002 = vcvt.f32.s32 %v2996
        %v3003 = vshll.u32 %v3002, 16
        %v3004 = vadd.s32 %v3003, %v3001
        %v3005 = vsel %vm379, %v2913, 2147483647
        %v3006 = vand.u32 %v3005, 65535
        %v3007 = vshra.s32 %v3005, 16
        %v3008 = vcvt.s32.f32 %v3006
        %v3009 = vcvt.s32.f32 %v3007
        %3010 = vmin.xlane.f32.xlu0 %v3009
        %v3011 = vpop.xlane.xlu0 %3010
        %vm3012 = vcmp.eq.f32.partialorder %v3009, %v3011
        %v3013 = vsel %vm3012, %v3008, inf
        %3014 = vmin.xlane.f32.xlu0 %v3013
        %v3015 = vpop.xlane.xlu0 %3014
        %v3016 = vcvt.f32.s32 %v3015
        %v3017 = vcvt.f32.s32 %v3011
        %v3018 = vshll.u32 %v3017, 16
        %v3019 = vadd.s32 %v3018, %v3016
        %v3020 = vsel %vm379, %v2914, 2147483647
        %v3021 = vand.u32 %v3020, 65535
        %v3022 = vshra.s32 %v3020, 16
        %v3023 = vcvt.s32.f32 %v3021
        %v3024 = vcvt.s32.f32 %v3022
        %3025 = vmin.xlane.f32.xlu0 %v3024
        %v3026 = vpop.xlane.xlu0 %3025
        %vm3027 = vcmp.eq.f32.partialorder %v3024, %v3026
        %v3028 = vsel %vm3027, %v3023, inf
        %3029 = vmin.xlane.f32.xlu0 %v3028
        %v3030 = vpop.xlane.xlu0 %3029
        %v3031 = vcvt.f32.s32 %v3030
        %v3032 = vcvt.f32.s32 %v3026
        %v3033 = vshll.u32 %v3032, 16
        %v3034 = vadd.s32 %v3033, %v3031
        %vm3035 = vcmp.eq.s32.totalorder %v410, %v2929
        %vm3036 = vcmp.eq.s32.totalorder %v410, %v2944
        %vm3037 = vcmp.eq.s32.totalorder %v410, %v2959
        %vm3038 = vcmp.eq.s32.totalorder %v410, %v2974
        %vm3039 = vcmp.eq.s32.totalorder %v410, %v2989
        %vm3040 = vcmp.eq.s32.totalorder %v410, %v3004
        %vm3041 = vcmp.eq.s32.totalorder %v410, %v3019
        %vm3042 = vcmp.eq.s32.totalorder %v410, %v3034
        %v3043 = vsel %vm3035, -3.4028235e+38, %v2867
        %v3044 = vsel %vm3036, -3.4028235e+38, %v2868
        %v3045 = vsel %vm3037, -3.4028235e+38, %v2869
        %v3046 = vsel %vm3038, -3.4028235e+38, %v2870
        %v3047 = vsel %vm3039, -3.4028235e+38, %v2871
        %v3048 = vsel %vm3040, -3.4028235e+38, %v2872
        %v3049 = vsel %vm3041, -3.4028235e+38, %v2873
        %v3050 = vsel %vm3042, -3.4028235e+38, %v2874
        %v3051 = vsel %vm379, %v3043, -inf
        %3052 = vmax.xlane.f32.xlu0 %v3051
        %v3053 = vpop.xlane.xlu0 %3052
        %v3054 = vsel %vm379, %v3044, -inf
        %3055 = vmax.xlane.f32.xlu0 %v3054
        %v3056 = vpop.xlane.xlu0 %3055
        %v3057 = vsel %vm379, %v3045, -inf
        %3058 = vmax.xlane.f32.xlu0 %v3057
        %v3059 = vpop.xlane.xlu0 %3058
        %v3060 = vsel %vm379, %v3046, -inf
        %3061 = vmax.xlane.f32.xlu0 %v3060
        %v3062 = vpop.xlane.xlu0 %3061
        %v3063 = vsel %vm379, %v3047, -inf
        %3064 = vmax.xlane.f32.xlu0 %v3063
        %v3065 = vpop.xlane.xlu0 %3064
        %v3066 = vsel %vm379, %v3048, -inf
        %3067 = vmax.xlane.f32.xlu0 %v3066
        %v3068 = vpop.xlane.xlu0 %3067
        %v3069 = vsel %vm379, %v3049, -inf
        %3070 = vmax.xlane.f32.xlu0 %v3069
        %v3071 = vpop.xlane.xlu0 %3070
        %v3072 = vsel %vm379, %v3050, -inf
        %3073 = vmax.xlane.f32.xlu0 %v3072
        %v3074 = vpop.xlane.xlu0 %3073
        %vm3075 = vcmp.ge.f32.partialorder %v3043, %v3053
        %vm3076 = vcmp.ge.f32.partialorder %v3044, %v3056
        %vm3077 = vcmp.ge.f32.partialorder %v3045, %v3059
        %vm3078 = vcmp.ge.f32.partialorder %v3046, %v3062
        %vm3079 = vcmp.ge.f32.partialorder %v3047, %v3065
        %vm3080 = vcmp.ge.f32.partialorder %v3048, %v3068
        %vm3081 = vcmp.ge.f32.partialorder %v3049, %v3071
        %vm3082 = vcmp.ge.f32.partialorder %v3050, %v3074
        %v3083 = vsel %vm3075, %v410, 64
        %v3084 = vsel %vm3076, %v410, 64
        %v3085 = vsel %vm3077, %v410, 64
        %v3086 = vsel %vm3078, %v410, 64
        %v3087 = vsel %vm3079, %v410, 64
        %v3088 = vsel %vm3080, %v410, 64
        %v3089 = vsel %vm3081, %v410, 64
        %v3090 = vsel %vm3082, %v410, 64
        %v3091 = vsel %vm379, %v3083, 2147483647
        %v3092 = vand.u32 %v3091, 65535
        %v3093 = vshra.s32 %v3091, 16
        %v3094 = vcvt.s32.f32 %v3092
        %v3095 = vcvt.s32.f32 %v3093
        %3096 = vmin.xlane.f32.xlu0 %v3095
        %v3097 = vpop.xlane.xlu0 %3096
        %vm3098 = vcmp.eq.f32.partialorder %v3095, %v3097
        %v3099 = vsel %vm3098, %v3094, inf
        %3100 = vmin.xlane.f32.xlu0 %v3099
        %v3101 = vpop.xlane.xlu0 %3100
        %v3102 = vcvt.f32.s32 %v3101
        %v3103 = vcvt.f32.s32 %v3097
        %v3104 = vshll.u32 %v3103, 16
        %v3105 = vadd.s32 %v3104, %v3102
        %v3106 = vsel %vm379, %v3084, 2147483647
        %v3107 = vand.u32 %v3106, 65535
        %v3108 = vshra.s32 %v3106, 16
        %v3109 = vcvt.s32.f32 %v3107
        %v3110 = vcvt.s32.f32 %v3108
        %3111 = vmin.xlane.f32.xlu0 %v3110
        %v3112 = vpop.xlane.xlu0 %3111
        %vm3113 = vcmp.eq.f32.partialorder %v3110, %v3112
        %v3114 = vsel %vm3113, %v3109, inf
        %3115 = vmin.xlane.f32.xlu0 %v3114
        %v3116 = vpop.xlane.xlu0 %3115
        %v3117 = vcvt.f32.s32 %v3116
        %v3118 = vcvt.f32.s32 %v3112
        %v3119 = vshll.u32 %v3118, 16
        %v3120 = vadd.s32 %v3119, %v3117
        %v3121 = vsel %vm379, %v3085, 2147483647
        %v3122 = vand.u32 %v3121, 65535
        %v3123 = vshra.s32 %v3121, 16
        %v3124 = vcvt.s32.f32 %v3122
        %v3125 = vcvt.s32.f32 %v3123
        %3126 = vmin.xlane.f32.xlu0 %v3125
        %v3127 = vpop.xlane.xlu0 %3126
        %vm3128 = vcmp.eq.f32.partialorder %v3125, %v3127
        %v3129 = vsel %vm3128, %v3124, inf
        %3130 = vmin.xlane.f32.xlu0 %v3129
        %v3131 = vpop.xlane.xlu0 %3130
        %v3132 = vcvt.f32.s32 %v3131
        %v3133 = vcvt.f32.s32 %v3127
        %v3134 = vshll.u32 %v3133, 16
        %v3135 = vadd.s32 %v3134, %v3132
        %v3136 = vsel %vm379, %v3086, 2147483647
        %v3137 = vand.u32 %v3136, 65535
        %v3138 = vshra.s32 %v3136, 16
        %v3139 = vcvt.s32.f32 %v3137
        %v3140 = vcvt.s32.f32 %v3138
        %3141 = vmin.xlane.f32.xlu0 %v3140
        %v3142 = vpop.xlane.xlu0 %3141
        %vm3143 = vcmp.eq.f32.partialorder %v3140, %v3142
        %v3144 = vsel %vm3143, %v3139, inf
        %3145 = vmin.xlane.f32.xlu0 %v3144
        %v3146 = vpop.xlane.xlu0 %3145
        %v3147 = vcvt.f32.s32 %v3146
        %v3148 = vcvt.f32.s32 %v3142
        %v3149 = vshll.u32 %v3148, 16
        %v3150 = vadd.s32 %v3149, %v3147
        %v3151 = vsel %vm379, %v3087, 2147483647
        %v3152 = vand.u32 %v3151, 65535
        %v3153 = vshra.s32 %v3151, 16
        %v3154 = vcvt.s32.f32 %v3152
        %v3155 = vcvt.s32.f32 %v3153
        %3156 = vmin.xlane.f32.xlu0 %v3155
        %v3157 = vpop.xlane.xlu0 %3156
        %vm3158 = vcmp.eq.f32.partialorder %v3155, %v3157
        %v3159 = vsel %vm3158, %v3154, inf
        %3160 = vmin.xlane.f32.xlu0 %v3159
        %v3161 = vpop.xlane.xlu0 %3160
        %v3162 = vcvt.f32.s32 %v3161
        %v3163 = vcvt.f32.s32 %v3157
        %v3164 = vshll.u32 %v3163, 16
        %v3165 = vadd.s32 %v3164, %v3162
        %v3166 = vsel %vm379, %v3088, 2147483647
        %v3167 = vand.u32 %v3166, 65535
        %v3168 = vshra.s32 %v3166, 16
        %v3169 = vcvt.s32.f32 %v3167
        %v3170 = vcvt.s32.f32 %v3168
        %3171 = vmin.xlane.f32.xlu0 %v3170
        %v3172 = vpop.xlane.xlu0 %3171
        %vm3173 = vcmp.eq.f32.partialorder %v3170, %v3172
        %v3174 = vsel %vm3173, %v3169, inf
        %3175 = vmin.xlane.f32.xlu0 %v3174
        %v3176 = vpop.xlane.xlu0 %3175
        %v3177 = vcvt.f32.s32 %v3176
        %v3178 = vcvt.f32.s32 %v3172
        %v3179 = vshll.u32 %v3178, 16
        %v3180 = vadd.s32 %v3179, %v3177
        %v3181 = vsel %vm379, %v3089, 2147483647
        %v3182 = vand.u32 %v3181, 65535
        %v3183 = vshra.s32 %v3181, 16
        %v3184 = vcvt.s32.f32 %v3182
        %v3185 = vcvt.s32.f32 %v3183
        %3186 = vmin.xlane.f32.xlu0 %v3185
        %v3187 = vpop.xlane.xlu0 %3186
        %vm3188 = vcmp.eq.f32.partialorder %v3185, %v3187
        %v3189 = vsel %vm3188, %v3184, inf
        %3190 = vmin.xlane.f32.xlu0 %v3189
        %v3191 = vpop.xlane.xlu0 %3190
        %v3192 = vcvt.f32.s32 %v3191
        %v3193 = vcvt.f32.s32 %v3187
        %v3194 = vshll.u32 %v3193, 16
        %v3195 = vadd.s32 %v3194, %v3192
        %v3196 = vsel %vm379, %v3090, 2147483647
        %v3197 = vand.u32 %v3196, 65535
        %v3198 = vshra.s32 %v3196, 16
        %v3199 = vcvt.s32.f32 %v3197
        %v3200 = vcvt.s32.f32 %v3198
        %3201 = vmin.xlane.f32.xlu0 %v3200
        %v3202 = vpop.xlane.xlu0 %3201
        %vm3203 = vcmp.eq.f32.partialorder %v3200, %v3202
        %v3204 = vsel %vm3203, %v3199, inf
        %3205 = vmin.xlane.f32.xlu0 %v3204
        %v3206 = vpop.xlane.xlu0 %3205
        %v3207 = vcvt.f32.s32 %v3206
        %v3208 = vcvt.f32.s32 %v3202
        %v3209 = vshll.u32 %v3208, 16
        %v3210 = vadd.s32 %v3209, %v3207
        %vm3211 = vcmp.eq.s32.totalorder %v410, %v3105
        %vm3212 = vcmp.eq.s32.totalorder %v410, %v3120
        %vm3213 = vcmp.eq.s32.totalorder %v410, %v3135
        %vm3214 = vcmp.eq.s32.totalorder %v410, %v3150
        %vm3215 = vcmp.eq.s32.totalorder %v410, %v3165
        %vm3216 = vcmp.eq.s32.totalorder %v410, %v3180
        %vm3217 = vcmp.eq.s32.totalorder %v410, %v3195
        %vm3218 = vcmp.eq.s32.totalorder %v410, %v3210
        %v3219 = vsel %vm571, 1, 0
        %v3220 = vsel %vm572, 1, 0
        %v3221 = vsel %vm573, 1, 0
        %v3222 = vsel %vm574, 1, 0
        %v3223 = vsel %vm575, 1, 0
        %v3224 = vsel %vm576, 1, 0
        %v3225 = vsel %vm577, 1, 0
        %v3226 = vsel %vm578, 1, 0
        %v3227 = vcvt.s32.f32 %v3219
        %v3228 = vcvt.s32.f32 %v3220
        %v3229 = vcvt.s32.f32 %v3221
        %v3230 = vcvt.s32.f32 %v3222
        %v3231 = vcvt.s32.f32 %v3223
        %v3232 = vcvt.s32.f32 %v3224
        %v3233 = vcvt.s32.f32 %v3225
        %v3234 = vcvt.s32.f32 %v3226
        %v3236 = vsel %vm379, %v209, 0
        %v3239 = vsel %vm379, %v210, 0
        %v3242 = vsel %vm379, %v211, 0
        %v3245 = vsel %vm379, %v212, 0
        %v3248 = vsel %vm379, %v3227, 0
        %v3251 = vsel %vm379, %v3228, 0
        %v3254 = vsel %vm379, %v3229, 0
        %v3257 = vsel %vm379, %v3230, 0
        %v3260 = vsel %vm379, %v3231, 0
        %v3263 = vsel %vm379, %v3232, 0
        %v3266 = vsel %vm379, %v3233, 0
        %v3269 = vsel %vm379, %v3234, 0
        %3271 = vmatprep.subr.mxu0 0.0
        %3272 = vmatpush1.xpose.msra.mxu0 0.0
        %3273 = vmatprep.subr.mxu0 0.0
        %3274 = vmatpush1.xpose.msra.mxu0 0.0
        %3275 = vmatprep.subr.mxu0 0.0
        %3276 = vmatpush1.xpose.msra.mxu0 0.0
        %3277 = vmatprep.subr.mxu0 0.0
        %3278 = vmatpush1.xpose.msra.mxu0 0.0
        %3279 = vmatprep.subr.mxu0 0.0
        %3280 = vmatpush1.xpose.msra.mxu0 0.0
        %3281 = vmatprep.subr.mxu0 0.0
        %3282 = vmatpush1.xpose.msra.mxu0 0.0
        %3283 = vmatprep.subr.mxu0 0.0
        %3284 = vmatpush1.xpose.msra.mxu0 0.0
        %3285 = vmatprep.subr.mxu0 0.0
        %3286 = vmatpush1.xpose.msra.mxu0 0.0
        %3287 = vmatprep.subr.mxu0 0.0
        %3288 = vmatpush1.xpose.msra.mxu0 %v3269
        %3289 = vmatprep.subr.mxu0 0.0
        %3290 = vmatpush1.xpose.msra.mxu0 %v3266
        %3291 = vmatprep.subr.mxu0 0.0
        %3292 = vmatpush1.xpose.msra.mxu0 %v3263
        %3293 = vmatprep.subr.mxu0 0.0
        %3294 = vmatpush1.xpose.msra.mxu0 %v3260
        %3295 = vmatprep.subr.mxu0 0.0
        %3296 = vmatpush1.xpose.msra.mxu0 %v3257
        %3297 = vmatprep.subr.mxu0 0.0
        %3298 = vmatpush1.xpose.msra.mxu0 %v3254
        %3299 = vmatprep.subr.mxu0 0.0
        %3300 = vmatpush1.xpose.msra.mxu0 %v3251
        %3301 = vmatprep.subr.mxu0 0.0
        %3302 = vmatpush1.xpose.msra.mxu0 %v3248
        %3303 = vmatprep.subr.mxu0 0.0
        %3304 = vmatpush2.xpose.msra.mxu0 0.0
        %3305 = vmatprep.subr.mxu0 0.0
        %3306 = vmatpush2.xpose.msra.mxu0 0.0
        %3307 = vmatprep.subr.mxu0 0.0
        %3308 = vmatpush2.xpose.msra.mxu0 0.0
        %3309 = vmatprep.subr.mxu0 0.0
        %3310 = vmatpush2.xpose.msra.mxu0 0.0
        %3311 = vmatprep.subr.mxu0 0.0
        %3312 = vmatpush2.xpose.msra.mxu0 0.0
        %3313 = vmatprep.subr.mxu0 0.0
        %3314 = vmatpush2.xpose.msra.mxu0 0.0
        %3315 = vmatprep.subr.mxu0 0.0
        %3316 = vmatpush2.xpose.msra.mxu0 0.0
        %3317 = vmatprep.subr.mxu0 0.0
        %3318 = vmatpush2.xpose.msra.mxu0 0.0
        %3319 = vmatprep.subr.mxu0 0.0
        %3320 = vmatpush2.xpose.msra.mxu0 0.0
        %3321 = vmatprep.subr.mxu0 0.0
        %3322 = vmatpush2.xpose.msra.mxu0 0.0
        %3323 = vmatprep.subr.mxu0 0.0
        %3324 = vmatpush2.xpose.msra.mxu0 0.0
        %3325 = vmatprep.subr.mxu0 0.0
        %3326 = vmatpush2.xpose.msra.mxu0 0.0
        %3327 = vmatprep.subr.mxu0 0.0
        %3328 = vmatpush2.xpose.msra.mxu0 0.0
        %3329 = vmatprep.subr.mxu0 0.0
        %3330 = vmatpush2.xpose.msra.mxu0 0.0
        %3331 = vmatprep.subr.mxu0 0.0
        %3332 = vmatpush2.xpose.msra.mxu0 0.0
        %3333 = vmatprep.subr.mxu0 0.0
        %3334 = vmatpush2.xpose.msra.mxu0 0.0
        %3335 = vmatprep.mubr.f32.mxu0 0.0
        %3336 = vmatmul.mubr.f32.gmra.mxu0 %v3236
        %v3337 = vpop.f32.mrf.mxu0
        %v3338 = vadd.f32 0.0, %v3337
        %v3339 = vpop.f32.mrf.mxu0
        %3340 = vmatprep.mubr.f32.mxu0 0.0
        %3341 = vmatmul.mubr.f32.gmra.mxu0 %v3239
        %v3342 = vpop.f32.mrf.mxu0
        %v3343 = vadd.f32 0.0, %v3342
        %v3344 = vpop.f32.mrf.mxu0
        %3345 = vmatprep.mubr.f32.mxu0 0.0
        %3346 = vmatmul.mubr.f32.gmra.mxu0 %v3242
        %v3347 = vpop.f32.mrf.mxu0
        %v3348 = vadd.f32 0.0, %v3347
        %v3349 = vpop.f32.mrf.mxu0
        %3350 = vmatprep.mubr.f32.mxu0 0.0
        %3351 = vmatmul.mubr.f32.gmra.mxu0 %v3245
        %v3352 = vpop.f32.mrf.mxu0
        %v3353 = vadd.f32 0.0, %v3352
        %v3354 = vpop.f32.mrf.mxu0
        %3355 = vdwg.mxu0
        %v3356 = vmax.f32 %v3338, -3.4028235e+38
        %v3357 = vmax.f32 %v3343, -3.4028235e+38
        %v3358 = vmax.f32 %v3348, -3.4028235e+38
        %v3359 = vmax.f32 %v3353, -3.4028235e+38
        %v3360 = vsel %vm747, 1, 0
        %v3361 = vsel %vm748, 1, 0
        %v3362 = vsel %vm749, 1, 0
        %v3363 = vsel %vm750, 1, 0
        %v3364 = vsel %vm751, 1, 0
        %v3365 = vsel %vm752, 1, 0
        %v3366 = vsel %vm753, 1, 0
        %v3367 = vsel %vm754, 1, 0
        %v3368 = vcvt.s32.f32 %v3360
        %v3369 = vcvt.s32.f32 %v3361
        %v3370 = vcvt.s32.f32 %v3362
        %v3371 = vcvt.s32.f32 %v3363
        %v3372 = vcvt.s32.f32 %v3364
        %v3373 = vcvt.s32.f32 %v3365
        %v3374 = vcvt.s32.f32 %v3366
        %v3375 = vcvt.s32.f32 %v3367
        %v3377 = vsel %vm379, %v3368, 0
        %v3380 = vsel %vm379, %v3369, 0
        %v3383 = vsel %vm379, %v3370, 0
        %v3386 = vsel %vm379, %v3371, 0
        %v3389 = vsel %vm379, %v3372, 0
        %v3392 = vsel %vm379, %v3373, 0
        %v3395 = vsel %vm379, %v3374, 0
        %v3398 = vsel %vm379, %v3375, 0
        %3400 = vmatprep.subr.mxu0 0.0
        %3401 = vmatpush1.xpose.msra.mxu0 0.0
        %3402 = vmatprep.subr.mxu0 0.0
        %3403 = vmatpush1.xpose.msra.mxu0 0.0
        %3404 = vmatprep.subr.mxu0 0.0
        %3405 = vmatpush1.xpose.msra.mxu0 0.0
        %3406 = vmatprep.subr.mxu0 0.0
        %3407 = vmatpush1.xpose.msra.mxu0 0.0
        %3408 = vmatprep.subr.mxu0 0.0
        %3409 = vmatpush1.xpose.msra.mxu0 0.0
        %3410 = vmatprep.subr.mxu0 0.0
        %3411 = vmatpush1.xpose.msra.mxu0 0.0
        %3412 = vmatprep.subr.mxu0 0.0
        %3413 = vmatpush1.xpose.msra.mxu0 0.0
        %3414 = vmatprep.subr.mxu0 0.0
        %3415 = vmatpush1.xpose.msra.mxu0 0.0
        %3416 = vmatprep.subr.mxu0 0.0
        %3417 = vmatpush1.xpose.msra.mxu0 %v3398
        %3418 = vmatprep.subr.mxu0 0.0
        %3419 = vmatpush1.xpose.msra.mxu0 %v3395
        %3420 = vmatprep.subr.mxu0 0.0
        %3421 = vmatpush1.xpose.msra.mxu0 %v3392
        %3422 = vmatprep.subr.mxu0 0.0
        %3423 = vmatpush1.xpose.msra.mxu0 %v3389
        %3424 = vmatprep.subr.mxu0 0.0
        %3425 = vmatpush1.xpose.msra.mxu0 %v3386
        %3426 = vmatprep.subr.mxu0 0.0
        %3427 = vmatpush1.xpose.msra.mxu0 %v3383
        %3428 = vmatprep.subr.mxu0 0.0
        %3429 = vmatpush1.xpose.msra.mxu0 %v3380
        %3430 = vmatprep.subr.mxu0 0.0
        %3431 = vmatpush1.xpose.msra.mxu0 %v3377
        %3432 = vmatprep.subr.mxu0 0.0
        %3433 = vmatpush2.xpose.msra.mxu0 0.0
        %3434 = vmatprep.subr.mxu0 0.0
        %3435 = vmatpush2.xpose.msra.mxu0 0.0
        %3436 = vmatprep.subr.mxu0 0.0
        %3437 = vmatpush2.xpose.msra.mxu0 0.0
        %3438 = vmatprep.subr.mxu0 0.0
        %3439 = vmatpush2.xpose.msra.mxu0 0.0
        %3440 = vmatprep.subr.mxu0 0.0
        %3441 = vmatpush2.xpose.msra.mxu0 0.0
        %3442 = vmatprep.subr.mxu0 0.0
        %3443 = vmatpush2.xpose.msra.mxu0 0.0
        %3444 = vmatprep.subr.mxu0 0.0
        %3445 = vmatpush2.xpose.msra.mxu0 0.0
        %3446 = vmatprep.subr.mxu0 0.0
        %3447 = vmatpush2.xpose.msra.mxu0 0.0
        %3448 = vmatprep.subr.mxu0 0.0
        %3449 = vmatpush2.xpose.msra.mxu0 0.0
        %3450 = vmatprep.subr.mxu0 0.0
        %3451 = vmatpush2.xpose.msra.mxu0 0.0
        %3452 = vmatprep.subr.mxu0 0.0
        %3453 = vmatpush2.xpose.msra.mxu0 0.0
        %3454 = vmatprep.subr.mxu0 0.0
        %3455 = vmatpush2.xpose.msra.mxu0 0.0
        %3456 = vmatprep.subr.mxu0 0.0
        %3457 = vmatpush2.xpose.msra.mxu0 0.0
        %3458 = vmatprep.subr.mxu0 0.0
        %3459 = vmatpush2.xpose.msra.mxu0 0.0
        %3460 = vmatprep.subr.mxu0 0.0
        %3461 = vmatpush2.xpose.msra.mxu0 0.0
        %3462 = vmatprep.subr.mxu0 0.0
        %3463 = vmatpush2.xpose.msra.mxu0 0.0
        %3464 = vmatprep.mubr.f32.mxu0 0.0
        %3465 = vmatmul.mubr.f32.gmra.mxu0 %v3236
        %v3466 = vpop.f32.mrf.mxu0
        %v3467 = vadd.f32 0.0, %v3466
        %v3468 = vpop.f32.mrf.mxu0
        %3469 = vmatprep.mubr.f32.mxu0 0.0
        %3470 = vmatmul.mubr.f32.gmra.mxu0 %v3239
        %v3471 = vpop.f32.mrf.mxu0
        %v3472 = vadd.f32 0.0, %v3471
        %v3473 = vpop.f32.mrf.mxu0
        %3474 = vmatprep.mubr.f32.mxu0 0.0
        %3475 = vmatmul.mubr.f32.gmra.mxu0 %v3242
        %v3476 = vpop.f32.mrf.mxu0
        %v3477 = vadd.f32 0.0, %v3476
        %v3478 = vpop.f32.mrf.mxu0
        %3479 = vmatprep.mubr.f32.mxu0 0.0
        %3480 = vmatmul.mubr.f32.gmra.mxu0 %v3245
        %v3481 = vpop.f32.mrf.mxu0
        %v3482 = vadd.f32 0.0, %v3481
        %v3483 = vpop.f32.mrf.mxu0
        %3484 = vdwg.mxu0
        %v3485 = vmax.f32 %v3356, %v3467
        %v3486 = vmax.f32 %v3357, %v3472
        %v3487 = vmax.f32 %v3358, %v3477
        %v3488 = vmax.f32 %v3359, %v3482
        %v3489 = vsel %vm923, 1, 0
        %v3490 = vsel %vm924, 1, 0
        %v3491 = vsel %vm925, 1, 0
        %v3492 = vsel %vm926, 1, 0
        %v3493 = vsel %vm927, 1, 0
        %v3494 = vsel %vm928, 1, 0
        %v3495 = vsel %vm929, 1, 0
        %v3496 = vsel %vm930, 1, 0
        %v3497 = vcvt.s32.f32 %v3489
        %v3498 = vcvt.s32.f32 %v3490
        %v3499 = vcvt.s32.f32 %v3491
        %v3500 = vcvt.s32.f32 %v3492
        %v3501 = vcvt.s32.f32 %v3493
        %v3502 = vcvt.s32.f32 %v3494
        %v3503 = vcvt.s32.f32 %v3495
        %v3504 = vcvt.s32.f32 %v3496
        %v3506 = vsel %vm379, %v3497, 0
        %v3509 = vsel %vm379, %v3498, 0
        %v3512 = vsel %vm379, %v3499, 0
        %v3515 = vsel %vm379, %v3500, 0
        %v3518 = vsel %vm379, %v3501, 0
        %v3521 = vsel %vm379, %v3502, 0
        %v3524 = vsel %vm379, %v3503, 0
        %v3527 = vsel %vm379, %v3504, 0
        %3529 = vmatprep.subr.mxu0 0.0
        %3530 = vmatpush1.xpose.msra.mxu0 0.0
        %3531 = vmatprep.subr.mxu0 0.0
        %3532 = vmatpush1.xpose.msra.mxu0 0.0
        %3533 = vmatprep.subr.mxu0 0.0
        %3534 = vmatpush1.xpose.msra.mxu0 0.0
        %3535 = vmatprep.subr.mxu0 0.0
        %3536 = vmatpush1.xpose.msra.mxu0 0.0
        %3537 = vmatprep.subr.mxu0 0.0
        %3538 = vmatpush1.xpose.msra.mxu0 0.0
        %3539 = vmatprep.subr.mxu0 0.0
        %3540 = vmatpush1.xpose.msra.mxu0 0.0
        %3541 = vmatprep.subr.mxu0 0.0
        %3542 = vmatpush1.xpose.msra.mxu0 0.0
        %3543 = vmatprep.subr.mxu0 0.0
        %3544 = vmatpush1.xpose.msra.mxu0 0.0
        %3545 = vmatprep.subr.mxu0 0.0
        %3546 = vmatpush1.xpose.msra.mxu0 %v3527
        %3547 = vmatprep.subr.mxu0 0.0
        %3548 = vmatpush1.xpose.msra.mxu0 %v3524
        %3549 = vmatprep.subr.mxu0 0.0
        %3550 = vmatpush1.xpose.msra.mxu0 %v3521
        %3551 = vmatprep.subr.mxu0 0.0
        %3552 = vmatpush1.xpose.msra.mxu0 %v3518
        %3553 = vmatprep.subr.mxu0 0.0
        %3554 = vmatpush1.xpose.msra.mxu0 %v3515
        %3555 = vmatprep.subr.mxu0 0.0
        %3556 = vmatpush1.xpose.msra.mxu0 %v3512
        %3557 = vmatprep.subr.mxu0 0.0
        %3558 = vmatpush1.xpose.msra.mxu0 %v3509
        %3559 = vmatprep.subr.mxu0 0.0
        %3560 = vmatpush1.xpose.msra.mxu0 %v3506
        %3561 = vmatprep.subr.mxu0 0.0
        %3562 = vmatpush2.xpose.msra.mxu0 0.0
        %3563 = vmatprep.subr.mxu0 0.0
        %3564 = vmatpush2.xpose.msra.mxu0 0.0
        %3565 = vmatprep.subr.mxu0 0.0
        %3566 = vmatpush2.xpose.msra.mxu0 0.0
        %3567 = vmatprep.subr.mxu0 0.0
        %3568 = vmatpush2.xpose.msra.mxu0 0.0
        %3569 = vmatprep.subr.mxu0 0.0
        %3570 = vmatpush2.xpose.msra.mxu0 0.0
        %3571 = vmatprep.subr.mxu0 0.0
        %3572 = vmatpush2.xpose.msra.mxu0 0.0
        %3573 = vmatprep.subr.mxu0 0.0
        %3574 = vmatpush2.xpose.msra.mxu0 0.0
        %3575 = vmatprep.subr.mxu0 0.0
        %3576 = vmatpush2.xpose.msra.mxu0 0.0
        %3577 = vmatprep.subr.mxu0 0.0
        %3578 = vmatpush2.xpose.msra.mxu0 0.0
        %3579 = vmatprep.subr.mxu0 0.0
        %3580 = vmatpush2.xpose.msra.mxu0 0.0
        %3581 = vmatprep.subr.mxu0 0.0
        %3582 = vmatpush2.xpose.msra.mxu0 0.0
        %3583 = vmatprep.subr.mxu0 0.0
        %3584 = vmatpush2.xpose.msra.mxu0 0.0
        %3585 = vmatprep.subr.mxu0 0.0
        %3586 = vmatpush2.xpose.msra.mxu0 0.0
        %3587 = vmatprep.subr.mxu0 0.0
        %3588 = vmatpush2.xpose.msra.mxu0 0.0
        %3589 = vmatprep.subr.mxu0 0.0
        %3590 = vmatpush2.xpose.msra.mxu0 0.0
        %3591 = vmatprep.subr.mxu0 0.0
        %3592 = vmatpush2.xpose.msra.mxu0 0.0
        %3593 = vmatprep.mubr.f32.mxu0 0.0
        %3594 = vmatmul.mubr.f32.gmra.mxu0 %v3236
        %v3595 = vpop.f32.mrf.mxu0
        %v3596 = vadd.f32 0.0, %v3595
        %v3597 = vpop.f32.mrf.mxu0
        %3598 = vmatprep.mubr.f32.mxu0 0.0
        %3599 = vmatmul.mubr.f32.gmra.mxu0 %v3239
        %v3600 = vpop.f32.mrf.mxu0
        %v3601 = vadd.f32 0.0, %v3600
        %v3602 = vpop.f32.mrf.mxu0
        %3603 = vmatprep.mubr.f32.mxu0 0.0
        %3604 = vmatmul.mubr.f32.gmra.mxu0 %v3242
        %v3605 = vpop.f32.mrf.mxu0
        %v3606 = vadd.f32 0.0, %v3605
        %v3607 = vpop.f32.mrf.mxu0
        %3608 = vmatprep.mubr.f32.mxu0 0.0
        %3609 = vmatmul.mubr.f32.gmra.mxu0 %v3245
        %v3610 = vpop.f32.mrf.mxu0
        %v3611 = vadd.f32 0.0, %v3610
        %v3612 = vpop.f32.mrf.mxu0
        %3613 = vdwg.mxu0
        %v3614 = vmax.f32 %v3485, %v3596
        %v3615 = vmax.f32 %v3486, %v3601
        %v3616 = vmax.f32 %v3487, %v3606
        %v3617 = vmax.f32 %v3488, %v3611
        %v3618 = vsel %vm1099, 1, 0
        %v3619 = vsel %vm1100, 1, 0
        %v3620 = vsel %vm1101, 1, 0
        %v3621 = vsel %vm1102, 1, 0
        %v3622 = vsel %vm1103, 1, 0
        %v3623 = vsel %vm1104, 1, 0
        %v3624 = vsel %vm1105, 1, 0
        %v3625 = vsel %vm1106, 1, 0
        %v3626 = vcvt.s32.f32 %v3618
        %v3627 = vcvt.s32.f32 %v3619
        %v3628 = vcvt.s32.f32 %v3620
        %v3629 = vcvt.s32.f32 %v3621
        %v3630 = vcvt.s32.f32 %v3622
        %v3631 = vcvt.s32.f32 %v3623
        %v3632 = vcvt.s32.f32 %v3624
        %v3633 = vcvt.s32.f32 %v3625
        %v3635 = vsel %vm379, %v3626, 0
        %v3638 = vsel %vm379, %v3627, 0
        %v3641 = vsel %vm379, %v3628, 0
        %v3644 = vsel %vm379, %v3629, 0
        %v3647 = vsel %vm379, %v3630, 0
        %v3650 = vsel %vm379, %v3631, 0
        %v3653 = vsel %vm379, %v3632, 0
        %v3656 = vsel %vm379, %v3633, 0
        %3658 = vmatprep.subr.mxu0 0.0
        %3659 = vmatpush1.xpose.msra.mxu0 0.0
        %3660 = vmatprep.subr.mxu0 0.0
        %3661 = vmatpush1.xpose.msra.mxu0 0.0
        %3662 = vmatprep.subr.mxu0 0.0
        %3663 = vmatpush1.xpose.msra.mxu0 0.0
        %3664 = vmatprep.subr.mxu0 0.0
        %3665 = vmatpush1.xpose.msra.mxu0 0.0
        %3666 = vmatprep.subr.mxu0 0.0
        %3667 = vmatpush1.xpose.msra.mxu0 0.0
        %3668 = vmatprep.subr.mxu0 0.0
        %3669 = vmatpush1.xpose.msra.mxu0 0.0
        %3670 = vmatprep.subr.mxu0 0.0
        %3671 = vmatpush1.xpose.msra.mxu0 0.0
        %3672 = vmatprep.subr.mxu0 0.0
        %3673 = vmatpush1.xpose.msra.mxu0 0.0
        %3674 = vmatprep.subr.mxu0 0.0
        %3675 = vmatpush1.xpose.msra.mxu0 %v3656
        %3676 = vmatprep.subr.mxu0 0.0
        %3677 = vmatpush1.xpose.msra.mxu0 %v3653
        %3678 = vmatprep.subr.mxu0 0.0
        %3679 = vmatpush1.xpose.msra.mxu0 %v3650
        %3680 = vmatprep.subr.mxu0 0.0
        %3681 = vmatpush1.xpose.msra.mxu0 %v3647
        %3682 = vmatprep.subr.mxu0 0.0
        %3683 = vmatpush1.xpose.msra.mxu0 %v3644
        %3684 = vmatprep.subr.mxu0 0.0
        %3685 = vmatpush1.xpose.msra.mxu0 %v3641
        %3686 = vmatprep.subr.mxu0 0.0
        %3687 = vmatpush1.xpose.msra.mxu0 %v3638
        %3688 = vmatprep.subr.mxu0 0.0
        %3689 = vmatpush1.xpose.msra.mxu0 %v3635
        %3690 = vmatprep.subr.mxu0 0.0
        %3691 = vmatpush2.xpose.msra.mxu0 0.0
        %3692 = vmatprep.subr.mxu0 0.0
        %3693 = vmatpush2.xpose.msra.mxu0 0.0
        %3694 = vmatprep.subr.mxu0 0.0
        %3695 = vmatpush2.xpose.msra.mxu0 0.0
        %3696 = vmatprep.subr.mxu0 0.0
        %3697 = vmatpush2.xpose.msra.mxu0 0.0
        %3698 = vmatprep.subr.mxu0 0.0
        %3699 = vmatpush2.xpose.msra.mxu0 0.0
        %3700 = vmatprep.subr.mxu0 0.0
        %3701 = vmatpush2.xpose.msra.mxu0 0.0
        %3702 = vmatprep.subr.mxu0 0.0
        %3703 = vmatpush2.xpose.msra.mxu0 0.0
        %3704 = vmatprep.subr.mxu0 0.0
        %3705 = vmatpush2.xpose.msra.mxu0 0.0
        %3706 = vmatprep.subr.mxu0 0.0
        %3707 = vmatpush2.xpose.msra.mxu0 0.0
        %3708 = vmatprep.subr.mxu0 0.0
        %3709 = vmatpush2.xpose.msra.mxu0 0.0
        %3710 = vmatprep.subr.mxu0 0.0
        %3711 = vmatpush2.xpose.msra.mxu0 0.0
        %3712 = vmatprep.subr.mxu0 0.0
        %3713 = vmatpush2.xpose.msra.mxu0 0.0
        %3714 = vmatprep.subr.mxu0 0.0
        %3715 = vmatpush2.xpose.msra.mxu0 0.0
        %3716 = vmatprep.subr.mxu0 0.0
        %3717 = vmatpush2.xpose.msra.mxu0 0.0
        %3718 = vmatprep.subr.mxu0 0.0
        %3719 = vmatpush2.xpose.msra.mxu0 0.0
        %3720 = vmatprep.subr.mxu0 0.0
        %3721 = vmatpush2.xpose.msra.mxu0 0.0
        %3722 = vmatprep.mubr.f32.mxu0 0.0
        %3723 = vmatmul.mubr.f32.gmra.mxu0 %v3236
        %v3724 = vpop.f32.mrf.mxu0
        %v3725 = vadd.f32 0.0, %v3724
        %v3726 = vpop.f32.mrf.mxu0
        %3727 = vmatprep.mubr.f32.mxu0 0.0
        %3728 = vmatmul.mubr.f32.gmra.mxu0 %v3239
        %v3729 = vpop.f32.mrf.mxu0
        %v3730 = vadd.f32 0.0, %v3729
        %v3731 = vpop.f32.mrf.mxu0
        %3732 = vmatprep.mubr.f32.mxu0 0.0
        %3733 = vmatmul.mubr.f32.gmra.mxu0 %v3242
        %v3734 = vpop.f32.mrf.mxu0
        %v3735 = vadd.f32 0.0, %v3734
        %v3736 = vpop.f32.mrf.mxu0
        %3737 = vmatprep.mubr.f32.mxu0 0.0
        %3738 = vmatmul.mubr.f32.gmra.mxu0 %v3245
        %v3739 = vpop.f32.mrf.mxu0
        %v3740 = vadd.f32 0.0, %v3739
        %v3741 = vpop.f32.mrf.mxu0
        %3742 = vdwg.mxu0
        %v3743 = vmax.f32 %v3614, %v3725
        %v3744 = vmax.f32 %v3615, %v3730
        %v3745 = vmax.f32 %v3616, %v3735
        %v3746 = vmax.f32 %v3617, %v3740
        %v3747 = vsel %vm1275, 1, 0
        %v3748 = vsel %vm1276, 1, 0
        %v3749 = vsel %vm1277, 1, 0
        %v3750 = vsel %vm1278, 1, 0
        %v3751 = vsel %vm1279, 1, 0
        %v3752 = vsel %vm1280, 1, 0
        %v3753 = vsel %vm1281, 1, 0
        %v3754 = vsel %vm1282, 1, 0
        %v3755 = vcvt.s32.f32 %v3747
        %v3756 = vcvt.s32.f32 %v3748
        %v3757 = vcvt.s32.f32 %v3749
        %v3758 = vcvt.s32.f32 %v3750
        %v3759 = vcvt.s32.f32 %v3751
        %v3760 = vcvt.s32.f32 %v3752
        %v3761 = vcvt.s32.f32 %v3753
        %v3762 = vcvt.s32.f32 %v3754
        %v3764 = vsel %vm379, %v3755, 0
        %v3767 = vsel %vm379, %v3756, 0
        %v3770 = vsel %vm379, %v3757, 0
        %v3773 = vsel %vm379, %v3758, 0
        %v3776 = vsel %vm379, %v3759, 0
        %v3779 = vsel %vm379, %v3760, 0
        %v3782 = vsel %vm379, %v3761, 0
        %v3785 = vsel %vm379, %v3762, 0
        %3787 = vmatprep.subr.mxu0 0.0
        %3788 = vmatpush1.xpose.msra.mxu0 0.0
        %3789 = vmatprep.subr.mxu0 0.0
        %3790 = vmatpush1.xpose.msra.mxu0 0.0
        %3791 = vmatprep.subr.mxu0 0.0
        %3792 = vmatpush1.xpose.msra.mxu0 0.0
        %3793 = vmatprep.subr.mxu0 0.0
        %3794 = vmatpush1.xpose.msra.mxu0 0.0
        %3795 = vmatprep.subr.mxu0 0.0
        %3796 = vmatpush1.xpose.msra.mxu0 0.0
        %3797 = vmatprep.subr.mxu0 0.0
        %3798 = vmatpush1.xpose.msra.mxu0 0.0
        %3799 = vmatprep.subr.mxu0 0.0
        %3800 = vmatpush1.xpose.msra.mxu0 0.0
        %3801 = vmatprep.subr.mxu0 0.0
        %3802 = vmatpush1.xpose.msra.mxu0 0.0
        %3803 = vmatprep.subr.mxu0 0.0
        %3804 = vmatpush1.xpose.msra.mxu0 %v3785
        %3805 = vmatprep.subr.mxu0 0.0
        %3806 = vmatpush1.xpose.msra.mxu0 %v3782
        %3807 = vmatprep.subr.mxu0 0.0
        %3808 = vmatpush1.xpose.msra.mxu0 %v3779
        %3809 = vmatprep.subr.mxu0 0.0
        %3810 = vmatpush1.xpose.msra.mxu0 %v3776
        %3811 = vmatprep.subr.mxu0 0.0
        %3812 = vmatpush1.xpose.msra.mxu0 %v3773
        %3813 = vmatprep.subr.mxu0 0.0
        %3814 = vmatpush1.xpose.msra.mxu0 %v3770
        %3815 = vmatprep.subr.mxu0 0.0
        %3816 = vmatpush1.xpose.msra.mxu0 %v3767
        %3817 = vmatprep.subr.mxu0 0.0
        %3818 = vmatpush1.xpose.msra.mxu0 %v3764
        %3819 = vmatprep.subr.mxu0 0.0
        %3820 = vmatpush2.xpose.msra.mxu0 0.0
        %3821 = vmatprep.subr.mxu0 0.0
        %3822 = vmatpush2.xpose.msra.mxu0 0.0
        %3823 = vmatprep.subr.mxu0 0.0
        %3824 = vmatpush2.xpose.msra.mxu0 0.0
        %3825 = vmatprep.subr.mxu0 0.0
        %3826 = vmatpush2.xpose.msra.mxu0 0.0
        %3827 = vmatprep.subr.mxu0 0.0
        %3828 = vmatpush2.xpose.msra.mxu0 0.0
        %3829 = vmatprep.subr.mxu0 0.0
        %3830 = vmatpush2.xpose.msra.mxu0 0.0
        %3831 = vmatprep.subr.mxu0 0.0
        %3832 = vmatpush2.xpose.msra.mxu0 0.0
        %3833 = vmatprep.subr.mxu0 0.0
        %3834 = vmatpush2.xpose.msra.mxu0 0.0
        %3835 = vmatprep.subr.mxu0 0.0
        %3836 = vmatpush2.xpose.msra.mxu0 0.0
        %3837 = vmatprep.subr.mxu0 0.0
        %3838 = vmatpush2.xpose.msra.mxu0 0.0
        %3839 = vmatprep.subr.mxu0 0.0
        %3840 = vmatpush2.xpose.msra.mxu0 0.0
        %3841 = vmatprep.subr.mxu0 0.0
        %3842 = vmatpush2.xpose.msra.mxu0 0.0
        %3843 = vmatprep.subr.mxu0 0.0
        %3844 = vmatpush2.xpose.msra.mxu0 0.0
        %3845 = vmatprep.subr.mxu0 0.0
        %3846 = vmatpush2.xpose.msra.mxu0 0.0
        %3847 = vmatprep.subr.mxu0 0.0
        %3848 = vmatpush2.xpose.msra.mxu0 0.0
        %3849 = vmatprep.subr.mxu0 0.0
        %3850 = vmatpush2.xpose.msra.mxu0 0.0
        %3851 = vmatprep.mubr.f32.mxu0 0.0
        %3852 = vmatmul.mubr.f32.gmra.mxu0 %v3236
        %v3853 = vpop.f32.mrf.mxu0
        %v3854 = vadd.f32 0.0, %v3853
        %v3855 = vpop.f32.mrf.mxu0
        %3856 = vmatprep.mubr.f32.mxu0 0.0
        %3857 = vmatmul.mubr.f32.gmra.mxu0 %v3239
        %v3858 = vpop.f32.mrf.mxu0
        %v3859 = vadd.f32 0.0, %v3858
        %v3860 = vpop.f32.mrf.mxu0
        %3861 = vmatprep.mubr.f32.mxu0 0.0
        %3862 = vmatmul.mubr.f32.gmra.mxu0 %v3242
        %v3863 = vpop.f32.mrf.mxu0
        %v3864 = vadd.f32 0.0, %v3863
        %v3865 = vpop.f32.mrf.mxu0
        %3866 = vmatprep.mubr.f32.mxu0 0.0
        %3867 = vmatmul.mubr.f32.gmra.mxu0 %v3245
        %v3868 = vpop.f32.mrf.mxu0
        %v3869 = vadd.f32 0.0, %v3868
        %v3870 = vpop.f32.mrf.mxu0
        %3871 = vdwg.mxu0
        %v3872 = vmax.f32 %v3743, %v3854
        %v3873 = vmax.f32 %v3744, %v3859
        %v3874 = vmax.f32 %v3745, %v3864
        %v3875 = vmax.f32 %v3746, %v3869
        %v3876 = vsel %vm1451, 1, 0
        %v3877 = vsel %vm1452, 1, 0
        %v3878 = vsel %vm1453, 1, 0
        %v3879 = vsel %vm1454, 1, 0
        %v3880 = vsel %vm1455, 1, 0
        %v3881 = vsel %vm1456, 1, 0
        %v3882 = vsel %vm1457, 1, 0
        %v3883 = vsel %vm1458, 1, 0
        %v3884 = vcvt.s32.f32 %v3876
        %v3885 = vcvt.s32.f32 %v3877
        %v3886 = vcvt.s32.f32 %v3878
        %v3887 = vcvt.s32.f32 %v3879
        %v3888 = vcvt.s32.f32 %v3880
        %v3889 = vcvt.s32.f32 %v3881
        %v3890 = vcvt.s32.f32 %v3882
        %v3891 = vcvt.s32.f32 %v3883
        %v3893 = vsel %vm379, %v3884, 0
        %v3896 = vsel %vm379, %v3885, 0
        %v3899 = vsel %vm379, %v3886, 0
        %v3902 = vsel %vm379, %v3887, 0
        %v3905 = vsel %vm379, %v3888, 0
        %v3908 = vsel %vm379, %v3889, 0
        %v3911 = vsel %vm379, %v3890, 0
        %v3914 = vsel %vm379, %v3891, 0
        %3916 = vmatprep.subr.mxu0 0.0
        %3917 = vmatpush1.xpose.msra.mxu0 0.0
        %3918 = vmatprep.subr.mxu0 0.0
        %3919 = vmatpush1.xpose.msra.mxu0 0.0
        %3920 = vmatprep.subr.mxu0 0.0
        %3921 = vmatpush1.xpose.msra.mxu0 0.0
        %3922 = vmatprep.subr.mxu0 0.0
        %3923 = vmatpush1.xpose.msra.mxu0 0.0
        %3924 = vmatprep.subr.mxu0 0.0
        %3925 = vmatpush1.xpose.msra.mxu0 0.0
        %3926 = vmatprep.subr.mxu0 0.0
        %3927 = vmatpush1.xpose.msra.mxu0 0.0
        %3928 = vmatprep.subr.mxu0 0.0
        %3929 = vmatpush1.xpose.msra.mxu0 0.0
        %3930 = vmatprep.subr.mxu0 0.0
        %3931 = vmatpush1.xpose.msra.mxu0 0.0
        %3932 = vmatprep.subr.mxu0 0.0
        %3933 = vmatpush1.xpose.msra.mxu0 %v3914
        %3934 = vmatprep.subr.mxu0 0.0
        %3935 = vmatpush1.xpose.msra.mxu0 %v3911
        %3936 = vmatprep.subr.mxu0 0.0
        %3937 = vmatpush1.xpose.msra.mxu0 %v3908
        %3938 = vmatprep.subr.mxu0 0.0
        %3939 = vmatpush1.xpose.msra.mxu0 %v3905
        %3940 = vmatprep.subr.mxu0 0.0
        %3941 = vmatpush1.xpose.msra.mxu0 %v3902
        %3942 = vmatprep.subr.mxu0 0.0
        %3943 = vmatpush1.xpose.msra.mxu0 %v3899
        %3944 = vmatprep.subr.mxu0 0.0
        %3945 = vmatpush1.xpose.msra.mxu0 %v3896
        %3946 = vmatprep.subr.mxu0 0.0
        %3947 = vmatpush1.xpose.msra.mxu0 %v3893
        %3948 = vmatprep.subr.mxu0 0.0
        %3949 = vmatpush2.xpose.msra.mxu0 0.0
        %3950 = vmatprep.subr.mxu0 0.0
        %3951 = vmatpush2.xpose.msra.mxu0 0.0
        %3952 = vmatprep.subr.mxu0 0.0
        %3953 = vmatpush2.xpose.msra.mxu0 0.0
        %3954 = vmatprep.subr.mxu0 0.0
        %3955 = vmatpush2.xpose.msra.mxu0 0.0
        %3956 = vmatprep.subr.mxu0 0.0
        %3957 = vmatpush2.xpose.msra.mxu0 0.0
        %3958 = vmatprep.subr.mxu0 0.0
        %3959 = vmatpush2.xpose.msra.mxu0 0.0
        %3960 = vmatprep.subr.mxu0 0.0
        %3961 = vmatpush2.xpose.msra.mxu0 0.0
        %3962 = vmatprep.subr.mxu0 0.0
        %3963 = vmatpush2.xpose.msra.mxu0 0.0
        %3964 = vmatprep.subr.mxu0 0.0
        %3965 = vmatpush2.xpose.msra.mxu0 0.0
        %3966 = vmatprep.subr.mxu0 0.0
        %3967 = vmatpush2.xpose.msra.mxu0 0.0
        %3968 = vmatprep.subr.mxu0 0.0
        %3969 = vmatpush2.xpose.msra.mxu0 0.0
        %3970 = vmatprep.subr.mxu0 0.0
        %3971 = vmatpush2.xpose.msra.mxu0 0.0
        %3972 = vmatprep.subr.mxu0 0.0
        %3973 = vmatpush2.xpose.msra.mxu0 0.0
        %3974 = vmatprep.subr.mxu0 0.0
        %3975 = vmatpush2.xpose.msra.mxu0 0.0
        %3976 = vmatprep.subr.mxu0 0.0
        %3977 = vmatpush2.xpose.msra.mxu0 0.0
        %3978 = vmatprep.subr.mxu0 0.0
        %3979 = vmatpush2.xpose.msra.mxu0 0.0
        %3980 = vmatprep.mubr.f32.mxu0 0.0
        %3981 = vmatmul.mubr.f32.gmra.mxu0 %v3236
        %v3982 = vpop.f32.mrf.mxu0
        %v3983 = vadd.f32 0.0, %v3982
        %v3984 = vpop.f32.mrf.mxu0
        %3985 = vmatprep.mubr.f32.mxu0 0.0
        %3986 = vmatmul.mubr.f32.gmra.mxu0 %v3239
        %v3987 = vpop.f32.mrf.mxu0
        %v3988 = vadd.f32 0.0, %v3987
        %v3989 = vpop.f32.mrf.mxu0
        %3990 = vmatprep.mubr.f32.mxu0 0.0
        %3991 = vmatmul.mubr.f32.gmra.mxu0 %v3242
        %v3992 = vpop.f32.mrf.mxu0
        %v3993 = vadd.f32 0.0, %v3992
        %v3994 = vpop.f32.mrf.mxu0
        %3995 = vmatprep.mubr.f32.mxu0 0.0
        %3996 = vmatmul.mubr.f32.gmra.mxu0 %v3245
        %v3997 = vpop.f32.mrf.mxu0
        %v3998 = vadd.f32 0.0, %v3997
        %v3999 = vpop.f32.mrf.mxu0
        %4000 = vdwg.mxu0
        %v4001 = vmax.f32 %v3872, %v3983
        %v4002 = vmax.f32 %v3873, %v3988
        %v4003 = vmax.f32 %v3874, %v3993
        %v4004 = vmax.f32 %v3875, %v3998
        %v4005 = vsel %vm1627, 1, 0
        %v4006 = vsel %vm1628, 1, 0
        %v4007 = vsel %vm1629, 1, 0
        %v4008 = vsel %vm1630, 1, 0
        %v4009 = vsel %vm1631, 1, 0
        %v4010 = vsel %vm1632, 1, 0
        %v4011 = vsel %vm1633, 1, 0
        %v4012 = vsel %vm1634, 1, 0
        %v4013 = vcvt.s32.f32 %v4005
        %v4014 = vcvt.s32.f32 %v4006
        %v4015 = vcvt.s32.f32 %v4007
        %v4016 = vcvt.s32.f32 %v4008
        %v4017 = vcvt.s32.f32 %v4009
        %v4018 = vcvt.s32.f32 %v4010
        %v4019 = vcvt.s32.f32 %v4011
        %v4020 = vcvt.s32.f32 %v4012
        %v4022 = vsel %vm379, %v4013, 0
        %v4025 = vsel %vm379, %v4014, 0
        %v4028 = vsel %vm379, %v4015, 0
        %v4031 = vsel %vm379, %v4016, 0
        %v4034 = vsel %vm379, %v4017, 0
        %v4037 = vsel %vm379, %v4018, 0
        %v4040 = vsel %vm379, %v4019, 0
        %v4043 = vsel %vm379, %v4020, 0
        %4045 = vmatprep.subr.mxu0 0.0
        %4046 = vmatpush1.xpose.msra.mxu0 0.0
        %4047 = vmatprep.subr.mxu0 0.0
        %4048 = vmatpush1.xpose.msra.mxu0 0.0
        %4049 = vmatprep.subr.mxu0 0.0
        %4050 = vmatpush1.xpose.msra.mxu0 0.0
        %4051 = vmatprep.subr.mxu0 0.0
        %4052 = vmatpush1.xpose.msra.mxu0 0.0
        %4053 = vmatprep.subr.mxu0 0.0
        %4054 = vmatpush1.xpose.msra.mxu0 0.0
        %4055 = vmatprep.subr.mxu0 0.0
        %4056 = vmatpush1.xpose.msra.mxu0 0.0
        %4057 = vmatprep.subr.mxu0 0.0
        %4058 = vmatpush1.xpose.msra.mxu0 0.0
        %4059 = vmatprep.subr.mxu0 0.0
        %4060 = vmatpush1.xpose.msra.mxu0 0.0
        %4061 = vmatprep.subr.mxu0 0.0
        %4062 = vmatpush1.xpose.msra.mxu0 %v4043
        %4063 = vmatprep.subr.mxu0 0.0
        %4064 = vmatpush1.xpose.msra.mxu0 %v4040
        %4065 = vmatprep.subr.mxu0 0.0
        %4066 = vmatpush1.xpose.msra.mxu0 %v4037
        %4067 = vmatprep.subr.mxu0 0.0
        %4068 = vmatpush1.xpose.msra.mxu0 %v4034
        %4069 = vmatprep.subr.mxu0 0.0
        %4070 = vmatpush1.xpose.msra.mxu0 %v4031
        %4071 = vmatprep.subr.mxu0 0.0
        %4072 = vmatpush1.xpose.msra.mxu0 %v4028
        %4073 = vmatprep.subr.mxu0 0.0
        %4074 = vmatpush1.xpose.msra.mxu0 %v4025
        %4075 = vmatprep.subr.mxu0 0.0
        %4076 = vmatpush1.xpose.msra.mxu0 %v4022
        %4077 = vmatprep.subr.mxu0 0.0
        %4078 = vmatpush2.xpose.msra.mxu0 0.0
        %4079 = vmatprep.subr.mxu0 0.0
        %4080 = vmatpush2.xpose.msra.mxu0 0.0
        %4081 = vmatprep.subr.mxu0 0.0
        %4082 = vmatpush2.xpose.msra.mxu0 0.0
        %4083 = vmatprep.subr.mxu0 0.0
        %4084 = vmatpush2.xpose.msra.mxu0 0.0
        %4085 = vmatprep.subr.mxu0 0.0
        %4086 = vmatpush2.xpose.msra.mxu0 0.0
        %4087 = vmatprep.subr.mxu0 0.0
        %4088 = vmatpush2.xpose.msra.mxu0 0.0
        %4089 = vmatprep.subr.mxu0 0.0
        %4090 = vmatpush2.xpose.msra.mxu0 0.0
        %4091 = vmatprep.subr.mxu0 0.0
        %4092 = vmatpush2.xpose.msra.mxu0 0.0
        %4093 = vmatprep.subr.mxu0 0.0
        %4094 = vmatpush2.xpose.msra.mxu0 0.0
        %4095 = vmatprep.subr.mxu0 0.0
        %4096 = vmatpush2.xpose.msra.mxu0 0.0
        %4097 = vmatprep.subr.mxu0 0.0
        %4098 = vmatpush2.xpose.msra.mxu0 0.0
        %4099 = vmatprep.subr.mxu0 0.0
        %4100 = vmatpush2.xpose.msra.mxu0 0.0
        %4101 = vmatprep.subr.mxu0 0.0
        %4102 = vmatpush2.xpose.msra.mxu0 0.0
        %4103 = vmatprep.subr.mxu0 0.0
        %4104 = vmatpush2.xpose.msra.mxu0 0.0
        %4105 = vmatprep.subr.mxu0 0.0
        %4106 = vmatpush2.xpose.msra.mxu0 0.0
        %4107 = vmatprep.subr.mxu0 0.0
        %4108 = vmatpush2.xpose.msra.mxu0 0.0
        %4109 = vmatprep.mubr.f32.mxu0 0.0
        %4110 = vmatmul.mubr.f32.gmra.mxu0 %v3236
        %v4111 = vpop.f32.mrf.mxu0
        %v4112 = vadd.f32 0.0, %v4111
        %v4113 = vpop.f32.mrf.mxu0
        %4114 = vmatprep.mubr.f32.mxu0 0.0
        %4115 = vmatmul.mubr.f32.gmra.mxu0 %v3239
        %v4116 = vpop.f32.mrf.mxu0
        %v4117 = vadd.f32 0.0, %v4116
        %v4118 = vpop.f32.mrf.mxu0
        %4119 = vmatprep.mubr.f32.mxu0 0.0
        %4120 = vmatmul.mubr.f32.gmra.mxu0 %v3242
        %v4121 = vpop.f32.mrf.mxu0
        %v4122 = vadd.f32 0.0, %v4121
        %v4123 = vpop.f32.mrf.mxu0
        %4124 = vmatprep.mubr.f32.mxu0 0.0
        %4125 = vmatmul.mubr.f32.gmra.mxu0 %v3245
        %v4126 = vpop.f32.mrf.mxu0
        %v4127 = vadd.f32 0.0, %v4126
        %v4128 = vpop.f32.mrf.mxu0
        %4129 = vdwg.mxu0
        %v4130 = vmax.f32 %v4001, %v4112
        %v4131 = vmax.f32 %v4002, %v4117
        %v4132 = vmax.f32 %v4003, %v4122
        %v4133 = vmax.f32 %v4004, %v4127
        %v4134 = vsel %vm1803, 1, 0
        %v4135 = vsel %vm1804, 1, 0
        %v4136 = vsel %vm1805, 1, 0
        %v4137 = vsel %vm1806, 1, 0
        %v4138 = vsel %vm1807, 1, 0
        %v4139 = vsel %vm1808, 1, 0
        %v4140 = vsel %vm1809, 1, 0
        %v4141 = vsel %vm1810, 1, 0
        %v4142 = vcvt.s32.f32 %v4134
        %v4143 = vcvt.s32.f32 %v4135
        %v4144 = vcvt.s32.f32 %v4136
        %v4145 = vcvt.s32.f32 %v4137
        %v4146 = vcvt.s32.f32 %v4138
        %v4147 = vcvt.s32.f32 %v4139
        %v4148 = vcvt.s32.f32 %v4140
        %v4149 = vcvt.s32.f32 %v4141
        %v4151 = vsel %vm379, %v4142, 0
        %v4154 = vsel %vm379, %v4143, 0
        %v4157 = vsel %vm379, %v4144, 0
        %v4160 = vsel %vm379, %v4145, 0
        %v4163 = vsel %vm379, %v4146, 0
        %v4166 = vsel %vm379, %v4147, 0
        %v4169 = vsel %vm379, %v4148, 0
        %v4172 = vsel %vm379, %v4149, 0
        %4174 = vmatprep.subr.mxu0 0.0
        %4175 = vmatpush1.xpose.msra.mxu0 0.0
        %4176 = vmatprep.subr.mxu0 0.0
        %4177 = vmatpush1.xpose.msra.mxu0 0.0
        %4178 = vmatprep.subr.mxu0 0.0
        %4179 = vmatpush1.xpose.msra.mxu0 0.0
        %4180 = vmatprep.subr.mxu0 0.0
        %4181 = vmatpush1.xpose.msra.mxu0 0.0
        %4182 = vmatprep.subr.mxu0 0.0
        %4183 = vmatpush1.xpose.msra.mxu0 0.0
        %4184 = vmatprep.subr.mxu0 0.0
        %4185 = vmatpush1.xpose.msra.mxu0 0.0
        %4186 = vmatprep.subr.mxu0 0.0
        %4187 = vmatpush1.xpose.msra.mxu0 0.0
        %4188 = vmatprep.subr.mxu0 0.0
        %4189 = vmatpush1.xpose.msra.mxu0 0.0
        %4190 = vmatprep.subr.mxu0 0.0
        %4191 = vmatpush1.xpose.msra.mxu0 %v4172
        %4192 = vmatprep.subr.mxu0 0.0
        %4193 = vmatpush1.xpose.msra.mxu0 %v4169
        %4194 = vmatprep.subr.mxu0 0.0
        %4195 = vmatpush1.xpose.msra.mxu0 %v4166
        %4196 = vmatprep.subr.mxu0 0.0
        %4197 = vmatpush1.xpose.msra.mxu0 %v4163
        %4198 = vmatprep.subr.mxu0 0.0
        %4199 = vmatpush1.xpose.msra.mxu0 %v4160
        %4200 = vmatprep.subr.mxu0 0.0
        %4201 = vmatpush1.xpose.msra.mxu0 %v4157
        %4202 = vmatprep.subr.mxu0 0.0
        %4203 = vmatpush1.xpose.msra.mxu0 %v4154
        %4204 = vmatprep.subr.mxu0 0.0
        %4205 = vmatpush1.xpose.msra.mxu0 %v4151
        %4206 = vmatprep.subr.mxu0 0.0
        %4207 = vmatpush2.xpose.msra.mxu0 0.0
        %4208 = vmatprep.subr.mxu0 0.0
        %4209 = vmatpush2.xpose.msra.mxu0 0.0
        %4210 = vmatprep.subr.mxu0 0.0
        %4211 = vmatpush2.xpose.msra.mxu0 0.0
        %4212 = vmatprep.subr.mxu0 0.0
        %4213 = vmatpush2.xpose.msra.mxu0 0.0
        %4214 = vmatprep.subr.mxu0 0.0
        %4215 = vmatpush2.xpose.msra.mxu0 0.0
        %4216 = vmatprep.subr.mxu0 0.0
        %4217 = vmatpush2.xpose.msra.mxu0 0.0
        %4218 = vmatprep.subr.mxu0 0.0
        %4219 = vmatpush2.xpose.msra.mxu0 0.0
        %4220 = vmatprep.subr.mxu0 0.0
        %4221 = vmatpush2.xpose.msra.mxu0 0.0
        %4222 = vmatprep.subr.mxu0 0.0
        %4223 = vmatpush2.xpose.msra.mxu0 0.0
        %4224 = vmatprep.subr.mxu0 0.0
        %4225 = vmatpush2.xpose.msra.mxu0 0.0
        %4226 = vmatprep.subr.mxu0 0.0
        %4227 = vmatpush2.xpose.msra.mxu0 0.0
        %4228 = vmatprep.subr.mxu0 0.0
        %4229 = vmatpush2.xpose.msra.mxu0 0.0
        %4230 = vmatprep.subr.mxu0 0.0
        %4231 = vmatpush2.xpose.msra.mxu0 0.0
        %4232 = vmatprep.subr.mxu0 0.0
        %4233 = vmatpush2.xpose.msra.mxu0 0.0
        %4234 = vmatprep.subr.mxu0 0.0
        %4235 = vmatpush2.xpose.msra.mxu0 0.0
        %4236 = vmatprep.subr.mxu0 0.0
        %4237 = vmatpush2.xpose.msra.mxu0 0.0
        %4238 = vmatprep.mubr.f32.mxu0 0.0
        %4239 = vmatmul.mubr.f32.gmra.mxu0 %v3236
        %v4240 = vpop.f32.mrf.mxu0
        %v4241 = vadd.f32 0.0, %v4240
        %v4242 = vpop.f32.mrf.mxu0
        %4243 = vmatprep.mubr.f32.mxu0 0.0
        %4244 = vmatmul.mubr.f32.gmra.mxu0 %v3239
        %v4245 = vpop.f32.mrf.mxu0
        %v4246 = vadd.f32 0.0, %v4245
        %v4247 = vpop.f32.mrf.mxu0
        %4248 = vmatprep.mubr.f32.mxu0 0.0
        %4249 = vmatmul.mubr.f32.gmra.mxu0 %v3242
        %v4250 = vpop.f32.mrf.mxu0
        %v4251 = vadd.f32 0.0, %v4250
        %v4252 = vpop.f32.mrf.mxu0
        %4253 = vmatprep.mubr.f32.mxu0 0.0
        %4254 = vmatmul.mubr.f32.gmra.mxu0 %v3245
        %v4255 = vpop.f32.mrf.mxu0
        %v4256 = vadd.f32 0.0, %v4255
        %v4257 = vpop.f32.mrf.mxu0
        %4258 = vdwg.mxu0
        %v4259 = vmax.f32 %v4130, %v4241
        %v4260 = vmax.f32 %v4131, %v4246
        %v4261 = vmax.f32 %v4132, %v4251
        %v4262 = vmax.f32 %v4133, %v4256
        %v4263 = vsel %vm1979, 1, 0
        %v4264 = vsel %vm1980, 1, 0
        %v4265 = vsel %vm1981, 1, 0
        %v4266 = vsel %vm1982, 1, 0
        %v4267 = vsel %vm1983, 1, 0
        %v4268 = vsel %vm1984, 1, 0
        %v4269 = vsel %vm1985, 1, 0
        %v4270 = vsel %vm1986, 1, 0
        %v4271 = vcvt.s32.f32 %v4263
        %v4272 = vcvt.s32.f32 %v4264
        %v4273 = vcvt.s32.f32 %v4265
        %v4274 = vcvt.s32.f32 %v4266
        %v4275 = vcvt.s32.f32 %v4267
        %v4276 = vcvt.s32.f32 %v4268
        %v4277 = vcvt.s32.f32 %v4269
        %v4278 = vcvt.s32.f32 %v4270
        %v4280 = vsel %vm379, %v4271, 0
        %v4283 = vsel %vm379, %v4272, 0
        %v4286 = vsel %vm379, %v4273, 0
        %v4289 = vsel %vm379, %v4274, 0
        %v4292 = vsel %vm379, %v4275, 0
        %v4295 = vsel %vm379, %v4276, 0
        %v4298 = vsel %vm379, %v4277, 0
        %v4301 = vsel %vm379, %v4278, 0
        %4303 = vmatprep.subr.mxu0 0.0
        %4304 = vmatpush1.xpose.msra.mxu0 0.0
        %4305 = vmatprep.subr.mxu0 0.0
        %4306 = vmatpush1.xpose.msra.mxu0 0.0
        %4307 = vmatprep.subr.mxu0 0.0
        %4308 = vmatpush1.xpose.msra.mxu0 0.0
        %4309 = vmatprep.subr.mxu0 0.0
        %4310 = vmatpush1.xpose.msra.mxu0 0.0
        %4311 = vmatprep.subr.mxu0 0.0
        %4312 = vmatpush1.xpose.msra.mxu0 0.0
        %4313 = vmatprep.subr.mxu0 0.0
        %4314 = vmatpush1.xpose.msra.mxu0 0.0
        %4315 = vmatprep.subr.mxu0 0.0
        %4316 = vmatpush1.xpose.msra.mxu0 0.0
        %4317 = vmatprep.subr.mxu0 0.0
        %4318 = vmatpush1.xpose.msra.mxu0 0.0
        %4319 = vmatprep.subr.mxu0 0.0
        %4320 = vmatpush1.xpose.msra.mxu0 %v4301
        %4321 = vmatprep.subr.mxu0 0.0
        %4322 = vmatpush1.xpose.msra.mxu0 %v4298
        %4323 = vmatprep.subr.mxu0 0.0
        %4324 = vmatpush1.xpose.msra.mxu0 %v4295
        %4325 = vmatprep.subr.mxu0 0.0
        %4326 = vmatpush1.xpose.msra.mxu0 %v4292
        %4327 = vmatprep.subr.mxu0 0.0
        %4328 = vmatpush1.xpose.msra.mxu0 %v4289
        %4329 = vmatprep.subr.mxu0 0.0
        %4330 = vmatpush1.xpose.msra.mxu0 %v4286
        %4331 = vmatprep.subr.mxu0 0.0
        %4332 = vmatpush1.xpose.msra.mxu0 %v4283
        %4333 = vmatprep.subr.mxu0 0.0
        %4334 = vmatpush1.xpose.msra.mxu0 %v4280
        %4335 = vmatprep.subr.mxu0 0.0
        %4336 = vmatpush2.xpose.msra.mxu0 0.0
        %4337 = vmatprep.subr.mxu0 0.0
        %4338 = vmatpush2.xpose.msra.mxu0 0.0
        %4339 = vmatprep.subr.mxu0 0.0
        %4340 = vmatpush2.xpose.msra.mxu0 0.0
        %4341 = vmatprep.subr.mxu0 0.0
        %4342 = vmatpush2.xpose.msra.mxu0 0.0
        %4343 = vmatprep.subr.mxu0 0.0
        %4344 = vmatpush2.xpose.msra.mxu0 0.0
        %4345 = vmatprep.subr.mxu0 0.0
        %4346 = vmatpush2.xpose.msra.mxu0 0.0
        %4347 = vmatprep.subr.mxu0 0.0
        %4348 = vmatpush2.xpose.msra.mxu0 0.0
        %4349 = vmatprep.subr.mxu0 0.0
        %4350 = vmatpush2.xpose.msra.mxu0 0.0
        %4351 = vmatprep.subr.mxu0 0.0
        %4352 = vmatpush2.xpose.msra.mxu0 0.0
        %4353 = vmatprep.subr.mxu0 0.0
        %4354 = vmatpush2.xpose.msra.mxu0 0.0
        %4355 = vmatprep.subr.mxu0 0.0
        %4356 = vmatpush2.xpose.msra.mxu0 0.0
        %4357 = vmatprep.subr.mxu0 0.0
        %4358 = vmatpush2.xpose.msra.mxu0 0.0
        %4359 = vmatprep.subr.mxu0 0.0
        %4360 = vmatpush2.xpose.msra.mxu0 0.0
        %4361 = vmatprep.subr.mxu0 0.0
        %4362 = vmatpush2.xpose.msra.mxu0 0.0
        %4363 = vmatprep.subr.mxu0 0.0
        %4364 = vmatpush2.xpose.msra.mxu0 0.0
        %4365 = vmatprep.subr.mxu0 0.0
        %4366 = vmatpush2.xpose.msra.mxu0 0.0
        %4367 = vmatprep.mubr.f32.mxu0 0.0
        %4368 = vmatmul.mubr.f32.gmra.mxu0 %v3236
        %v4369 = vpop.f32.mrf.mxu0
        %v4370 = vadd.f32 0.0, %v4369
        %v4371 = vpop.f32.mrf.mxu0
        %4372 = vmatprep.mubr.f32.mxu0 0.0
        %4373 = vmatmul.mubr.f32.gmra.mxu0 %v3239
        %v4374 = vpop.f32.mrf.mxu0
        %v4375 = vadd.f32 0.0, %v4374
        %v4376 = vpop.f32.mrf.mxu0
        %4377 = vmatprep.mubr.f32.mxu0 0.0
        %4378 = vmatmul.mubr.f32.gmra.mxu0 %v3242
        %v4379 = vpop.f32.mrf.mxu0
        %v4380 = vadd.f32 0.0, %v4379
        %v4381 = vpop.f32.mrf.mxu0
        %4382 = vmatprep.mubr.f32.mxu0 0.0
        %4383 = vmatmul.mubr.f32.gmra.mxu0 %v3245
        %v4384 = vpop.f32.mrf.mxu0
        %v4385 = vadd.f32 0.0, %v4384
        %v4386 = vpop.f32.mrf.mxu0
        %4387 = vdwg.mxu0
        %v4388 = vmax.f32 %v4259, %v4370
        %v4389 = vmax.f32 %v4260, %v4375
        %v4390 = vmax.f32 %v4261, %v4380
        %v4391 = vmax.f32 %v4262, %v4385
        %v4392 = vsel %vm2155, 1, 0
        %v4393 = vsel %vm2156, 1, 0
        %v4394 = vsel %vm2157, 1, 0
        %v4395 = vsel %vm2158, 1, 0
        %v4396 = vsel %vm2159, 1, 0
        %v4397 = vsel %vm2160, 1, 0
        %v4398 = vsel %vm2161, 1, 0
        %v4399 = vsel %vm2162, 1, 0
        %v4400 = vcvt.s32.f32 %v4392
        %v4401 = vcvt.s32.f32 %v4393
        %v4402 = vcvt.s32.f32 %v4394
        %v4403 = vcvt.s32.f32 %v4395
        %v4404 = vcvt.s32.f32 %v4396
        %v4405 = vcvt.s32.f32 %v4397
        %v4406 = vcvt.s32.f32 %v4398
        %v4407 = vcvt.s32.f32 %v4399
        %v4409 = vsel %vm379, %v4400, 0
        %v4412 = vsel %vm379, %v4401, 0
        %v4415 = vsel %vm379, %v4402, 0
        %v4418 = vsel %vm379, %v4403, 0
        %v4421 = vsel %vm379, %v4404, 0
        %v4424 = vsel %vm379, %v4405, 0
        %v4427 = vsel %vm379, %v4406, 0
        %v4430 = vsel %vm379, %v4407, 0
        %4432 = vmatprep.subr.mxu0 0.0
        %4433 = vmatpush1.xpose.msra.mxu0 0.0
        %4434 = vmatprep.subr.mxu0 0.0
        %4435 = vmatpush1.xpose.msra.mxu0 0.0
        %4436 = vmatprep.subr.mxu0 0.0
        %4437 = vmatpush1.xpose.msra.mxu0 0.0
        %4438 = vmatprep.subr.mxu0 0.0
        %4439 = vmatpush1.xpose.msra.mxu0 0.0
        %4440 = vmatprep.subr.mxu0 0.0
        %4441 = vmatpush1.xpose.msra.mxu0 0.0
        %4442 = vmatprep.subr.mxu0 0.0
        %4443 = vmatpush1.xpose.msra.mxu0 0.0
        %4444 = vmatprep.subr.mxu0 0.0
        %4445 = vmatpush1.xpose.msra.mxu0 0.0
        %4446 = vmatprep.subr.mxu0 0.0
        %4447 = vmatpush1.xpose.msra.mxu0 0.0
        %4448 = vmatprep.subr.mxu0 0.0
        %4449 = vmatpush1.xpose.msra.mxu0 %v4430
        %4450 = vmatprep.subr.mxu0 0.0
        %4451 = vmatpush1.xpose.msra.mxu0 %v4427
        %4452 = vmatprep.subr.mxu0 0.0
        %4453 = vmatpush1.xpose.msra.mxu0 %v4424
        %4454 = vmatprep.subr.mxu0 0.0
        %4455 = vmatpush1.xpose.msra.mxu0 %v4421
        %4456 = vmatprep.subr.mxu0 0.0
        %4457 = vmatpush1.xpose.msra.mxu0 %v4418
        %4458 = vmatprep.subr.mxu0 0.0
        %4459 = vmatpush1.xpose.msra.mxu0 %v4415
        %4460 = vmatprep.subr.mxu0 0.0
        %4461 = vmatpush1.xpose.msra.mxu0 %v4412
        %4462 = vmatprep.subr.mxu0 0.0
        %4463 = vmatpush1.xpose.msra.mxu0 %v4409
        %4464 = vmatprep.subr.mxu0 0.0
        %4465 = vmatpush2.xpose.msra.mxu0 0.0
        %4466 = vmatprep.subr.mxu0 0.0
        %4467 = vmatpush2.xpose.msra.mxu0 0.0
        %4468 = vmatprep.subr.mxu0 0.0
        %4469 = vmatpush2.xpose.msra.mxu0 0.0
        %4470 = vmatprep.subr.mxu0 0.0
        %4471 = vmatpush2.xpose.msra.mxu0 0.0
        %4472 = vmatprep.subr.mxu0 0.0
        %4473 = vmatpush2.xpose.msra.mxu0 0.0
        %4474 = vmatprep.subr.mxu0 0.0
        %4475 = vmatpush2.xpose.msra.mxu0 0.0
        %4476 = vmatprep.subr.mxu0 0.0
        %4477 = vmatpush2.xpose.msra.mxu0 0.0
        %4478 = vmatprep.subr.mxu0 0.0
        %4479 = vmatpush2.xpose.msra.mxu0 0.0
        %4480 = vmatprep.subr.mxu0 0.0
        %4481 = vmatpush2.xpose.msra.mxu0 0.0
        %4482 = vmatprep.subr.mxu0 0.0
        %4483 = vmatpush2.xpose.msra.mxu0 0.0
        %4484 = vmatprep.subr.mxu0 0.0
        %4485 = vmatpush2.xpose.msra.mxu0 0.0
        %4486 = vmatprep.subr.mxu0 0.0
        %4487 = vmatpush2.xpose.msra.mxu0 0.0
        %4488 = vmatprep.subr.mxu0 0.0
        %4489 = vmatpush2.xpose.msra.mxu0 0.0
        %4490 = vmatprep.subr.mxu0 0.0
        %4491 = vmatpush2.xpose.msra.mxu0 0.0
        %4492 = vmatprep.subr.mxu0 0.0
        %4493 = vmatpush2.xpose.msra.mxu0 0.0
        %4494 = vmatprep.subr.mxu0 0.0
        %4495 = vmatpush2.xpose.msra.mxu0 0.0
        %4496 = vmatprep.mubr.f32.mxu0 0.0
        %4497 = vmatmul.mubr.f32.gmra.mxu0 %v3236
        %v4498 = vpop.f32.mrf.mxu0
        %v4499 = vadd.f32 0.0, %v4498
        %v4500 = vpop.f32.mrf.mxu0
        %4501 = vmatprep.mubr.f32.mxu0 0.0
        %4502 = vmatmul.mubr.f32.gmra.mxu0 %v3239
        %v4503 = vpop.f32.mrf.mxu0
        %v4504 = vadd.f32 0.0, %v4503
        %v4505 = vpop.f32.mrf.mxu0
        %4506 = vmatprep.mubr.f32.mxu0 0.0
        %4507 = vmatmul.mubr.f32.gmra.mxu0 %v3242
        %v4508 = vpop.f32.mrf.mxu0
        %v4509 = vadd.f32 0.0, %v4508
        %v4510 = vpop.f32.mrf.mxu0
        %4511 = vmatprep.mubr.f32.mxu0 0.0
        %4512 = vmatmul.mubr.f32.gmra.mxu0 %v3245
        %v4513 = vpop.f32.mrf.mxu0
        %v4514 = vadd.f32 0.0, %v4513
        %v4515 = vpop.f32.mrf.mxu0
        %4516 = vdwg.mxu0
        %v4517 = vmax.f32 %v4388, %v4499
        %v4518 = vmax.f32 %v4389, %v4504
        %v4519 = vmax.f32 %v4390, %v4509
        %v4520 = vmax.f32 %v4391, %v4514
        %v4521 = vsel %vm2331, 1, 0
        %v4522 = vsel %vm2332, 1, 0
        %v4523 = vsel %vm2333, 1, 0
        %v4524 = vsel %vm2334, 1, 0
        %v4525 = vsel %vm2335, 1, 0
        %v4526 = vsel %vm2336, 1, 0
        %v4527 = vsel %vm2337, 1, 0
        %v4528 = vsel %vm2338, 1, 0
        %v4529 = vcvt.s32.f32 %v4521
        %v4530 = vcvt.s32.f32 %v4522
        %v4531 = vcvt.s32.f32 %v4523
        %v4532 = vcvt.s32.f32 %v4524
        %v4533 = vcvt.s32.f32 %v4525
        %v4534 = vcvt.s32.f32 %v4526
        %v4535 = vcvt.s32.f32 %v4527
        %v4536 = vcvt.s32.f32 %v4528
        %v4538 = vsel %vm379, %v4529, 0
        %v4541 = vsel %vm379, %v4530, 0
        %v4544 = vsel %vm379, %v4531, 0
        %v4547 = vsel %vm379, %v4532, 0
        %v4550 = vsel %vm379, %v4533, 0
        %v4553 = vsel %vm379, %v4534, 0
        %v4556 = vsel %vm379, %v4535, 0
        %v4559 = vsel %vm379, %v4536, 0
        %4561 = vmatprep.subr.mxu0 0.0
        %4562 = vmatpush1.xpose.msra.mxu0 0.0
        %4563 = vmatprep.subr.mxu0 0.0
        %4564 = vmatpush1.xpose.msra.mxu0 0.0
        %4565 = vmatprep.subr.mxu0 0.0
        %4566 = vmatpush1.xpose.msra.mxu0 0.0
        %4567 = vmatprep.subr.mxu0 0.0
        %4568 = vmatpush1.xpose.msra.mxu0 0.0
        %4569 = vmatprep.subr.mxu0 0.0
        %4570 = vmatpush1.xpose.msra.mxu0 0.0
        %4571 = vmatprep.subr.mxu0 0.0
        %4572 = vmatpush1.xpose.msra.mxu0 0.0
        %4573 = vmatprep.subr.mxu0 0.0
        %4574 = vmatpush1.xpose.msra.mxu0 0.0
        %4575 = vmatprep.subr.mxu0 0.0
        %4576 = vmatpush1.xpose.msra.mxu0 0.0
        %4577 = vmatprep.subr.mxu0 0.0
        %4578 = vmatpush1.xpose.msra.mxu0 %v4559
        %4579 = vmatprep.subr.mxu0 0.0
        %4580 = vmatpush1.xpose.msra.mxu0 %v4556
        %4581 = vmatprep.subr.mxu0 0.0
        %4582 = vmatpush1.xpose.msra.mxu0 %v4553
        %4583 = vmatprep.subr.mxu0 0.0
        %4584 = vmatpush1.xpose.msra.mxu0 %v4550
        %4585 = vmatprep.subr.mxu0 0.0
        %4586 = vmatpush1.xpose.msra.mxu0 %v4547
        %4587 = vmatprep.subr.mxu0 0.0
        %4588 = vmatpush1.xpose.msra.mxu0 %v4544
        %4589 = vmatprep.subr.mxu0 0.0
        %4590 = vmatpush1.xpose.msra.mxu0 %v4541
        %4591 = vmatprep.subr.mxu0 0.0
        %4592 = vmatpush1.xpose.msra.mxu0 %v4538
        %4593 = vmatprep.subr.mxu0 0.0
        %4594 = vmatpush2.xpose.msra.mxu0 0.0
        %4595 = vmatprep.subr.mxu0 0.0
        %4596 = vmatpush2.xpose.msra.mxu0 0.0
        %4597 = vmatprep.subr.mxu0 0.0
        %4598 = vmatpush2.xpose.msra.mxu0 0.0
        %4599 = vmatprep.subr.mxu0 0.0
        %4600 = vmatpush2.xpose.msra.mxu0 0.0
        %4601 = vmatprep.subr.mxu0 0.0
        %4602 = vmatpush2.xpose.msra.mxu0 0.0
        %4603 = vmatprep.subr.mxu0 0.0
        %4604 = vmatpush2.xpose.msra.mxu0 0.0
        %4605 = vmatprep.subr.mxu0 0.0
        %4606 = vmatpush2.xpose.msra.mxu0 0.0
        %4607 = vmatprep.subr.mxu0 0.0
        %4608 = vmatpush2.xpose.msra.mxu0 0.0
        %4609 = vmatprep.subr.mxu0 0.0
        %4610 = vmatpush2.xpose.msra.mxu0 0.0
        %4611 = vmatprep.subr.mxu0 0.0
        %4612 = vmatpush2.xpose.msra.mxu0 0.0
        %4613 = vmatprep.subr.mxu0 0.0
        %4614 = vmatpush2.xpose.msra.mxu0 0.0
        %4615 = vmatprep.subr.mxu0 0.0
        %4616 = vmatpush2.xpose.msra.mxu0 0.0
        %4617 = vmatprep.subr.mxu0 0.0
        %4618 = vmatpush2.xpose.msra.mxu0 0.0
        %4619 = vmatprep.subr.mxu0 0.0
        %4620 = vmatpush2.xpose.msra.mxu0 0.0
        %4621 = vmatprep.subr.mxu0 0.0
        %4622 = vmatpush2.xpose.msra.mxu0 0.0
        %4623 = vmatprep.subr.mxu0 0.0
        %4624 = vmatpush2.xpose.msra.mxu0 0.0
        %4625 = vmatprep.mubr.f32.mxu0 0.0
        %4626 = vmatmul.mubr.f32.gmra.mxu0 %v3236
        %v4627 = vpop.f32.mrf.mxu0
        %v4628 = vadd.f32 0.0, %v4627
        %v4629 = vpop.f32.mrf.mxu0
        %4630 = vmatprep.mubr.f32.mxu0 0.0
        %4631 = vmatmul.mubr.f32.gmra.mxu0 %v3239
        %v4632 = vpop.f32.mrf.mxu0
        %v4633 = vadd.f32 0.0, %v4632
        %v4634 = vpop.f32.mrf.mxu0
        %4635 = vmatprep.mubr.f32.mxu0 0.0
        %4636 = vmatmul.mubr.f32.gmra.mxu0 %v3242
        %v4637 = vpop.f32.mrf.mxu0
        %v4638 = vadd.f32 0.0, %v4637
        %v4639 = vpop.f32.mrf.mxu0
        %4640 = vmatprep.mubr.f32.mxu0 0.0
        %4641 = vmatmul.mubr.f32.gmra.mxu0 %v3245
        %v4642 = vpop.f32.mrf.mxu0
        %v4643 = vadd.f32 0.0, %v4642
        %v4644 = vpop.f32.mrf.mxu0
        %4645 = vdwg.mxu0
        %v4646 = vmax.f32 %v4517, %v4628
        %v4647 = vmax.f32 %v4518, %v4633
        %v4648 = vmax.f32 %v4519, %v4638
        %v4649 = vmax.f32 %v4520, %v4643
        %v4650 = vsel %vm2507, 1, 0
        %v4651 = vsel %vm2508, 1, 0
        %v4652 = vsel %vm2509, 1, 0
        %v4653 = vsel %vm2510, 1, 0
        %v4654 = vsel %vm2511, 1, 0
        %v4655 = vsel %vm2512, 1, 0
        %v4656 = vsel %vm2513, 1, 0
        %v4657 = vsel %vm2514, 1, 0
        %v4658 = vcvt.s32.f32 %v4650
        %v4659 = vcvt.s32.f32 %v4651
        %v4660 = vcvt.s32.f32 %v4652
        %v4661 = vcvt.s32.f32 %v4653
        %v4662 = vcvt.s32.f32 %v4654
        %v4663 = vcvt.s32.f32 %v4655
        %v4664 = vcvt.s32.f32 %v4656
        %v4665 = vcvt.s32.f32 %v4657
        %v4667 = vsel %vm379, %v4658, 0
        %v4670 = vsel %vm379, %v4659, 0
        %v4673 = vsel %vm379, %v4660, 0
        %v4676 = vsel %vm379, %v4661, 0
        %v4679 = vsel %vm379, %v4662, 0
        %v4682 = vsel %vm379, %v4663, 0
        %v4685 = vsel %vm379, %v4664, 0
        %v4688 = vsel %vm379, %v4665, 0
        %4690 = vmatprep.subr.mxu0 0.0
        %4691 = vmatpush1.xpose.msra.mxu0 0.0
        %4692 = vmatprep.subr.mxu0 0.0
        %4693 = vmatpush1.xpose.msra.mxu0 0.0
        %4694 = vmatprep.subr.mxu0 0.0
        %4695 = vmatpush1.xpose.msra.mxu0 0.0
        %4696 = vmatprep.subr.mxu0 0.0
        %4697 = vmatpush1.xpose.msra.mxu0 0.0
        %4698 = vmatprep.subr.mxu0 0.0
        %4699 = vmatpush1.xpose.msra.mxu0 0.0
        %4700 = vmatprep.subr.mxu0 0.0
        %4701 = vmatpush1.xpose.msra.mxu0 0.0
        %4702 = vmatprep.subr.mxu0 0.0
        %4703 = vmatpush1.xpose.msra.mxu0 0.0
        %4704 = vmatprep.subr.mxu0 0.0
        %4705 = vmatpush1.xpose.msra.mxu0 0.0
        %4706 = vmatprep.subr.mxu0 0.0
        %4707 = vmatpush1.xpose.msra.mxu0 %v4688
        %4708 = vmatprep.subr.mxu0 0.0
        %4709 = vmatpush1.xpose.msra.mxu0 %v4685
        %4710 = vmatprep.subr.mxu0 0.0
        %4711 = vmatpush1.xpose.msra.mxu0 %v4682
        %4712 = vmatprep.subr.mxu0 0.0
        %4713 = vmatpush1.xpose.msra.mxu0 %v4679
        %4714 = vmatprep.subr.mxu0 0.0
        %4715 = vmatpush1.xpose.msra.mxu0 %v4676
        %4716 = vmatprep.subr.mxu0 0.0
        %4717 = vmatpush1.xpose.msra.mxu0 %v4673
        %4718 = vmatprep.subr.mxu0 0.0
        %4719 = vmatpush1.xpose.msra.mxu0 %v4670
        %4720 = vmatprep.subr.mxu0 0.0
        %4721 = vmatpush1.xpose.msra.mxu0 %v4667
        %4722 = vmatprep.subr.mxu0 0.0
        %4723 = vmatpush2.xpose.msra.mxu0 0.0
        %4724 = vmatprep.subr.mxu0 0.0
        %4725 = vmatpush2.xpose.msra.mxu0 0.0
        %4726 = vmatprep.subr.mxu0 0.0
        %4727 = vmatpush2.xpose.msra.mxu0 0.0
        %4728 = vmatprep.subr.mxu0 0.0
        %4729 = vmatpush2.xpose.msra.mxu0 0.0
        %4730 = vmatprep.subr.mxu0 0.0
        %4731 = vmatpush2.xpose.msra.mxu0 0.0
        %4732 = vmatprep.subr.mxu0 0.0
        %4733 = vmatpush2.xpose.msra.mxu0 0.0
        %4734 = vmatprep.subr.mxu0 0.0
        %4735 = vmatpush2.xpose.msra.mxu0 0.0
        %4736 = vmatprep.subr.mxu0 0.0
        %4737 = vmatpush2.xpose.msra.mxu0 0.0
        %4738 = vmatprep.subr.mxu0 0.0
        %4739 = vmatpush2.xpose.msra.mxu0 0.0
        %4740 = vmatprep.subr.mxu0 0.0
        %4741 = vmatpush2.xpose.msra.mxu0 0.0
        %4742 = vmatprep.subr.mxu0 0.0
        %4743 = vmatpush2.xpose.msra.mxu0 0.0
        %4744 = vmatprep.subr.mxu0 0.0
        %4745 = vmatpush2.xpose.msra.mxu0 0.0
        %4746 = vmatprep.subr.mxu0 0.0
        %4747 = vmatpush2.xpose.msra.mxu0 0.0
        %4748 = vmatprep.subr.mxu0 0.0
        %4749 = vmatpush2.xpose.msra.mxu0 0.0
        %4750 = vmatprep.subr.mxu0 0.0
        %4751 = vmatpush2.xpose.msra.mxu0 0.0
        %4752 = vmatprep.subr.mxu0 0.0
        %4753 = vmatpush2.xpose.msra.mxu0 0.0
        %4754 = vmatprep.mubr.f32.mxu0 0.0
        %4755 = vmatmul.mubr.f32.gmra.mxu0 %v3236
        %v4756 = vpop.f32.mrf.mxu0
        %v4757 = vadd.f32 0.0, %v4756
        %v4758 = vpop.f32.mrf.mxu0
        %4759 = vmatprep.mubr.f32.mxu0 0.0
        %4760 = vmatmul.mubr.f32.gmra.mxu0 %v3239
        %v4761 = vpop.f32.mrf.mxu0
        %v4762 = vadd.f32 0.0, %v4761
        %v4763 = vpop.f32.mrf.mxu0
        %4764 = vmatprep.mubr.f32.mxu0 0.0
        %4765 = vmatmul.mubr.f32.gmra.mxu0 %v3242
        %v4766 = vpop.f32.mrf.mxu0
        %v4767 = vadd.f32 0.0, %v4766
        %v4768 = vpop.f32.mrf.mxu0
        %4769 = vmatprep.mubr.f32.mxu0 0.0
        %4770 = vmatmul.mubr.f32.gmra.mxu0 %v3245
        %v4771 = vpop.f32.mrf.mxu0
        %v4772 = vadd.f32 0.0, %v4771
        %v4773 = vpop.f32.mrf.mxu0
        %4774 = vdwg.mxu0
        %v4775 = vmax.f32 %v4646, %v4757
        %v4776 = vmax.f32 %v4647, %v4762
        %v4777 = vmax.f32 %v4648, %v4767
        %v4778 = vmax.f32 %v4649, %v4772
        %v4779 = vsel %vm2683, 1, 0
        %v4780 = vsel %vm2684, 1, 0
        %v4781 = vsel %vm2685, 1, 0
        %v4782 = vsel %vm2686, 1, 0
        %v4783 = vsel %vm2687, 1, 0
        %v4784 = vsel %vm2688, 1, 0
        %v4785 = vsel %vm2689, 1, 0
        %v4786 = vsel %vm2690, 1, 0
        %v4787 = vcvt.s32.f32 %v4779
        %v4788 = vcvt.s32.f32 %v4780
        %v4789 = vcvt.s32.f32 %v4781
        %v4790 = vcvt.s32.f32 %v4782
        %v4791 = vcvt.s32.f32 %v4783
        %v4792 = vcvt.s32.f32 %v4784
        %v4793 = vcvt.s32.f32 %v4785
        %v4794 = vcvt.s32.f32 %v4786
        %v4796 = vsel %vm379, %v4787, 0
        %v4799 = vsel %vm379, %v4788, 0
        %v4802 = vsel %vm379, %v4789, 0
        %v4805 = vsel %vm379, %v4790, 0
        %v4808 = vsel %vm379, %v4791, 0
        %v4811 = vsel %vm379, %v4792, 0
        %v4814 = vsel %vm379, %v4793, 0
        %v4817 = vsel %vm379, %v4794, 0
        %4819 = vmatprep.subr.mxu0 0.0
        %4820 = vmatpush1.xpose.msra.mxu0 0.0
        %4821 = vmatprep.subr.mxu0 0.0
        %4822 = vmatpush1.xpose.msra.mxu0 0.0
        %4823 = vmatprep.subr.mxu0 0.0
        %4824 = vmatpush1.xpose.msra.mxu0 0.0
        %4825 = vmatprep.subr.mxu0 0.0
        %4826 = vmatpush1.xpose.msra.mxu0 0.0
        %4827 = vmatprep.subr.mxu0 0.0
        %4828 = vmatpush1.xpose.msra.mxu0 0.0
        %4829 = vmatprep.subr.mxu0 0.0
        %4830 = vmatpush1.xpose.msra.mxu0 0.0
        %4831 = vmatprep.subr.mxu0 0.0
        %4832 = vmatpush1.xpose.msra.mxu0 0.0
        %4833 = vmatprep.subr.mxu0 0.0
        %4834 = vmatpush1.xpose.msra.mxu0 0.0
        %4835 = vmatprep.subr.mxu0 0.0
        %4836 = vmatpush1.xpose.msra.mxu0 %v4817
        %4837 = vmatprep.subr.mxu0 0.0
        %4838 = vmatpush1.xpose.msra.mxu0 %v4814
        %4839 = vmatprep.subr.mxu0 0.0
        %4840 = vmatpush1.xpose.msra.mxu0 %v4811
        %4841 = vmatprep.subr.mxu0 0.0
        %4842 = vmatpush1.xpose.msra.mxu0 %v4808
        %4843 = vmatprep.subr.mxu0 0.0
        %4844 = vmatpush1.xpose.msra.mxu0 %v4805
        %4845 = vmatprep.subr.mxu0 0.0
        %4846 = vmatpush1.xpose.msra.mxu0 %v4802
        %4847 = vmatprep.subr.mxu0 0.0
        %4848 = vmatpush1.xpose.msra.mxu0 %v4799
        %4849 = vmatprep.subr.mxu0 0.0
        %4850 = vmatpush1.xpose.msra.mxu0 %v4796
        %4851 = vmatprep.subr.mxu0 0.0
        %4852 = vmatpush2.xpose.msra.mxu0 0.0
        %4853 = vmatprep.subr.mxu0 0.0
        %4854 = vmatpush2.xpose.msra.mxu0 0.0
        %4855 = vmatprep.subr.mxu0 0.0
        %4856 = vmatpush2.xpose.msra.mxu0 0.0
        %4857 = vmatprep.subr.mxu0 0.0
        %4858 = vmatpush2.xpose.msra.mxu0 0.0
        %4859 = vmatprep.subr.mxu0 0.0
        %4860 = vmatpush2.xpose.msra.mxu0 0.0
        %4861 = vmatprep.subr.mxu0 0.0
        %4862 = vmatpush2.xpose.msra.mxu0 0.0
        %4863 = vmatprep.subr.mxu0 0.0
        %4864 = vmatpush2.xpose.msra.mxu0 0.0
        %4865 = vmatprep.subr.mxu0 0.0
        %4866 = vmatpush2.xpose.msra.mxu0 0.0
        %4867 = vmatprep.subr.mxu0 0.0
        %4868 = vmatpush2.xpose.msra.mxu0 0.0
        %4869 = vmatprep.subr.mxu0 0.0
        %4870 = vmatpush2.xpose.msra.mxu0 0.0
        %4871 = vmatprep.subr.mxu0 0.0
        %4872 = vmatpush2.xpose.msra.mxu0 0.0
        %4873 = vmatprep.subr.mxu0 0.0
        %4874 = vmatpush2.xpose.msra.mxu0 0.0
        %4875 = vmatprep.subr.mxu0 0.0
        %4876 = vmatpush2.xpose.msra.mxu0 0.0
        %4877 = vmatprep.subr.mxu0 0.0
        %4878 = vmatpush2.xpose.msra.mxu0 0.0
        %4879 = vmatprep.subr.mxu0 0.0
        %4880 = vmatpush2.xpose.msra.mxu0 0.0
        %4881 = vmatprep.subr.mxu0 0.0
        %4882 = vmatpush2.xpose.msra.mxu0 0.0
        %4883 = vmatprep.mubr.f32.mxu0 0.0
        %4884 = vmatmul.mubr.f32.gmra.mxu0 %v3236
        %v4885 = vpop.f32.mrf.mxu0
        %v4886 = vadd.f32 0.0, %v4885
        %v4887 = vpop.f32.mrf.mxu0
        %4888 = vmatprep.mubr.f32.mxu0 0.0
        %4889 = vmatmul.mubr.f32.gmra.mxu0 %v3239
        %v4890 = vpop.f32.mrf.mxu0
        %v4891 = vadd.f32 0.0, %v4890
        %v4892 = vpop.f32.mrf.mxu0
        %4893 = vmatprep.mubr.f32.mxu0 0.0
        %4894 = vmatmul.mubr.f32.gmra.mxu0 %v3242
        %v4895 = vpop.f32.mrf.mxu0
        %v4896 = vadd.f32 0.0, %v4895
        %v4897 = vpop.f32.mrf.mxu0
        %4898 = vmatprep.mubr.f32.mxu0 0.0
        %4899 = vmatmul.mubr.f32.gmra.mxu0 %v3245
        %v4900 = vpop.f32.mrf.mxu0
        %v4901 = vadd.f32 0.0, %v4900
        %v4902 = vpop.f32.mrf.mxu0
        %4903 = vdwg.mxu0
        %v4904 = vmax.f32 %v4775, %v4886
        %v4905 = vmax.f32 %v4776, %v4891
        %v4906 = vmax.f32 %v4777, %v4896
        %v4907 = vmax.f32 %v4778, %v4901
        %v4908 = vsel %vm2859, 1, 0
        %v4909 = vsel %vm2860, 1, 0
        %v4910 = vsel %vm2861, 1, 0
        %v4911 = vsel %vm2862, 1, 0
        %v4912 = vsel %vm2863, 1, 0
        %v4913 = vsel %vm2864, 1, 0
        %v4914 = vsel %vm2865, 1, 0
        %v4915 = vsel %vm2866, 1, 0
        %v4916 = vcvt.s32.f32 %v4908
        %v4917 = vcvt.s32.f32 %v4909
        %v4918 = vcvt.s32.f32 %v4910
        %v4919 = vcvt.s32.f32 %v4911
        %v4920 = vcvt.s32.f32 %v4912
        %v4921 = vcvt.s32.f32 %v4913
        %v4922 = vcvt.s32.f32 %v4914
        %v4923 = vcvt.s32.f32 %v4915
        %v4925 = vsel %vm379, %v4916, 0
        %v4928 = vsel %vm379, %v4917, 0
        %v4931 = vsel %vm379, %v4918, 0
        %v4934 = vsel %vm379, %v4919, 0
        %v4937 = vsel %vm379, %v4920, 0
        %v4940 = vsel %vm379, %v4921, 0
        %v4943 = vsel %vm379, %v4922, 0
        %v4946 = vsel %vm379, %v4923, 0
        %4948 = vmatprep.subr.mxu0 0.0
        %4949 = vmatpush1.xpose.msra.mxu0 0.0
        %4950 = vmatprep.subr.mxu0 0.0
        %4951 = vmatpush1.xpose.msra.mxu0 0.0
        %4952 = vmatprep.subr.mxu0 0.0
        %4953 = vmatpush1.xpose.msra.mxu0 0.0
        %4954 = vmatprep.subr.mxu0 0.0
        %4955 = vmatpush1.xpose.msra.mxu0 0.0
        %4956 = vmatprep.subr.mxu0 0.0
        %4957 = vmatpush1.xpose.msra.mxu0 0.0
        %4958 = vmatprep.subr.mxu0 0.0
        %4959 = vmatpush1.xpose.msra.mxu0 0.0
        %4960 = vmatprep.subr.mxu0 0.0
        %4961 = vmatpush1.xpose.msra.mxu0 0.0
        %4962 = vmatprep.subr.mxu0 0.0
        %4963 = vmatpush1.xpose.msra.mxu0 0.0
        %4964 = vmatprep.subr.mxu0 0.0
        %4965 = vmatpush1.xpose.msra.mxu0 %v4946
        %4966 = vmatprep.subr.mxu0 0.0
        %4967 = vmatpush1.xpose.msra.mxu0 %v4943
        %4968 = vmatprep.subr.mxu0 0.0
        %4969 = vmatpush1.xpose.msra.mxu0 %v4940
        %4970 = vmatprep.subr.mxu0 0.0
        %4971 = vmatpush1.xpose.msra.mxu0 %v4937
        %4972 = vmatprep.subr.mxu0 0.0
        %4973 = vmatpush1.xpose.msra.mxu0 %v4934
        %4974 = vmatprep.subr.mxu0 0.0
        %4975 = vmatpush1.xpose.msra.mxu0 %v4931
        %4976 = vmatprep.subr.mxu0 0.0
        %4977 = vmatpush1.xpose.msra.mxu0 %v4928
        %4978 = vmatprep.subr.mxu0 0.0
        %4979 = vmatpush1.xpose.msra.mxu0 %v4925
        %4980 = vmatprep.subr.mxu0 0.0
        %4981 = vmatpush2.xpose.msra.mxu0 0.0
        %4982 = vmatprep.subr.mxu0 0.0
        %4983 = vmatpush2.xpose.msra.mxu0 0.0
        %4984 = vmatprep.subr.mxu0 0.0
        %4985 = vmatpush2.xpose.msra.mxu0 0.0
        %4986 = vmatprep.subr.mxu0 0.0
        %4987 = vmatpush2.xpose.msra.mxu0 0.0
        %4988 = vmatprep.subr.mxu0 0.0
        %4989 = vmatpush2.xpose.msra.mxu0 0.0
        %4990 = vmatprep.subr.mxu0 0.0
        %4991 = vmatpush2.xpose.msra.mxu0 0.0
        %4992 = vmatprep.subr.mxu0 0.0
        %4993 = vmatpush2.xpose.msra.mxu0 0.0
        %4994 = vmatprep.subr.mxu0 0.0
        %4995 = vmatpush2.xpose.msra.mxu0 0.0
        %4996 = vmatprep.subr.mxu0 0.0
        %4997 = vmatpush2.xpose.msra.mxu0 0.0
        %4998 = vmatprep.subr.mxu0 0.0
        %4999 = vmatpush2.xpose.msra.mxu0 0.0
        %5000 = vmatprep.subr.mxu0 0.0
        %5001 = vmatpush2.xpose.msra.mxu0 0.0
        %5002 = vmatprep.subr.mxu0 0.0
        %5003 = vmatpush2.xpose.msra.mxu0 0.0
        %5004 = vmatprep.subr.mxu0 0.0
        %5005 = vmatpush2.xpose.msra.mxu0 0.0
        %5006 = vmatprep.subr.mxu0 0.0
        %5007 = vmatpush2.xpose.msra.mxu0 0.0
        %5008 = vmatprep.subr.mxu0 0.0
        %5009 = vmatpush2.xpose.msra.mxu0 0.0
        %5010 = vmatprep.subr.mxu0 0.0
        %5011 = vmatpush2.xpose.msra.mxu0 0.0
        %5012 = vmatprep.mubr.f32.mxu0 0.0
        %5013 = vmatmul.mubr.f32.gmra.mxu0 %v3236
        %v5014 = vpop.f32.mrf.mxu0
        %v5015 = vadd.f32 0.0, %v5014
        %v5016 = vpop.f32.mrf.mxu0
        %5017 = vmatprep.mubr.f32.mxu0 0.0
        %5018 = vmatmul.mubr.f32.gmra.mxu0 %v3239
        %v5019 = vpop.f32.mrf.mxu0
        %v5020 = vadd.f32 0.0, %v5019
        %v5021 = vpop.f32.mrf.mxu0
        %5022 = vmatprep.mubr.f32.mxu0 0.0
        %5023 = vmatmul.mubr.f32.gmra.mxu0 %v3242
        %v5024 = vpop.f32.mrf.mxu0
        %v5025 = vadd.f32 0.0, %v5024
        %v5026 = vpop.f32.mrf.mxu0
        %5027 = vmatprep.mubr.f32.mxu0 0.0
        %5028 = vmatmul.mubr.f32.gmra.mxu0 %v3245
        %v5029 = vpop.f32.mrf.mxu0
        %v5030 = vadd.f32 0.0, %v5029
        %v5031 = vpop.f32.mrf.mxu0
        %5032 = vdwg.mxu0
        %v5033 = vmax.f32 %v4904, %v5015
        %v5034 = vmax.f32 %v4905, %v5020
        %v5035 = vmax.f32 %v4906, %v5025
        %v5036 = vmax.f32 %v4907, %v5030
        %v5037 = vsel %vm3035, 1, 0
        %v5038 = vsel %vm3036, 1, 0
        %v5039 = vsel %vm3037, 1, 0
        %v5040 = vsel %vm3038, 1, 0
        %v5041 = vsel %vm3039, 1, 0
        %v5042 = vsel %vm3040, 1, 0
        %v5043 = vsel %vm3041, 1, 0
        %v5044 = vsel %vm3042, 1, 0
        %v5045 = vcvt.s32.f32 %v5037
        %v5046 = vcvt.s32.f32 %v5038
        %v5047 = vcvt.s32.f32 %v5039
        %v5048 = vcvt.s32.f32 %v5040
        %v5049 = vcvt.s32.f32 %v5041
        %v5050 = vcvt.s32.f32 %v5042
        %v5051 = vcvt.s32.f32 %v5043
        %v5052 = vcvt.s32.f32 %v5044
        %v5054 = vsel %vm379, %v5045, 0
        %v5057 = vsel %vm379, %v5046, 0
        %v5060 = vsel %vm379, %v5047, 0
        %v5063 = vsel %vm379, %v5048, 0
        %v5066 = vsel %vm379, %v5049, 0
        %v5069 = vsel %vm379, %v5050, 0
        %v5072 = vsel %vm379, %v5051, 0
        %v5075 = vsel %vm379, %v5052, 0
        %5077 = vmatprep.subr.mxu0 0.0
        %5078 = vmatpush1.xpose.msra.mxu0 0.0
        %5079 = vmatprep.subr.mxu0 0.0
        %5080 = vmatpush1.xpose.msra.mxu0 0.0
        %5081 = vmatprep.subr.mxu0 0.0
        %5082 = vmatpush1.xpose.msra.mxu0 0.0
        %5083 = vmatprep.subr.mxu0 0.0
        %5084 = vmatpush1.xpose.msra.mxu0 0.0
        %5085 = vmatprep.subr.mxu0 0.0
        %5086 = vmatpush1.xpose.msra.mxu0 0.0
        %5087 = vmatprep.subr.mxu0 0.0
        %5088 = vmatpush1.xpose.msra.mxu0 0.0
        %5089 = vmatprep.subr.mxu0 0.0
        %5090 = vmatpush1.xpose.msra.mxu0 0.0
        %5091 = vmatprep.subr.mxu0 0.0
        %5092 = vmatpush1.xpose.msra.mxu0 0.0
        %5093 = vmatprep.subr.mxu0 0.0
        %5094 = vmatpush1.xpose.msra.mxu0 %v5075
        %5095 = vmatprep.subr.mxu0 0.0
        %5096 = vmatpush1.xpose.msra.mxu0 %v5072
        %5097 = vmatprep.subr.mxu0 0.0
        %5098 = vmatpush1.xpose.msra.mxu0 %v5069
        %5099 = vmatprep.subr.mxu0 0.0
        %5100 = vmatpush1.xpose.msra.mxu0 %v5066
        %5101 = vmatprep.subr.mxu0 0.0
        %5102 = vmatpush1.xpose.msra.mxu0 %v5063
        %5103 = vmatprep.subr.mxu0 0.0
        %5104 = vmatpush1.xpose.msra.mxu0 %v5060
        %5105 = vmatprep.subr.mxu0 0.0
        %5106 = vmatpush1.xpose.msra.mxu0 %v5057
        %5107 = vmatprep.subr.mxu0 0.0
        %5108 = vmatpush1.xpose.msra.mxu0 %v5054
        %5109 = vmatprep.subr.mxu0 0.0
        %5110 = vmatpush2.xpose.msra.mxu0 0.0
        %5111 = vmatprep.subr.mxu0 0.0
        %5112 = vmatpush2.xpose.msra.mxu0 0.0
        %5113 = vmatprep.subr.mxu0 0.0
        %5114 = vmatpush2.xpose.msra.mxu0 0.0
        %5115 = vmatprep.subr.mxu0 0.0
        %5116 = vmatpush2.xpose.msra.mxu0 0.0
        %5117 = vmatprep.subr.mxu0 0.0
        %5118 = vmatpush2.xpose.msra.mxu0 0.0
        %5119 = vmatprep.subr.mxu0 0.0
        %5120 = vmatpush2.xpose.msra.mxu0 0.0
        %5121 = vmatprep.subr.mxu0 0.0
        %5122 = vmatpush2.xpose.msra.mxu0 0.0
        %5123 = vmatprep.subr.mxu0 0.0
        %5124 = vmatpush2.xpose.msra.mxu0 0.0
        %5125 = vmatprep.subr.mxu0 0.0
        %5126 = vmatpush2.xpose.msra.mxu0 0.0
        %5127 = vmatprep.subr.mxu0 0.0
        %5128 = vmatpush2.xpose.msra.mxu0 0.0
        %5129 = vmatprep.subr.mxu0 0.0
        %5130 = vmatpush2.xpose.msra.mxu0 0.0
        %5131 = vmatprep.subr.mxu0 0.0
        %5132 = vmatpush2.xpose.msra.mxu0 0.0
        %5133 = vmatprep.subr.mxu0 0.0
        %5134 = vmatpush2.xpose.msra.mxu0 0.0
        %5135 = vmatprep.subr.mxu0 0.0
        %5136 = vmatpush2.xpose.msra.mxu0 0.0
        %5137 = vmatprep.subr.mxu0 0.0
        %5138 = vmatpush2.xpose.msra.mxu0 0.0
        %5139 = vmatprep.subr.mxu0 0.0
        %5140 = vmatpush2.xpose.msra.mxu0 0.0
        %5141 = vmatprep.mubr.f32.mxu0 0.0
        %5142 = vmatmul.mubr.f32.gmra.mxu0 %v3236
        %v5143 = vpop.f32.mrf.mxu0
        %v5144 = vadd.f32 0.0, %v5143
        %v5145 = vpop.f32.mrf.mxu0
        %5146 = vmatprep.mubr.f32.mxu0 0.0
        %5147 = vmatmul.mubr.f32.gmra.mxu0 %v3239
        %v5148 = vpop.f32.mrf.mxu0
        %v5149 = vadd.f32 0.0, %v5148
        %v5150 = vpop.f32.mrf.mxu0
        %5151 = vmatprep.mubr.f32.mxu0 0.0
        %5152 = vmatmul.mubr.f32.gmra.mxu0 %v3242
        %v5153 = vpop.f32.mrf.mxu0
        %v5154 = vadd.f32 0.0, %v5153
        %v5155 = vpop.f32.mrf.mxu0
        %5156 = vmatprep.mubr.f32.mxu0 0.0
        %5157 = vmatmul.mubr.f32.gmra.mxu0 %v3245
        %v5158 = vpop.f32.mrf.mxu0
        %v5159 = vadd.f32 0.0, %v5158
        %v5160 = vpop.f32.mrf.mxu0
        %5161 = vdwg.mxu0
        %v5162 = vmax.f32 %v5033, %v5144
        %v5163 = vmax.f32 %v5034, %v5149
        %v5164 = vmax.f32 %v5035, %v5154
        %v5165 = vmax.f32 %v5036, %v5159
        %v5166 = vsel %vm3211, 1, 0
        %v5167 = vsel %vm3212, 1, 0
        %v5168 = vsel %vm3213, 1, 0
        %v5169 = vsel %vm3214, 1, 0
        %v5170 = vsel %vm3215, 1, 0
        %v5171 = vsel %vm3216, 1, 0
        %v5172 = vsel %vm3217, 1, 0
        %v5173 = vsel %vm3218, 1, 0
        %v5174 = vcvt.s32.f32 %v5166
        %v5175 = vcvt.s32.f32 %v5167
        %v5176 = vcvt.s32.f32 %v5168
        %v5177 = vcvt.s32.f32 %v5169
        %v5178 = vcvt.s32.f32 %v5170
        %v5179 = vcvt.s32.f32 %v5171
        %v5180 = vcvt.s32.f32 %v5172
        %v5181 = vcvt.s32.f32 %v5173
        %v5183 = vsel %vm379, %v5174, 0
        %v5186 = vsel %vm379, %v5175, 0
        %v5189 = vsel %vm379, %v5176, 0
        %v5192 = vsel %vm379, %v5177, 0
        %v5195 = vsel %vm379, %v5178, 0
        %v5198 = vsel %vm379, %v5179, 0
        %v5201 = vsel %vm379, %v5180, 0
        %v5204 = vsel %vm379, %v5181, 0
        %5206 = vmatprep.subr.mxu0 0.0
        %5207 = vmatpush1.xpose.msra.mxu0 0.0
        %5208 = vmatprep.subr.mxu0 0.0
        %5209 = vmatpush1.xpose.msra.mxu0 0.0
        %5210 = vmatprep.subr.mxu0 0.0
        %5211 = vmatpush1.xpose.msra.mxu0 0.0
        %5212 = vmatprep.subr.mxu0 0.0
        %5213 = vmatpush1.xpose.msra.mxu0 0.0
        %5214 = vmatprep.subr.mxu0 0.0
        %5215 = vmatpush1.xpose.msra.mxu0 0.0
        %5216 = vmatprep.subr.mxu0 0.0
        %5217 = vmatpush1.xpose.msra.mxu0 0.0
        %5218 = vmatprep.subr.mxu0 0.0
        %5219 = vmatpush1.xpose.msra.mxu0 0.0
        %5220 = vmatprep.subr.mxu0 0.0
        %5221 = vmatpush1.xpose.msra.mxu0 0.0
        %5222 = vmatprep.subr.mxu0 0.0
        %5223 = vmatpush1.xpose.msra.mxu0 %v5204
        %5224 = vmatprep.subr.mxu0 0.0
        %5225 = vmatpush1.xpose.msra.mxu0 %v5201
        %5226 = vmatprep.subr.mxu0 0.0
        %5227 = vmatpush1.xpose.msra.mxu0 %v5198
        %5228 = vmatprep.subr.mxu0 0.0
        %5229 = vmatpush1.xpose.msra.mxu0 %v5195
        %5230 = vmatprep.subr.mxu0 0.0
        %5231 = vmatpush1.xpose.msra.mxu0 %v5192
        %5232 = vmatprep.subr.mxu0 0.0
        %5233 = vmatpush1.xpose.msra.mxu0 %v5189
        %5234 = vmatprep.subr.mxu0 0.0
        %5235 = vmatpush1.xpose.msra.mxu0 %v5186
        %5236 = vmatprep.subr.mxu0 0.0
        %5237 = vmatpush1.xpose.msra.mxu0 %v5183
        %5238 = vmatprep.subr.mxu0 0.0
        %5239 = vmatpush2.xpose.msra.mxu0 0.0
        %5240 = vmatprep.subr.mxu0 0.0
        %5241 = vmatpush2.xpose.msra.mxu0 0.0
        %5242 = vmatprep.subr.mxu0 0.0
        %5243 = vmatpush2.xpose.msra.mxu0 0.0
        %5244 = vmatprep.subr.mxu0 0.0
        %5245 = vmatpush2.xpose.msra.mxu0 0.0
        %5246 = vmatprep.subr.mxu0 0.0
        %5247 = vmatpush2.xpose.msra.mxu0 0.0
        %5248 = vmatprep.subr.mxu0 0.0
        %5249 = vmatpush2.xpose.msra.mxu0 0.0
        %5250 = vmatprep.subr.mxu0 0.0
        %5251 = vmatpush2.xpose.msra.mxu0 0.0
        %5252 = vmatprep.subr.mxu0 0.0
        %5253 = vmatpush2.xpose.msra.mxu0 0.0
        %5254 = vmatprep.subr.mxu0 0.0
        %5255 = vmatpush2.xpose.msra.mxu0 0.0
        %5256 = vmatprep.subr.mxu0 0.0
        %5257 = vmatpush2.xpose.msra.mxu0 0.0
        %5258 = vmatprep.subr.mxu0 0.0
        %5259 = vmatpush2.xpose.msra.mxu0 0.0
        %5260 = vmatprep.subr.mxu0 0.0
        %5261 = vmatpush2.xpose.msra.mxu0 0.0
        %5262 = vmatprep.subr.mxu0 0.0
        %5263 = vmatpush2.xpose.msra.mxu0 0.0
        %5264 = vmatprep.subr.mxu0 0.0
        %5265 = vmatpush2.xpose.msra.mxu0 0.0
        %5266 = vmatprep.subr.mxu0 0.0
        %5267 = vmatpush2.xpose.msra.mxu0 0.0
        %5268 = vmatprep.subr.mxu0 0.0
        %5269 = vmatpush2.xpose.msra.mxu0 0.0
        %5270 = vmatprep.mubr.f32.mxu0 0.0
        %5271 = vmatmul.mubr.f32.gmra.mxu0 %v3236
        %v5272 = vpop.f32.mrf.mxu0
        %v5273 = vadd.f32 0.0, %v5272
        %v5274 = vpop.f32.mrf.mxu0
        %5275 = vmatprep.mubr.f32.mxu0 0.0
        %5276 = vmatmul.mubr.f32.gmra.mxu0 %v3239
        %v5277 = vpop.f32.mrf.mxu0
        %v5278 = vadd.f32 0.0, %v5277
        %v5279 = vpop.f32.mrf.mxu0
        %5280 = vmatprep.mubr.f32.mxu0 0.0
        %5281 = vmatmul.mubr.f32.gmra.mxu0 %v3242
        %v5282 = vpop.f32.mrf.mxu0
        %v5283 = vadd.f32 0.0, %v5282
        %v5284 = vpop.f32.mrf.mxu0
        %5285 = vmatprep.mubr.f32.mxu0 0.0
        %5286 = vmatmul.mubr.f32.gmra.mxu0 %v3245
        %v5287 = vpop.f32.mrf.mxu0
        %v5288 = vadd.f32 0.0, %v5287
        %v5289 = vpop.f32.mrf.mxu0
        %5290 = vdwg.mxu0
        %v5291 = vmax.f32 %v5162, %v5273
        %v5292 = vmax.f32 %v5163, %v5278
        %v5293 = vmax.f32 %v5164, %v5283
        %v5294 = vmax.f32 %v5165, %v5288
        %v5295 = vld [vmem:[%s1] sm:$0xff]
        %v5296 = vld [vmem:[%s1 + $0x8] sm:$0xff]
        %v5297 = vld [vmem:[%s1 + $0x10] sm:$0xff]
        %v5298 = vld [vmem:[%s1 + $0x18] sm:$0xff]
        %v5299 = vld [vmem:[%s1 + $0x20] sm:$0xff]
        %v5300 = vld [vmem:[%s1 + $0x28] sm:$0xff]
        %v5301 = vld [vmem:[%s1 + $0x30] sm:$0xff]
        %v5302 = vld [vmem:[%s1 + $0x38] sm:$0xff]
        %v5303 = vld [vmem:[%s2] sm:$0xff]
        %v5304 = vld [vmem:[%s2 + $0x8] sm:$0xff]
        %v5305 = vld [vmem:[%s2 + $0x10] sm:$0xff]
        %v5306 = vld [vmem:[%s2 + $0x18] sm:$0xff]
        %v5307 = vld [vmem:[%s2 + $0x20] sm:$0xff]
        %v5308 = vld [vmem:[%s2 + $0x28] sm:$0xff]
        %v5309 = vld [vmem:[%s2 + $0x30] sm:$0xff]
        %v5310 = vld [vmem:[%s2 + $0x38] sm:$0xff]
        %5312 = vset.pattern.permute.xlu0 0
        %5313 = vperm.xlu0 %5312, %v5303
        %v5314 = vpop.permute.xlu0 %5313
        %5317 = vset.pattern.permute.xlu0 0
        %5318 = vperm.xlu0 %5317, %v5304
        %v5319 = vpop.permute.xlu0 %5318
        %5322 = vset.pattern.permute.xlu0 0
        %5323 = vperm.xlu0 %5322, %v5305
        %v5324 = vpop.permute.xlu0 %5323
        %5327 = vset.pattern.permute.xlu0 0
        %5328 = vperm.xlu0 %5327, %v5306
        %v5329 = vpop.permute.xlu0 %5328
        %5332 = vset.pattern.permute.xlu0 0
        %5333 = vperm.xlu0 %5332, %v5307
        %v5334 = vpop.permute.xlu0 %5333
        %5337 = vset.pattern.permute.xlu0 0
        %5338 = vperm.xlu0 %5337, %v5308
        %v5339 = vpop.permute.xlu0 %5338
        %5342 = vset.pattern.permute.xlu0 0
        %5343 = vperm.xlu0 %5342, %v5309
        %v5344 = vpop.permute.xlu0 %5343
        %5347 = vset.pattern.permute.xlu0 0
        %5348 = vperm.xlu0 %5347, %v5310
        %v5349 = vpop.permute.xlu0 %5348
        %v5352 = vsel %vm245, %v5295, 0
        %v5355 = vsel %vm245, %v5296, 0
        %v5358 = vsel %vm245, %v5297, 0
        %v5361 = vsel %vm245, %v5298, 0
        %v5364 = vsel %vm245, %v5299, 0
        %v5367 = vsel %vm245, %v5300, 0
        %v5370 = vsel %vm245, %v5301, 0
        %v5373 = vsel %vm245, %v5302, 0
        %5375 = vmatprep.subr.mxu0 0.0
        %5376 = vmatpush1.msra.mxu0 0.0
        %5377 = vmatprep.subr.mxu0 0.0
        %5378 = vmatpush1.msra.mxu0 0.0
        %5379 = vmatprep.subr.mxu0 0.0
        %5380 = vmatpush1.msra.mxu0 0.0
        %5381 = vmatprep.subr.mxu0 0.0
        %5382 = vmatpush1.msra.mxu0 0.0
        %5383 = vmatprep.subr.mxu0 0.0
        %5384 = vmatpush1.msra.mxu0 0.0
        %5385 = vmatprep.subr.mxu0 0.0
        %5386 = vmatpush1.msra.mxu0 0.0
        %5387 = vmatprep.subr.mxu0 0.0
        %5388 = vmatpush1.msra.mxu0 0.0
        %5389 = vmatprep.subr.mxu0 0.0
        %5390 = vmatpush1.msra.mxu0 0.0
        %5391 = vmatprep.subr.mxu0 0.0
        %5392 = vmatpush1.msra.mxu0 0.0
        %5393 = vmatprep.subr.mxu0 0.0
        %5394 = vmatpush1.msra.mxu0 0.0
        %5395 = vmatprep.subr.mxu0 0.0
        %5396 = vmatpush1.msra.mxu0 0.0
        %5397 = vmatprep.subr.mxu0 0.0
        %5398 = vmatpush1.msra.mxu0 0.0
        %5399 = vmatprep.subr.mxu0 0.0
        %5400 = vmatpush1.msra.mxu0 %v5294
        %5401 = vmatprep.subr.mxu0 0.0
        %5402 = vmatpush1.msra.mxu0 %v5293
        %5403 = vmatprep.subr.mxu0 0.0
        %5404 = vmatpush1.msra.mxu0 %v5292
        %5405 = vmatprep.subr.mxu0 0.0
        %5406 = vmatpush1.msra.mxu0 %v5291
        %5407 = vmatprep.subr.mxu0 0.0
        %5408 = vmatpush2.msra.mxu0 0.0
        %5409 = vmatprep.subr.mxu0 0.0
        %5410 = vmatpush2.msra.mxu0 0.0
        %5411 = vmatprep.subr.mxu0 0.0
        %5412 = vmatpush2.msra.mxu0 0.0
        %5413 = vmatprep.subr.mxu0 0.0
        %5414 = vmatpush2.msra.mxu0 0.0
        %5415 = vmatprep.subr.mxu0 0.0
        %5416 = vmatpush2.msra.mxu0 0.0
        %5417 = vmatprep.subr.mxu0 0.0
        %5418 = vmatpush2.msra.mxu0 0.0
        %5419 = vmatprep.subr.mxu0 0.0
        %5420 = vmatpush2.msra.mxu0 0.0
        %5421 = vmatprep.subr.mxu0 0.0
        %5422 = vmatpush2.msra.mxu0 0.0
        %5423 = vmatprep.subr.mxu0 0.0
        %5424 = vmatpush2.msra.mxu0 0.0
        %5425 = vmatprep.subr.mxu0 0.0
        %5426 = vmatpush2.msra.mxu0 0.0
        %5427 = vmatprep.subr.mxu0 0.0
        %5428 = vmatpush2.msra.mxu0 0.0
        %5429 = vmatprep.subr.mxu0 0.0
        %5430 = vmatpush2.msra.mxu0 0.0
        %5431 = vmatprep.subr.mxu0 0.0
        %5432 = vmatpush2.msra.mxu0 0.0
        %5433 = vmatprep.subr.mxu0 0.0
        %5434 = vmatpush2.msra.mxu0 0.0
        %5435 = vmatprep.subr.mxu0 0.0
        %5436 = vmatpush2.msra.mxu0 0.0
        %5437 = vmatprep.subr.mxu0 0.0
        %5438 = vmatpush2.msra.mxu0 0.0
        %5439 = vmatprep.mubr.f32.mxu0 0.0
        %5440 = vmatmul.mubr.f32.gmra.mxu0 %v5352
        %v5441 = vpop.f32.mrf.mxu0
        %v5442 = vadd.f32 %v5314, %v5441
        %v5443 = vpop.f32.mrf.mxu0
        %5444 = vmatprep.mubr.f32.mxu0 0.0
        %5445 = vmatmul.mubr.f32.gmra.mxu0 %v5355
        %v5446 = vpop.f32.mrf.mxu0
        %v5447 = vadd.f32 %v5319, %v5446
        %v5448 = vpop.f32.mrf.mxu0
        %5449 = vmatprep.mubr.f32.mxu0 0.0
        %5450 = vmatmul.mubr.f32.gmra.mxu0 %v5358
        %v5451 = vpop.f32.mrf.mxu0
        %v5452 = vadd.f32 %v5324, %v5451
        %v5453 = vpop.f32.mrf.mxu0
        %5454 = vmatprep.mubr.f32.mxu0 0.0
        %5455 = vmatmul.mubr.f32.gmra.mxu0 %v5361
        %v5456 = vpop.f32.mrf.mxu0
        %v5457 = vadd.f32 %v5329, %v5456
        %v5458 = vpop.f32.mrf.mxu0
        %5459 = vmatprep.mubr.f32.mxu0 0.0
        %5460 = vmatmul.mubr.f32.gmra.mxu0 %v5364
        %v5461 = vpop.f32.mrf.mxu0
        %v5462 = vadd.f32 %v5334, %v5461
        %v5463 = vpop.f32.mrf.mxu0
        %5464 = vmatprep.mubr.f32.mxu0 0.0
        %5465 = vmatmul.mubr.f32.gmra.mxu0 %v5367
        %v5466 = vpop.f32.mrf.mxu0
        %v5467 = vadd.f32 %v5339, %v5466
        %v5468 = vpop.f32.mrf.mxu0
        %5469 = vmatprep.mubr.f32.mxu0 0.0
        %5470 = vmatmul.mubr.f32.gmra.mxu0 %v5370
        %v5471 = vpop.f32.mrf.mxu0
        %v5472 = vadd.f32 %v5344, %v5471
        %v5473 = vpop.f32.mrf.mxu0
        %5474 = vmatprep.mubr.f32.mxu0 0.0
        %5475 = vmatmul.mubr.f32.gmra.mxu0 %v5373
        %v5476 = vpop.f32.mrf.mxu0
        %v5477 = vadd.f32 %v5349, %v5476
        %v5478 = vpop.f32.mrf.mxu0
        %5479 = vdwg.mxu0
        %5480 = vst.msk [vmem:[%s191] sm:$0xff] %vm379, %v5442
        %5481 = vst.msk [vmem:[%s191 + $0x8] sm:$0xff] %vm379, %v5447
        %5482 = vst.msk [vmem:[%s191 + $0x10] sm:$0xff] %vm379, %v5452
        %5483 = vst.msk [vmem:[%s191 + $0x18] sm:$0xff] %vm379, %v5457
        %5484 = vst.msk [vmem:[%s191 + $0x20] sm:$0xff] %vm379, %v5462
        %5485 = vst.msk [vmem:[%s191 + $0x28] sm:$0xff] %vm379, %v5467
        %5486 = vst.msk [vmem:[%s191 + $0x30] sm:$0xff] %vm379, %v5472
        %5487 = vst.msk [vmem:[%s191 + $0x38] sm:$0xff] %vm379, %v5477
        %v5488 = vsel %vm379, %v5442, 0.0
        %5489 = vadd.xlane.f32.xlu0 %v5488
        %v5490 = vpop.xlane.xlu0 %5489
        %v5491 = vsel %vm379, %v5447, 0.0
        %5492 = vadd.xlane.f32.xlu0 %v5491
        %v5493 = vpop.xlane.xlu0 %5492
        %v5494 = vsel %vm379, %v5452, 0.0
        %5495 = vadd.xlane.f32.xlu0 %v5494
        %v5496 = vpop.xlane.xlu0 %5495
        %v5497 = vsel %vm379, %v5457, 0.0
        %5498 = vadd.xlane.f32.xlu0 %v5497
        %v5499 = vpop.xlane.xlu0 %5498
        %v5500 = vsel %vm379, %v5462, 0.0
        %5501 = vadd.xlane.f32.xlu0 %v5500
        %v5502 = vpop.xlane.xlu0 %5501
        %v5503 = vsel %vm379, %v5467, 0.0
        %5504 = vadd.xlane.f32.xlu0 %v5503
        %v5505 = vpop.xlane.xlu0 %5504
        %v5506 = vsel %vm379, %v5472, 0.0
        %5507 = vadd.xlane.f32.xlu0 %v5506
        %v5508 = vpop.xlane.xlu0 %5507
        %v5509 = vsel %vm379, %v5477, 0.0
        %5510 = vadd.xlane.f32.xlu0 %v5509
        %v5511 = vpop.xlane.xlu0 %5510
        %v5512 = vmul.f32 %v5442, %v5442
        %v5513 = vmul.f32 %v5447, %v5447
        %v5514 = vmul.f32 %v5452, %v5452
        %v5515 = vmul.f32 %v5457, %v5457
        %v5516 = vmul.f32 %v5462, %v5462
        %v5517 = vmul.f32 %v5467, %v5467
        %v5518 = vmul.f32 %v5472, %v5472
        %v5519 = vmul.f32 %v5477, %v5477
        %v5520 = vsel %vm379, %v5512, 0.0
        %5521 = vadd.xlane.f32.xlu0 %v5520
        %v5522 = vpop.xlane.xlu0 %5521
        %v5523 = vsel %vm379, %v5513, 0.0
        %5524 = vadd.xlane.f32.xlu0 %v5523
        %v5525 = vpop.xlane.xlu0 %5524
        %v5526 = vsel %vm379, %v5514, 0.0
        %5527 = vadd.xlane.f32.xlu0 %v5526
        %v5528 = vpop.xlane.xlu0 %5527
        %v5529 = vsel %vm379, %v5515, 0.0
        %5530 = vadd.xlane.f32.xlu0 %v5529
        %v5531 = vpop.xlane.xlu0 %5530
        %v5532 = vsel %vm379, %v5516, 0.0
        %5533 = vadd.xlane.f32.xlu0 %v5532
        %v5534 = vpop.xlane.xlu0 %5533
        %v5535 = vsel %vm379, %v5517, 0.0
        %5536 = vadd.xlane.f32.xlu0 %v5535
        %v5537 = vpop.xlane.xlu0 %5536
        %v5538 = vsel %vm379, %v5518, 0.0
        %5539 = vadd.xlane.f32.xlu0 %v5538
        %v5540 = vpop.xlane.xlu0 %5539
        %v5541 = vsel %vm379, %v5519, 0.0
        %5542 = vadd.xlane.f32.xlu0 %v5541
        %v5543 = vpop.xlane.xlu0 %5542
        %vm5544 = vcmask 7168
        %v5545 = vsel %vm5544, %v5490, %v5522
        %v5546 = vsel %vm5544, %v5493, %v5525
        %v5547 = vsel %vm5544, %v5496, %v5528
        %v5548 = vsel %vm5544, %v5499, %v5531
        %v5549 = vsel %vm5544, %v5502, %v5534
        %v5550 = vsel %vm5544, %v5505, %v5537
        %v5551 = vsel %vm5544, %v5508, %v5540
        %v5552 = vsel %vm5544, %v5511, %v5543
        %vm5553 = vcmask 15360
        %5554 = vst.msk [vmem:[%s208] sm:$0xff] %vm5553, %v5545
        %5555 = vst.msk [vmem:[%s208 + $0x8] sm:$0xff] %vm5553, %v5546
        %5556 = vst.msk [vmem:[%s208 + $0x10] sm:$0xff] %vm5553, %v5547
        %5557 = vst.msk [vmem:[%s208 + $0x18] sm:$0xff] %vm5553, %v5548
        %5558 = vst.msk [vmem:[%s208 + $0x20] sm:$0xff] %vm5553, %v5549
        %5559 = vst.msk [vmem:[%s208 + $0x28] sm:$0xff] %vm5553, %v5550
        %5560 = vst.msk [vmem:[%s208 + $0x30] sm:$0xff] %vm5553, %v5551
        %5561 = vst.msk [vmem:[%s208 + $0x38] sm:$0xff] %vm5553, %v5552
        %s5562 = sand.u32 %s95, 1
        %s5563 = scalar_lea.sflag [#allocation3], %s5562
        %s5564 = sand.u32 %s95, 1
        %s5565 = smul.addr %s5564, 64
        %s5566 = scalar_lea.vmem [#allocation2], %s5565
        %p5567 = scmp.lt.s32.totalorder %s19, 1
        %s5568 = scalar_select %p5567, %s19, 1
        %s5569 = smul.addr %s5568, 8
        %s5570 = smul.addr %s5569, 8
        %s5571 = scalar_lea.vmem %s4, %s5570
        // Predicated region
        $region33: #{tpu_custom_call.1} parent=31 // pred_check
          %p5572 = pneg %p105
        $region34: #{tpu_custom_call.1} parent=31 // pred_check_branch
          %5574 = sbr.rel (%p5572) target = $region36
        $region35: #{tpu_custom_call.1} parent=31 // pred_region
          %s5576 = ssub.s32 1024, 1024
          %5577 = vsyncadd %s5563, %s5576
          %s5578 = smul.addr %s19, 8
          %s5579 = smul.addr %s5578, 128
          %s5580 = scalar_lea.hbm %s3, %s5579
          %s5581 = sshll.u32 %s5566, 4
          %s5582 = int_to_ptr.vmem [resolvable:$true] %s5581
          %5587 = dma.vmem_to_hbm [thread:$0]  %s5582, 1024, %s5580, %s5563, 128, 128, 8
        $region36: #{tpu_custom_call.1} parent=31 // pred_fallthru
          _
        // Predicated region
        $region37: #{tpu_custom_call.1} parent=31 // pred_check
          %p5588 = pneg %p131
        $region38: #{tpu_custom_call.1} parent=31 // pred_check_branch
          %5590 = sbr.rel (%p5588) target = $region40
        $region39: #{tpu_custom_call.1} parent=31 // pred_region
          _
        $region40: #{tpu_custom_call.1} parent=31 // pred_fallthru
          _
      $region32: #{tpu_custom_call.1} parent=5 // pred_fallthru
        _
      %p5591 = scmp.le.s32.totalorder 2, %s14
      // Predicated region
      $region41: #{tpu_custom_call.1} parent=5 // pred_check
        %p5592 = pneg %p5591
      $region42: #{tpu_custom_call.1} parent=5 // pred_check_branch
        %5594 = sbr.rel (%p5592) target = $region44
      $region43: #{tpu_custom_call.1} parent=5 // pred_region
        %s5595 = ssub.s32 %s14, 2
        // Predicated region
        $region45: #{tpu_custom_call.1} parent=43 // pred_check
          %p5596 = pneg %p111
        $region46: #{tpu_custom_call.1} parent=43 // pred_check_branch
          %5598 = sbr.rel (%p5596) target = $region48
        $region47: #{tpu_custom_call.1} parent=43 // pred_region
          %s5599 = sand.u32 %s96, 1
          %s5600 = scalar_lea.sflag [#allocation3], %s5599
          %s5601 = sand.u32 %s96, 1
          %s5602 = smul.addr %s5601, 64
          %s5603 = scalar_lea.vmem [#allocation2], %s5602
          %5604 = dma.done %s5600, 1024
        $region48: #{tpu_custom_call.1} parent=43 // pred_fallthru
          _
        // Predicated region
        $region49: #{tpu_custom_call.1} parent=43 // pred_check
          %p5605 = pneg %p137
        $region50: #{tpu_custom_call.1} parent=43 // pred_check_branch
          %5607 = sbr.rel (%p5605) target = $region52
        $region51: #{tpu_custom_call.1} parent=43 // pred_region
          %p5608 = scmp.lt.s32.totalorder %s20, 1
          %s5609 = scalar_select %p5608, %s20, 1
          %s5610 = smul.addr %s5609, 8
          %s5611 = smul.addr %s5610, 8
          %s5612 = scalar_lea.vmem %s4, %s5611
        $region52: #{tpu_custom_call.1} parent=43 // pred_fallthru
          _
      $region44: #{tpu_custom_call.1} parent=5 // pred_fallthru
        _
    $region6: #{tpu_custom_call.1} parent=1 // loop_footer
      %s18 = sadd.s32 1, %s14
    $region7: #{tpu_custom_call.1} parent=1 // loop_footer_branch
      %13 = sbr.rel target = $region3
    $region8: #{tpu_custom_call.1} parent=1 // loop_exit
      _
    %5613 = vsyncpa [#allocation3], 1
    %s5614 = scalar_lea.sflag [#allocation3], 1
    %5615 = vsyncpa %s5614, 1

</llo_original>
